<compile_context>
chip_gen: v7x
topology: tpu7x:2x2x1
jax: 0.10.0
libtpu: 0.0.40
codegen_flags: <defaults>
</compile_context>

<pallas_src>
import functools

import jax
import jax.numpy as jnp
import numpy as np
from jax.experimental import pallas as pl
from jax.experimental.pallas import tpu as pltpu

BN_EPS = 1e-5


# ----------------------------------------------------------------------------
# Lane-shift helper (+ one-off probe of pltpu.roll's rotation convention)
# ----------------------------------------------------------------------------
@functools.lru_cache(maxsize=None)
def _roll_mode():
  """Probe pltpu.roll direction once (outside jit). Falls back to concat."""
  try:
    def k(x_ref, o_ref):
      o_ref[...] = pltpu.roll(x_ref[...], shift=1, axis=1)

    x = jax.lax.broadcasted_iota(jnp.float32, (8, 128), 1)
    y = np.asarray(
        pl.pallas_call(k, out_shape=jax.ShapeDtypeStruct((8, 128),
                                                         jnp.float32))(x))
    if y[0, 0] == 127.0 and y[0, 1] == 0.0:
      return "roll_numpy"      # roll(x, s)[:, p] == x[:, p - s]
    if y[0, 0] == 1.0 and y[0, 1] == 2.0:
      return "roll_reverse"    # roll(x, s)[:, p] == x[:, p + s]
  except Exception:            # pragma: no cover - lowering not available
    pass
  return "concat"


def _shift_cols(x, off, hw, mode):
  """Returns y with y[:, p] = x[:, (p + off) % hw] (callers mask the wrap)."""
  k = off % hw
  if k == 0:
    return x
  if mode == "roll_numpy":
    return pltpu.roll(x, shift=hw - k, axis=1)
  if mode == "roll_reverse":
    return pltpu.roll(x, shift=k, axis=1)
  # fallback: explicit rotate via two lane slices + concat
  return jnp.concatenate([x[:, k:], x[:, :k]], axis=1)


def _border_masks(H, W):
  """(9, 1, H*W) f32 masks: 1 where the (dy,dx)-shifted neighbour is in-image."""
  yy = np.arange(H).reshape(H, 1)
  xx = np.arange(W).reshape(1, W)
  m = np.zeros((9, 1, H * W), np.float32)
  for ky in range(3):
    for kx in range(3):
      dy, dx = ky - 1, kx - 1
      valid = ((yy + dy >= 0) & (yy + dy < H) &
               (xx + dx >= 0) & (xx + dx < W))
      m[ky * 3 + kx, 0] = valid.reshape(-1).astype(np.float32)
  return jnp.asarray(m)


# ----------------------------------------------------------------------------
# Fused kernel: one grid step == one batch element, everything in VMEM
# ----------------------------------------------------------------------------
def _cfi_kernel(xh_ref, xl_ref, mask_ref, saw_ref,
                cbr1_w_ref, cbr1_b_ref,
                cca1_wt_ref, cca1_b_ref,
                cca2_wt_ref, cca2_b_ref,
                fc1_wt_ref, fc2_w_ref,
                cpa_w_ref, cpa_b_ref,
                post_w_ref, post_b_ref,
                o1_ref, o2_ref,
                *, H, W, shift_mode):
  HW = H * W
  f32 = jnp.float32

  xh = xh_ref[0]                                            # (Ch, HW)
  xl = xl_ref[0]                                            # (Cl, HW)

  # --- cbr1: 1x1 conv (+ folded BN) + ReLU --------------------------------
  xh1 = jnp.maximum(
      jnp.dot(cbr1_w_ref[...], xh, preferred_element_type=f32)
      + cbr1_b_ref[...], 0.0)                               # (Cout, HW)

  # --- cross channel attention (global pool + SE + ChannelAttention) ------
  pooled = jnp.mean(xh1, axis=1, keepdims=True)             # (Cout, 1)
  y1 = jnp.maximum(
      jnp.sum(cca1_wt_ref[...] * pooled, axis=0, keepdims=True)
      + cca1_b_ref[...], 0.0)                               # (1, Cb)
  z = jnp.dot(y1, cca2_wt_ref[...], preferred_element_type=f32) \
      + cca2_b_ref[...]                                     # (1, Cout)
  # ChannelAttention on a 1x1 map: max-pool == avg-pool == identity, so
  # fc(max) + fc(avg) == 2 * fc(z).
  h = jnp.maximum(
      jnp.dot(z, fc1_wt_ref[...], preferred_element_type=f32), 0.0)  # (1, hid)
  f = jnp.sum(fc2_w_ref[...] * h, axis=1, keepdims=True)    # (Cout, 1)
  ca = jax.nn.sigmoid(2.0 * f)                              # (Cout, 1)

  # --- cross pixel attention ----------------------------------------------
  xl_ca = xl * ca                                           # (Cl, HW); Cl==Cout
  t = jnp.maximum(
      jnp.dot(cpa_w_ref[...], xl_ca, preferred_element_type=f32)
      + cpa_b_ref[...], 0.0)                                # (Cb, HW)
  t_avg = jnp.mean(t, axis=0, keepdims=True)                # (1, HW)
  t_max = jnp.max(t, axis=0, keepdims=True)                 # (1, HW)

  pa_acc = jnp.zeros((1, HW), f32)
  for ky in range(3):
    for kx in range(3):
      tap = ky * 3 + kx
      off = (ky - 1) * W + (kx - 1)
      wa = saw_ref[2 * tap]
      wm = saw_ref[2 * tap + 1]
      if off == 0:
        pa_acc = pa_acc + wa * t_avg + wm * t_max
      else:
        contrib = (wa * _shift_cols(t_avg, off, HW, shift_mode)
                   + wm * _shift_cols(t_max, off, HW, shift_mode))
        pa_acc = pa_acc + contrib * mask_ref[tap]
  pa = jax.nn.sigmoid(pa_acc)                               # (1, HW)

  # --- post: shared 3x3 conv (+ folded BN, + folded 2x scale) + ReLU -------
  def post_conv(xs):                                        # xs: (Cout, HW)
    cout = post_b_ref.shape[0]
    acc = jnp.zeros((cout, HW), f32)
    for ky in range(3):
      for kx in range(3):
        tap = ky * 3 + kx
        off = (ky - 1) * W + (kx - 1)
        if off == 0:
          win = xs
        else:
          win = _shift_cols(xs, off, HW, shift_mode) * mask_ref[tap]
        acc = acc + jnp.dot(post_w_ref[tap], win, preferred_element_type=f32)
    return jnp.maximum(acc + post_b_ref[...], 0.0)

  o1_ref[0] = post_conv(xl_ca)          # out1 = post(2 * xl  * ca)
  o2_ref[0] = post_conv(xh1 * pa)       # out2 = post(2 * xh1 * pa)


# ----------------------------------------------------------------------------
# Wrapper
# ----------------------------------------------------------------------------
def _const_spec(shape):
  rank = len(shape)
  return pl.BlockSpec(shape, lambda *_: (0,) * rank)


def cross_feature_interaction(xh, xl, kp, *, shift_mode="roll_numpy"):
  B, Ch, H, W = xh.shape
  _, Cl, _, _ = xl.shape
  Cout = kp['cbr1_w'].shape[0]
  assert Cl == Cout, "module requires in_low_channels == out_channels"
  HW = H * W
  Cb = kp['cpa_w'].shape[0]
  hidden = kp['fc1_wT'].shape[1]

  # NCHW is already channels-first: flattening spatial dims is layout-free.
  xh_r = xh.reshape(B, Ch, HW)
  xl_r = xl.reshape(B, Cl, HW)
  masks = _border_masks(H, W)

  kern = functools.partial(_cfi_kernel, H=H, W=W, shift_mode=shift_mode)

  out1, out2 = pl.pallas_call(
      kern,
      out_shape=(jax.ShapeDtypeStruct((B, Cout, HW), jnp.float32),
                 jax.ShapeDtypeStruct((B, Cout, HW), jnp.float32)),
      grid=(B,),
      in_specs=[
          pl.BlockSpec((1, Ch, HW), lambda i: (i, 0, 0)),
          pl.BlockSpec((1, Cl, HW), lambda i: (i, 0, 0)),
          _const_spec((9, 1, HW)),
          pl.BlockSpec(memory_space=pltpu.MemorySpace.SMEM),
          _const_spec((Cout, Ch)), _const_spec((Cout, 1)),
          _const_spec((Cout, Cb)), _const_spec((1, Cb)),
          _const_spec((Cb, Cout)), _const_spec((1, Cout)),
          _const_spec((Cout, hidden)), _const_spec((Cout, hidden)),
          _const_spec((Cb, Cl)), _const_spec((Cb, 1)),
          _const_spec((9, Cout, Cout)), _const_spec((Cout, 1)),
      ],
      out_specs=(pl.BlockSpec((1, Cout, HW), lambda i: (i, 0, 0)),
                 pl.BlockSpec((1, Cout, HW), lambda i: (i, 0, 0))),
      compiler_params=pltpu.CompilerParams(
          dimension_semantics=("parallel",)),
  )(xh_r, xl_r, masks, kp['sa_w'],
    kp['cbr1_w'], kp['cbr1_b'],
    kp['cca1_wT'], kp['cca1_b'],
    kp['cca2_wT'], kp['cca2_b'],
    kp['fc1_wT'], kp['fc2_w'],
    kp['cpa_w'], kp['cpa_b'],
    kp['post_w9'], kp['post_b'])

  return out1.reshape(B, Cout, H, W), out2.reshape(B, Cout, H, W)


# ----------------------------------------------------------------------------
# Parameters (deterministic, synthetic) + BN / constant folding
# ----------------------------------------------------------------------------
def init_params(key, ch_high, ch_low, cout, r=4, ca_ratio=16):
  bneck = cout // r
  hidden = cout // ca_ratio
  it = iter(list(jax.random.split(key, 40)))

  def nrm(shape, s):
    return (s * jax.random.normal(next(it), shape)).astype(jnp.float32)

  def bn(c):
    return dict(
        gamma=jax.random.uniform(next(it), (c,), jnp.float32, 0.8, 1.2),
        beta=nrm((c,), 0.05),
        mean=nrm((c,), 0.05),
        var=jax.random.uniform(next(it), (c,), jnp.float32, 0.5, 1.5),
    )

  return {
      'cbr1_w': nrm((cout, ch_high), 0.2), 'cbr1_b': nrm((cout,), 0.05),
      'cbr1_bn': bn(cout),
      'cca1_w': nrm((bneck, cout), 0.2), 'cca1_b': nrm((bneck,), 0.05),
      'cca1_bn': bn(bneck),
      'cca2_w': nrm((cout, bneck), 0.2), 'cca2_b': nrm((cout,), 0.05),
      'cca2_bn': bn(cout),
      'fc1_w': nrm((hidden, cout), 0.2),
      'fc2_w': nrm((cout, hidden), 0.2),
      'cpa_w': nrm((bneck, ch_low), 0.2), 'cpa_b': nrm((bneck,), 0.05),
      'cpa_bn': bn(bneck),
      'sa_w': nrm((1, 2, 3, 3), 0.3),
      'post_w': nrm((cout, cout, 3, 3), 0.1), 'post_b': nrm((cout,), 0.05),
      'post_bn': bn(cout),
  }


def fold_bn(w, b, q, eps=BN_EPS):
  s = q['gamma'] / jnp.sqrt(q['var'] + eps)
  wf = w * s.reshape((-1,) + (1,) * (w.ndim - 1))
  bf = (b - q['mean']) * s + q['beta']
  return wf, bf


def prepare_kernel_params(p):
  kp = {}
  w, b = fold_bn(p['cbr1_w'], p['cbr1_b'], p['cbr1_bn'])
  kp['cbr1_w'], kp['cbr1_b'] = w, b.reshape(-1, 1)           # (Cout,Ch),(Cout,1)

  w, b = fold_bn(p['cca1_w'], p['cca1_b'], p['cca1_bn'])
  kp['cca1_wT'], kp['cca1_b'] = w.T, b.reshape(1, -1)        # (Cout,Cb),(1,Cb)

  w, b = fold_bn(p['cca2_w'], p['cca2_b'], p['cca2_bn'])
  kp['cca2_wT'], kp['cca2_b'] = w.T, b.reshape(1, -1)        # (Cb,Cout),(1,Cout)

  kp['fc1_wT'] = p['fc1_w'].T                                # (Cout, hidden)
  kp['fc2_w'] = p['fc2_w']                                   # (Cout, hidden)

  w, b = fold_bn(p['cpa_w'], p['cpa_b'], p['cpa_bn'])
  kp['cpa_w'], kp['cpa_b'] = w, b.reshape(-1, 1)             # (Cb,Cl),(Cb,1)

  kp['sa_w'] = jnp.transpose(p['sa_w'][0], (1, 2, 0)).reshape(-1)   # (18,)

  w, b = fold_bn(p['post_w'], p['post_b'], p['post_bn'])
  w = 2.0 * w     # fold the "2 * x * attention" constant into the conv weight
  kp['post_w9'] = jnp.transpose(w, (2, 3, 0, 1)).reshape(9, w.shape[0],
                                                         w.shape[1])
  kp['post_b'] = b.reshape(-1, 1)                            # (Cout, 1)
  return kp


# ----------------------------------------------------------------------------
# Pure-JAX reference (NCHW, lax.conv) for correctness checking
# ----------------------------------------------------------------------------
def reference_forward(xh, xl, p, eps=BN_EPS):
  hi = jax.lax.Precision.HIGHEST

  def conv(x, w, b=None, pad=0):
    w4 = w if w.ndim == 4 else w[:, :, None, None]
    y = jax.lax.conv_general_dilated(
        x, w4, (1, 1), [(pad, pad), (pad, pad)],
        dimension_numbers=('NCHW', 'OIHW', 'NCHW'), precision=hi)
    if b is not None:
      y = y + b[None, :, None, None]
    return y

  def bnorm(x, q):
    return (q['gamma'][None, :, None, None]
            * (x - q['mean'][None, :, None, None])
            / jnp.sqrt(q['var'][None, :, None, None] + eps)
            + q['beta'][None, :, None, None])

  relu = jax.nn.relu
  xh1 = relu(bnorm(conv(xh, p['cbr1_w'], p['cbr1_b']), p['cbr1_bn']))
  pooled = jnp.mean(xh1, axis=(2, 3), keepdims=True)
  y = relu(bnorm(conv(pooled, p['cca1_w'], p['cca1_b']), p['cca1_bn']))
  z = bnorm(conv(y, p['cca2_w'], p['cca2_b']), p['cca2_bn'])[:, :, 0, 0]
  f = jnp.dot(relu(jnp.dot(z, p['fc1_w'].T, precision=hi)),
              p['fc2_w'].T, precision=hi)
  ca = jax.nn.sigmoid(2.0 * f)[:, :, None, None]

  t = relu(bnorm(conv(xl * ca, p['cpa_w'], p['cpa_b']), p['cpa_bn']))
  sa_in = jnp.concatenate([jnp.mean(t, axis=1, keepdims=True),
                           jnp.max(t, axis=1, keepdims=True)], axis=1)
  pa = jax.nn.sigmoid(conv(sa_in, p['sa_w'], None, pad=1))

  def post(x):
    return relu(bnorm(conv(x, p['post_w'], p['post_b'], pad=1), p['post_bn']))

  return post(2.0 * xl * ca), post(2.0 * xh1 * pa)


# ----------------------------------------------------------------------------
if __name__ == "__main__":
  B, CH_HIGH, CH_LOW, COUT, H, W = 2, 16, 32, 32, 16, 16   # in_low == out
  key = jax.random.PRNGKey(0)
  kx, kl, kparam = jax.random.split(key, 3)
  xh = jax.random.normal(kx, (B, CH_HIGH, H, W), jnp.float32)
  xl = jax.random.normal(kl, (B, CH_LOW, H, W), jnp.float32)

  params = init_params(kparam, CH_HIGH, CH_LOW, COUT, r=4, ca_ratio=16)
  kp = prepare_kernel_params(params)

  mode = _roll_mode()   # probe pltpu.roll direction once, outside jit
  fwd = jax.jit(functools.partial(cross_feature_interaction, shift_mode=mode))
  out1, out2 = fwd(xh, xl, kp)
  jax.block_until_ready((out1, out2))
  assert out1.shape == (B, COUT, H, W) and out2.shape == (B, COUT, H, W)

  # cross-check against the pure-JAX reference
  r1, r2 = reference_forward(xh, xl, params)
  np.testing.assert_allclose(np.asarray(out1), np.asarray(r1), rtol=5e-3, atol=5e-3)
  np.testing.assert_allclose(np.asarray(out2), np.asarray(r2), rtol=5e-3, atol=5e-3)

  print("KERNEL_OK")
</pallas_src>

<mosaic_0001>
module attributes {stable_mosaic.version = 11 : i64} {
  func.func @k(%arg0: memref<8x128xf32, #tpu.memory_space<vmem>>, %arg1: memref<8x128xf32, #tpu.memory_space<vmem>>) attributes {dimension_semantics = [], scalar_prefetch = 0 : i64, scratch_operands = 0 : i64, tpu.core_type = #tpu.core_type<tc>} {
    %c0 = arith.constant 0 : index
    %c0_0 = arith.constant 0 : index
    %0 = vector.load %arg0[%c0, %c0_0] : memref<8x128xf32, #tpu.memory_space<vmem>>, vector<8x128xf32>
    %c1_i32 = arith.constant 1 : i32
    %1 = tpu.dynamic_rotate %0 by %c1_i32 dim 1 : vector<8x128xf32>, i32 -> vector<8x128xf32>
    %c0_1 = arith.constant 0 : index
    %c0_2 = arith.constant 0 : index
    %2 = vector.load %arg1[%c0_1, %c0_2] : memref<8x128xf32, #tpu.memory_space<vmem>>, vector<8x128xf32>
    tpu.vector_store %arg1[%c0_1, %c0_2], %1 {strides = array<i32>} : memref<8x128xf32, #tpu.memory_space<vmem>>, vector<8x128xf32>,
    return
  }
}

module attributes {stable_mosaic.version = 11 : i64} {
  func.func @_cfi_kernel(%arg0: i32, %arg1: memref<1x16x256xf32, #tpu.memory_space<vmem>>, %arg2: memref<1x32x256xf32, #tpu.memory_space<vmem>>, %arg3: memref<9x1x256xf32, #tpu.memory_space<vmem>>, %arg4: memref<18xf32, #tpu.memory_space<smem>>, %arg5: memref<32x16xf32, #tpu.memory_space<vmem>>, %arg6: memref<32x1xf32, #tpu.memory_space<vmem>>, %arg7: memref<32x8xf32, #tpu.memory_space<vmem>>, %arg8: memref<1x8xf32, #tpu.memory_space<vmem>>, %arg9: memref<8x32xf32, #tpu.memory_space<vmem>>, %arg10: memref<1x32xf32, #tpu.memory_space<vmem>>, %arg11: memref<32x2xf32, #tpu.memory_space<vmem>>, %arg12: memref<32x2xf32, #tpu.memory_space<vmem>>, %arg13: memref<8x32xf32, #tpu.memory_space<vmem>>, %arg14: memref<8x1xf32, #tpu.memory_space<vmem>>, %arg15: memref<9x32x32xf32, #tpu.memory_space<vmem>>, %arg16: memref<32x1xf32, #tpu.memory_space<vmem>>, %arg17: memref<1x32x256xf32, #tpu.memory_space<vmem>>, %arg18: memref<1x32x256xf32, #tpu.memory_space<vmem>>) attributes {dimension_semantics = [#tpu.dimension_semantics<parallel>], iteration_bounds = array<i64: 2>, scalar_prefetch = 0 : i64, scratch_operands = 0 : i64, tpu.core_type = #tpu.core_type<tc>, window_params = [{transform_indices = @transform_0, window_bounds = array<i64: 1, 16, 256>}, {transform_indices = @transform_1, window_bounds = array<i64: 1, 32, 256>}, {pipeline_mode = #tpu.pipeline_mode<synchronous>, transform_indices = @transform_2, window_bounds = array<i64: 9, 1, 256>}, {transform_indices = @transform_3, window_bounds = array<i64: 18>}, {pipeline_mode = #tpu.pipeline_mode<synchronous>, transform_indices = @transform_4, window_bounds = array<i64: 32, 16>}, {pipeline_mode = #tpu.pipeline_mode<synchronous>, transform_indices = @transform_5, window_bounds = array<i64: 32, 1>}, {pipeline_mode = #tpu.pipeline_mode<synchronous>, transform_indices = @transform_6, window_bounds = array<i64: 32, 8>}, {pipeline_mode = #tpu.pipeline_mode<synchronous>, transform_indices = @transform_7, window_bounds = array<i64: 1, 8>}, {pipeline_mode = #tpu.pipeline_mode<synchronous>, transform_indices = @transform_8, window_bounds = array<i64: 8, 32>}, {pipeline_mode = #tpu.pipeline_mode<synchronous>, transform_indices = @transform_9, window_bounds = array<i64: 1, 32>}, {pipeline_mode = #tpu.pipeline_mode<synchronous>, transform_indices = @transform_10, window_bounds = array<i64: 32, 2>}, {pipeline_mode = #tpu.pipeline_mode<synchronous>, transform_indices = @transform_11, window_bounds = array<i64: 32, 2>}, {pipeline_mode = #tpu.pipeline_mode<synchronous>, transform_indices = @transform_12, window_bounds = array<i64: 8, 32>}, {pipeline_mode = #tpu.pipeline_mode<synchronous>, transform_indices = @transform_13, window_bounds = array<i64: 8, 1>}, {pipeline_mode = #tpu.pipeline_mode<synchronous>, transform_indices = @transform_14, window_bounds = array<i64: 9, 32, 32>}, {pipeline_mode = #tpu.pipeline_mode<synchronous>, transform_indices = @transform_15, window_bounds = array<i64: 32, 1>}, {transform_indices = @transform_16, window_bounds = array<i64: 1, 32, 256>}, {transform_indices = @transform_17, window_bounds = array<i64: 1, 32, 256>}]} {
    %c0 = arith.constant 0 : index
    %c0_0 = arith.constant 0 : index
    %c0_1 = arith.constant 0 : index
    %0 = vector.load %arg1[%c0, %c0_0, %c0_1] : memref<1x16x256xf32, #tpu.memory_space<vmem>>, vector<1x16x256xf32>
    %1 = vector.shape_cast %0 : vector<1x16x256xf32> to vector<16x256xf32>
    %c0_2 = arith.constant 0 : index
    %c0_3 = arith.constant 0 : index
    %c0_4 = arith.constant 0 : index
    %2 = vector.load %arg2[%c0_2, %c0_3, %c0_4] : memref<1x32x256xf32, #tpu.memory_space<vmem>>, vector<1x32x256xf32>
    %3 = vector.shape_cast %2 : vector<1x32x256xf32> to vector<32x256xf32>
    %c0_5 = arith.constant 0 : index
    %c0_6 = arith.constant 0 : index
    %4 = vector.load %arg5[%c0_5, %c0_6] : memref<32x16xf32, #tpu.memory_space<vmem>>, vector<32x16xf32>
    %cst = arith.constant dense<0.000000e+00> : vector<32x256xf32>
    %5 = tpu.matmul %4, %1, %cst {dimension_numbers = #tpu.dot_dimension_numbers<[1], [0], [0], [1], [0, 0, 1, 1], [], []>} : vector<32x16xf32>, vector<16x256xf32>, vector<32x256xf32> -> vector<32x256xf32>
    %c0_7 = arith.constant 0 : index
    %c0_8 = arith.constant 0 : index
    %6 = vector.load %arg6[%c0_7, %c0_8] : memref<32x1xf32, #tpu.memory_space<vmem>>, vector<32x1xf32>
    %7 = vector.broadcast %6 : vector<32x1xf32> to vector<32x256xf32>
    %8 = arith.addf %5, %7 : vector<32x256xf32>
    %cst_9 = arith.constant 0.000000e+00 : f32
    %9 = vector.broadcast %cst_9 : f32 to vector<32x256xf32>
    %10 = arith.maximumf %8, %9 : vector<32x256xf32>
    %cst_10 = arith.constant dense<0.000000e+00> : vector<32xf32>
    %11 = vector.multi_reduction <add>, %10, %cst_10 [1] : vector<32x256xf32> to vector<32xf32>
    %12 = vector.shape_cast %11 : vector<32xf32> to vector<32x1xf32>
    %cst_11 = arith.constant 2.560000e+02 : f32
    %13 = vector.broadcast %cst_11 : f32 to vector<32x1xf32>
    %14 = arith.divf %12, %13 : vector<32x1xf32>
    %c0_12 = arith.constant 0 : index
    %c0_13 = arith.constant 0 : index
    %15 = vector.load %arg7[%c0_12, %c0_13] : memref<32x8xf32, #tpu.memory_space<vmem>>, vector<32x8xf32>
    %16 = vector.broadcast %14 : vector<32x1xf32> to vector<32x8xf32>
    %17 = arith.mulf %15, %16 : vector<32x8xf32>
    %cst_14 = arith.constant dense<0.000000e+00> : vector<8xf32>
    %18 = vector.multi_reduction <add>, %17, %cst_14 [0] : vector<32x8xf32> to vector<8xf32>
    %19 = vector.shape_cast %18 : vector<8xf32> to vector<1x8xf32>
    %c0_15 = arith.constant 0 : index
    %c0_16 = arith.constant 0 : index
    %20 = vector.load %arg8[%c0_15, %c0_16] : memref<1x8xf32, #tpu.memory_space<vmem>>, vector<1x8xf32>
    %21 = arith.addf %19, %20 : vector<1x8xf32>
    %cst_17 = arith.constant 0.000000e+00 : f32
    %22 = vector.broadcast %cst_17 : f32 to vector<1x8xf32>
    %23 = arith.maximumf %21, %22 : vector<1x8xf32>
    %c0_18 = arith.constant 0 : index
    %c0_19 = arith.constant 0 : index
    %24 = vector.load %arg9[%c0_18, %c0_19] : memref<8x32xf32, #tpu.memory_space<vmem>>, vector<8x32xf32>
    %cst_20 = arith.constant dense<0.000000e+00> : vector<1x32xf32>
    %25 = tpu.matmul %23, %24, %cst_20 {dimension_numbers = #tpu.dot_dimension_numbers<[1], [0], [0], [1], [0, 0, 1, 1], [], []>} : vector<1x8xf32>, vector<8x32xf32>, vector<1x32xf32> -> vector<1x32xf32>
    %c0_21 = arith.constant 0 : index
    %c0_22 = arith.constant 0 : index
    %26 = vector.load %arg10[%c0_21, %c0_22] : memref<1x32xf32, #tpu.memory_space<vmem>>, vector<1x32xf32>
    %27 = arith.addf %25, %26 : vector<1x32xf32>
    %c0_23 = arith.constant 0 : index
    %c0_24 = arith.constant 0 : index
    %28 = vector.load %arg11[%c0_23, %c0_24] : memref<32x2xf32, #tpu.memory_space<vmem>>, vector<32x2xf32>
    %cst_25 = arith.constant dense<0.000000e+00> : vector<1x2xf32>
    %29 = tpu.matmul %27, %28, %cst_25 {dimension_numbers = #tpu.dot_dimension_numbers<[1], [0], [0], [1], [0, 0, 1, 1], [], []>} : vector<1x32xf32>, vector<32x2xf32>, vector<1x2xf32> -> vector<1x2xf32>
    %cst_26 = arith.constant 0.000000e+00 : f32
    %30 = vector.broadcast %cst_26 : f32 to vector<1x2xf32>
    %31 = arith.maximumf %29, %30 : vector<1x2xf32>
    %c0_27 = arith.constant 0 : index
    %c0_28 = arith.constant 0 : index
    %32 = vector.load %arg12[%c0_27, %c0_28] : memref<32x2xf32, #tpu.memory_space<vmem>>, vector<32x2xf32>
    %33 = vector.broadcast %31 : vector<1x2xf32> to vector<32x2xf32>
    %34 = arith.mulf %32, %33 : vector<32x2xf32>
    %cst_29 = arith.constant dense<0.000000e+00> : vector<32xf32>
    %35 = vector.multi_reduction <add>, %34, %cst_29 [1] : vector<32x2xf32> to vector<32xf32>
    %36 = vector.shape_cast %35 : vector<32xf32> to vector<32x1xf32>
    %cst_30 = arith.constant 2.000000e+00 : f32
    %37 = vector.broadcast %cst_30 : f32 to vector<32x1xf32>
    %38 = arith.mulf %37, %36 : vector<32x1xf32>
    %39 = arith.negf %38 : vector<32x1xf32>
    %40 = math.exp %39 : vector<32x1xf32>
    %cst_31 = arith.constant 1.000000e+00 : f32
    %41 = vector.broadcast %cst_31 : f32 to vector<32x1xf32>
    %42 = arith.addf %41, %40 : vector<32x1xf32>
    %43 = arith.divf %41, %42 : vector<32x1xf32>
    %44 = vector.broadcast %43 : vector<32x1xf32> to vector<32x256xf32>
    %45 = arith.mulf %3, %44 : vector<32x256xf32>
    %c0_32 = arith.constant 0 : index
    %c0_33 = arith.constant 0 : index
    %46 = vector.load %arg13[%c0_32, %c0_33] : memref<8x32xf32, #tpu.memory_space<vmem>>, vector<8x32xf32>
    %cst_34 = arith.constant dense<0.000000e+00> : vector<8x256xf32>
    %47 = tpu.matmul %46, %45, %cst_34 {dimension_numbers = #tpu.dot_dimension_numbers<[1], [0], [0], [1], [0, 0, 1, 1], [], []>} : vector<8x32xf32>, vector<32x256xf32>, vector<8x256xf32> -> vector<8x256xf32>
    %c0_35 = arith.constant 0 : index
    %c0_36 = arith.constant 0 : index
    %48 = vector.load %arg14[%c0_35, %c0_36] : memref<8x1xf32, #tpu.memory_space<vmem>>, vector<8x1xf32>
    %49 = vector.broadcast %48 : vector<8x1xf32> to vector<8x256xf32>
    %50 = arith.addf %47, %49 : vector<8x256xf32>
    %cst_37 = arith.constant 0.000000e+00 : f32
    %51 = vector.broadcast %cst_37 : f32 to vector<8x256xf32>
    %52 = arith.maximumf %50, %51 : vector<8x256xf32>
    %cst_38 = arith.constant dense<0.000000e+00> : vector<256xf32>
    %53 = vector.multi_reduction <add>, %52, %cst_38 [0] : vector<8x256xf32> to vector<256xf32>
    %54 = vector.shape_cast %53 : vector<256xf32> to vector<1x256xf32>
    %cst_39 = arith.constant 8.000000e+00 : f32
    %55 = vector.broadcast %cst_39 : f32 to vector<1x256xf32>
    %56 = arith.divf %54, %55 : vector<1x256xf32>
    %cst_40 = arith.constant dense<0xFF800000> : vector<256xf32>
    %57 = vector.multi_reduction <maximumf>, %52, %cst_40 [0] : vector<8x256xf32> to vector<256xf32>
    %58 = vector.shape_cast %57 : vector<256xf32> to vector<1x256xf32>
    %cst_41 = arith.constant 0.000000e+00 : f32
    %59 = vector.broadcast %cst_41 : f32 to vector<1x256xf32>
    %c0_42 = arith.constant 0 : index
    %60 = memref.load %arg4[%c0_42] : memref<18xf32, #tpu.memory_space<smem>>
    %c1 = arith.constant 1 : index
    %61 = memref.load %arg4[%c1] : memref<18xf32, #tpu.memory_space<smem>>
    %62 = vector.extract_strided_slice %56 {offsets = [0, 239], sizes = [1, 17], strides = [1, 1]} : vector<1x256xf32> to vector<1x17xf32>
    %63 = vector.extract_strided_slice %56 {offsets = [0, 0], sizes = [1, 239], strides = [1, 1]} : vector<1x256xf32> to vector<1x239xf32>
    %64 = tpu.concatenate %62, %63 in 1 : vector<1x17xf32>, vector<1x239xf32> -> vector<1x256xf32>
    %65 = vector.broadcast %60 : f32 to vector<1x256xf32>
    %66 = arith.mulf %65, %64 : vector<1x256xf32>
    %67 = vector.extract_strided_slice %58 {offsets = [0, 239], sizes = [1, 17], strides = [1, 1]} : vector<1x256xf32> to vector<1x17xf32>
    %68 = vector.extract_strided_slice %58 {offsets = [0, 0], sizes = [1, 239], strides = [1, 1]} : vector<1x256xf32> to vector<1x239xf32>
    %69 = tpu.concatenate %67, %68 in 1 : vector<1x17xf32>, vector<1x239xf32> -> vector<1x256xf32>
    %70 = vector.broadcast %61 : f32 to vector<1x256xf32>
    %71 = arith.mulf %70, %69 : vector<1x256xf32>
    %72 = arith.addf %66, %71 : vector<1x256xf32>
    %c0_43 = arith.constant 0 : index
    %c0_44 = arith.constant 0 : index
    %c0_45 = arith.constant 0 : index
    %73 = vector.load %arg3[%c0_43, %c0_44, %c0_45] : memref<9x1x256xf32, #tpu.memory_space<vmem>>, vector<1x1x256xf32>
    %74 = vector.shape_cast %73 : vector<1x1x256xf32> to vector<1x256xf32>
    %75 = arith.mulf %72, %74 : vector<1x256xf32>
    %76 = arith.addf %59, %75 : vector<1x256xf32>
    %c2 = arith.constant 2 : index
    %77 = memref.load %arg4[%c2] : memref<18xf32, #tpu.memory_space<smem>>
    %c3 = arith.constant 3 : index
    %78 = memref.load %arg4[%c3] : memref<18xf32, #tpu.memory_space<smem>>
    %79 = vector.extract_strided_slice %56 {offsets = [0, 240], sizes = [1, 16], strides = [1, 1]} : vector<1x256xf32> to vector<1x16xf32>
    %80 = vector.extract_strided_slice %56 {offsets = [0, 0], sizes = [1, 240], strides = [1, 1]} : vector<1x256xf32> to vector<1x240xf32>
    %81 = tpu.concatenate %79, %80 in 1 : vector<1x16xf32>, vector<1x240xf32> -> vector<1x256xf32>
    %82 = vector.broadcast %77 : f32 to vector<1x256xf32>
    %83 = arith.mulf %82, %81 : vector<1x256xf32>
    %84 = vector.extract_strided_slice %58 {offsets = [0, 240], sizes = [1, 16], strides = [1, 1]} : vector<1x256xf32> to vector<1x16xf32>
    %85 = vector.extract_strided_slice %58 {offsets = [0, 0], sizes = [1, 240], strides = [1, 1]} : vector<1x256xf32> to vector<1x240xf32>
    %86 = tpu.concatenate %84, %85 in 1 : vector<1x16xf32>, vector<1x240xf32> -> vector<1x256xf32>
    %87 = vector.broadcast %78 : f32 to vector<1x256xf32>
    %88 = arith.mulf %87, %86 : vector<1x256xf32>
    %89 = arith.addf %83, %88 : vector<1x256xf32>
    %c1_46 = arith.constant 1 : index
    %c0_47 = arith.constant 0 : index
    %c0_48 = arith.constant 0 : index
    %90 = vector.load %arg3[%c1_46, %c0_47, %c0_48] : memref<9x1x256xf32, #tpu.memory_space<vmem>>, vector<1x1x256xf32>
    %91 = vector.shape_cast %90 : vector<1x1x256xf32> to vector<1x256xf32>
    %92 = arith.mulf %89, %91 : vector<1x256xf32>
    %93 = arith.addf %76, %92 : vector<1x256xf32>
    %c4 = arith.constant 4 : index
    %94 = memref.load %arg4[%c4] : memref<18xf32, #tpu.memory_space<smem>>
    %c5 = arith.constant 5 : index
    %95 = memref.load %arg4[%c5] : memref<18xf32, #tpu.memory_space<smem>>
    %96 = vector.extract_strided_slice %56 {offsets = [0, 241], sizes = [1, 15], strides = [1, 1]} : vector<1x256xf32> to vector<1x15xf32>
    %97 = vector.extract_strided_slice %56 {offsets = [0, 0], sizes = [1, 241], strides = [1, 1]} : vector<1x256xf32> to vector<1x241xf32>
    %98 = tpu.concatenate %96, %97 in 1 : vector<1x15xf32>, vector<1x241xf32> -> vector<1x256xf32>
    %99 = vector.broadcast %94 : f32 to vector<1x256xf32>
    %100 = arith.mulf %99, %98 : vector<1x256xf32>
    %101 = vector.extract_strided_slice %58 {offsets = [0, 241], sizes = [1, 15], strides = [1, 1]} : vector<1x256xf32> to vector<1x15xf32>
    %102 = vector.extract_strided_slice %58 {offsets = [0, 0], sizes = [1, 241], strides = [1, 1]} : vector<1x256xf32> to vector<1x241xf32>
    %103 = tpu.concatenate %101, %102 in 1 : vector<1x15xf32>, vector<1x241xf32> -> vector<1x256xf32>
    %104 = vector.broadcast %95 : f32 to vector<1x256xf32>
    %105 = arith.mulf %104, %103 : vector<1x256xf32>
    %106 = arith.addf %100, %105 : vector<1x256xf32>
    %c2_49 = arith.constant 2 : index
    %c0_50 = arith.constant 0 : index
    %c0_51 = arith.constant 0 : index
    %107 = vector.load %arg3[%c2_49, %c0_50, %c0_51] : memref<9x1x256xf32, #tpu.memory_space<vmem>>, vector<1x1x256xf32>
    %108 = vector.shape_cast %107 : vector<1x1x256xf32> to vector<1x256xf32>
    %109 = arith.mulf %106, %108 : vector<1x256xf32>
    %110 = arith.addf %93, %109 : vector<1x256xf32>
    %c6 = arith.constant 6 : index
    %111 = memref.load %arg4[%c6] : memref<18xf32, #tpu.memory_space<smem>>
    %c7 = arith.constant 7 : index
    %112 = memref.load %arg4[%c7] : memref<18xf32, #tpu.memory_space<smem>>
    %113 = vector.extract_strided_slice %56 {offsets = [0, 255], sizes = [1, 1], strides = [1, 1]} : vector<1x256xf32> to vector<1x1xf32>
    %114 = vector.extract_strided_slice %56 {offsets = [0, 0], sizes = [1, 255], strides = [1, 1]} : vector<1x256xf32> to vector<1x255xf32>
    %115 = tpu.concatenate %113, %114 in 1 : vector<1x1xf32>, vector<1x255xf32> -> vector<1x256xf32>
    %116 = vector.broadcast %111 : f32 to vector<1x256xf32>
    %117 = arith.mulf %116, %115 : vector<1x256xf32>
    %118 = vector.extract_strided_slice %58 {offsets = [0, 255], sizes = [1, 1], strides = [1, 1]} : vector<1x256xf32> to vector<1x1xf32>
    %119 = vector.extract_strided_slice %58 {offsets = [0, 0], sizes = [1, 255], strides = [1, 1]} : vector<1x256xf32> to vector<1x255xf32>
    %120 = tpu.concatenate %118, %119 in 1 : vector<1x1xf32>, vector<1x255xf32> -> vector<1x256xf32>
    %121 = vector.broadcast %112 : f32 to vector<1x256xf32>
    %122 = arith.mulf %121, %120 : vector<1x256xf32>
    %123 = arith.addf %117, %122 : vector<1x256xf32>
    %c3_52 = arith.constant 3 : index
    %c0_53 = arith.constant 0 : index
    %c0_54 = arith.constant 0 : index
    %124 = vector.load %arg3[%c3_52, %c0_53, %c0_54] : memref<9x1x256xf32, #tpu.memory_space<vmem>>, vector<1x1x256xf32>
    %125 = vector.shape_cast %124 : vector<1x1x256xf32> to vector<1x256xf32>
    %126 = arith.mulf %123, %125 : vector<1x256xf32>
    %127 = arith.addf %110, %126 : vector<1x256xf32>
    %c8 = arith.constant 8 : index
    %128 = memref.load %arg4[%c8] : memref<18xf32, #tpu.memory_space<smem>>
    %c9 = arith.constant 9 : index
    %129 = memref.load %arg4[%c9] : memref<18xf32, #tpu.memory_space<smem>>
    %130 = vector.broadcast %128 : f32 to vector<1x256xf32>
    %131 = arith.mulf %130, %56 : vector<1x256xf32>
    %132 = arith.addf %127, %131 : vector<1x256xf32>
    %133 = vector.broadcast %129 : f32 to vector<1x256xf32>
    %134 = arith.mulf %133, %58 : vector<1x256xf32>
    %135 = arith.addf %132, %134 : vector<1x256xf32>
    %c10 = arith.constant 10 : index
    %136 = memref.load %arg4[%c10] : memref<18xf32, #tpu.memory_space<smem>>
    %c11 = arith.constant 11 : index
    %137 = memref.load %arg4[%c11] : memref<18xf32, #tpu.memory_space<smem>>
    %138 = vector.extract_strided_slice %56 {offsets = [0, 1], sizes = [1, 255], strides = [1, 1]} : vector<1x256xf32> to vector<1x255xf32>
    %139 = vector.extract_strided_slice %56 {offsets = [0, 0], sizes = [1, 1], strides = [1, 1]} : vector<1x256xf32> to vector<1x1xf32>
    %140 = tpu.concatenate %138, %139 in 1 : vector<1x255xf32>, vector<1x1xf32> -> vector<1x256xf32>
    %141 = vector.broadcast %136 : f32 to vector<1x256xf32>
    %142 = arith.mulf %141, %140 : vector<1x256xf32>
    %143 = vector.extract_strided_slice %58 {offsets = [0, 1], sizes = [1, 255], strides = [1, 1]} : vector<1x256xf32> to vector<1x255xf32>
    %144 = vector.extract_strided_slice %58 {offsets = [0, 0], sizes = [1, 1], strides = [1, 1]} : vector<1x256xf32> to vector<1x1xf32>
    %145 = tpu.concatenate %143, %144 in 1 : vector<1x255xf32>, vector<1x1xf32> -> vector<1x256xf32>
    %146 = vector.broadcast %137 : f32 to vector<1x256xf32>
    %147 = arith.mulf %146, %145 : vector<1x256xf32>
    %148 = arith.addf %142, %147 : vector<1x256xf32>
    %c5_55 = arith.constant 5 : index
    %c0_56 = arith.constant 0 : index
    %c0_57 = arith.constant 0 : index
    %149 = vector.load %arg3[%c5_55, %c0_56, %c0_57] : memref<9x1x256xf32, #tpu.memory_space<vmem>>, vector<1x1x256xf32>
    %150 = vector.shape_cast %149 : vector<1x1x256xf32> to vector<1x256xf32>
    %151 = arith.mulf %148, %150 : vector<1x256xf32>
    %152 = arith.addf %135, %151 : vector<1x256xf32>
    %c12 = arith.constant 12 : index
    %153 = memref.load %arg4[%c12] : memref<18xf32, #tpu.memory_space<smem>>
    %c13 = arith.constant 13 : index
    %154 = memref.load %arg4[%c13] : memref<18xf32, #tpu.memory_space<smem>>
    %155 = vector.extract_strided_slice %56 {offsets = [0, 15], sizes = [1, 241], strides = [1, 1]} : vector<1x256xf32> to vector<1x241xf32>
    %156 = vector.extract_strided_slice %56 {offsets = [0, 0], sizes = [1, 15], strides = [1, 1]} : vector<1x256xf32> to vector<1x15xf32>
    %157 = tpu.concatenate %155, %156 in 1 : vector<1x241xf32>, vector<1x15xf32> -> vector<1x256xf32>
    %158 = vector.broadcast %153 : f32 to vector<1x256xf32>
    %159 = arith.mulf %158, %157 : vector<1x256xf32>
    %160 = vector.extract_strided_slice %58 {offsets = [0, 15], sizes = [1, 241], strides = [1, 1]} : vector<1x256xf32> to vector<1x241xf32>
    %161 = vector.extract_strided_slice %58 {offsets = [0, 0], sizes = [1, 15], strides = [1, 1]} : vector<1x256xf32> to vector<1x15xf32>
    %162 = tpu.concatenate %160, %161 in 1 : vector<1x241xf32>, vector<1x15xf32> -> vector<1x256xf32>
    %163 = vector.broadcast %154 : f32 to vector<1x256xf32>
    %164 = arith.mulf %163, %162 : vector<1x256xf32>
    %165 = arith.addf %159, %164 : vector<1x256xf32>
    %c6_58 = arith.constant 6 : index
    %c0_59 = arith.constant 0 : index
    %c0_60 = arith.constant 0 : index
    %166 = vector.load %arg3[%c6_58, %c0_59, %c0_60] : memref<9x1x256xf32, #tpu.memory_space<vmem>>, vector<1x1x256xf32>
    %167 = vector.shape_cast %166 : vector<1x1x256xf32> to vector<1x256xf32>
    %168 = arith.mulf %165, %167 : vector<1x256xf32>
    %169 = arith.addf %152, %168 : vector<1x256xf32>
    %c14 = arith.constant 14 : index
    %170 = memref.load %arg4[%c14] : memref<18xf32, #tpu.memory_space<smem>>
    %c15 = arith.constant 15 : index
    %171 = memref.load %arg4[%c15] : memref<18xf32, #tpu.memory_space<smem>>
    %172 = vector.extract_strided_slice %56 {offsets = [0, 16], sizes = [1, 240], strides = [1, 1]} : vector<1x256xf32> to vector<1x240xf32>
    %173 = vector.extract_strided_slice %56 {offsets = [0, 0], sizes = [1, 16], strides = [1, 1]} : vector<1x256xf32> to vector<1x16xf32>
    %174 = tpu.concatenate %172, %173 in 1 : vector<1x240xf32>, vector<1x16xf32> -> vector<1x256xf32>
    %175 = vector.broadcast %170 : f32 to vector<1x256xf32>
    %176 = arith.mulf %175, %174 : vector<1x256xf32>
    %177 = vector.extract_strided_slice %58 {offsets = [0, 16], sizes = [1, 240], strides = [1, 1]} : vector<1x256xf32> to vector<1x240xf32>
    %178 = vector.extract_strided_slice %58 {offsets = [0, 0], sizes = [1, 16], strides = [1, 1]} : vector<1x256xf32> to vector<1x16xf32>
    %179 = tpu.concatenate %177, %178 in 1 : vector<1x240xf32>, vector<1x16xf32> -> vector<1x256xf32>
    %180 = vector.broadcast %171 : f32 to vector<1x256xf32>
    %181 = arith.mulf %180, %179 : vector<1x256xf32>
    %182 = arith.addf %176, %181 : vector<1x256xf32>
    %c7_61 = arith.constant 7 : index
    %c0_62 = arith.constant 0 : index
    %c0_63 = arith.constant 0 : index
    %183 = vector.load %arg3[%c7_61, %c0_62, %c0_63] : memref<9x1x256xf32, #tpu.memory_space<vmem>>, vector<1x1x256xf32>
    %184 = vector.shape_cast %183 : vector<1x1x256xf32> to vector<1x256xf32>
    %185 = arith.mulf %182, %184 : vector<1x256xf32>
    %186 = arith.addf %169, %185 : vector<1x256xf32>
    %c16 = arith.constant 16 : index
    %187 = memref.load %arg4[%c16] : memref<18xf32, #tpu.memory_space<smem>>
    %c17 = arith.constant 17 : index
    %188 = memref.load %arg4[%c17] : memref<18xf32, #tpu.memory_space<smem>>
    %189 = vector.extract_strided_slice %56 {offsets = [0, 17], sizes = [1, 239], strides = [1, 1]} : vector<1x256xf32> to vector<1x239xf32>
    %190 = vector.extract_strided_slice %56 {offsets = [0, 0], sizes = [1, 17], strides = [1, 1]} : vector<1x256xf32> to vector<1x17xf32>
    %191 = tpu.concatenate %189, %190 in 1 : vector<1x239xf32>, vector<1x17xf32> -> vector<1x256xf32>
    %192 = vector.broadcast %187 : f32 to vector<1x256xf32>
    %193 = arith.mulf %192, %191 : vector<1x256xf32>
    %194 = vector.extract_strided_slice %58 {offsets = [0, 17], sizes = [1, 239], strides = [1, 1]} : vector<1x256xf32> to vector<1x239xf32>
    %195 = vector.extract_strided_slice %58 {offsets = [0, 0], sizes = [1, 17], strides = [1, 1]} : vector<1x256xf32> to vector<1x17xf32>
    %196 = tpu.concatenate %194, %195 in 1 : vector<1x239xf32>, vector<1x17xf32> -> vector<1x256xf32>
    %197 = vector.broadcast %188 : f32 to vector<1x256xf32>
    %198 = arith.mulf %197, %196 : vector<1x256xf32>
    %199 = arith.addf %193, %198 : vector<1x256xf32>
    %c8_64 = arith.constant 8 : index
    %c0_65 = arith.constant 0 : index
    %c0_66 = arith.constant 0 : index
    %200 = vector.load %arg3[%c8_64, %c0_65, %c0_66] : memref<9x1x256xf32, #tpu.memory_space<vmem>>, vector<1x1x256xf32>
    %201 = vector.shape_cast %200 : vector<1x1x256xf32> to vector<1x256xf32>
    %202 = arith.mulf %199, %201 : vector<1x256xf32>
    %203 = arith.addf %186, %202 : vector<1x256xf32>
    %204 = arith.negf %203 : vector<1x256xf32>
    %205 = math.exp %204 : vector<1x256xf32>
    %cst_67 = arith.constant 1.000000e+00 : f32
    %206 = vector.broadcast %cst_67 : f32 to vector<1x256xf32>
    %207 = arith.addf %206, %205 : vector<1x256xf32>
    %208 = arith.divf %206, %207 : vector<1x256xf32>
    %cst_68 = arith.constant 0.000000e+00 : f32
    %209 = vector.broadcast %cst_68 : f32 to vector<32x256xf32>
    %210 = vector.extract_strided_slice %45 {offsets = [0, 239], sizes = [32, 17], strides = [1, 1]} : vector<32x256xf32> to vector<32x17xf32>
    %211 = vector.extract_strided_slice %45 {offsets = [0, 0], sizes = [32, 239], strides = [1, 1]} : vector<32x256xf32> to vector<32x239xf32>
    %212 = tpu.concatenate %210, %211 in 1 : vector<32x17xf32>, vector<32x239xf32> -> vector<32x256xf32>
    %c0_69 = arith.constant 0 : index
    %c0_70 = arith.constant 0 : index
    %c0_71 = arith.constant 0 : index
    %213 = vector.load %arg3[%c0_69, %c0_70, %c0_71] : memref<9x1x256xf32, #tpu.memory_space<vmem>>, vector<1x1x256xf32>
    %214 = vector.shape_cast %213 : vector<1x1x256xf32> to vector<1x256xf32>
    %215 = vector.broadcast %214 : vector<1x256xf32> to vector<32x256xf32>
    %216 = arith.mulf %212, %215 : vector<32x256xf32>
    %c0_72 = arith.constant 0 : index
    %c0_73 = arith.constant 0 : index
    %c0_74 = arith.constant 0 : index
    %217 = vector.load %arg15[%c0_72, %c0_73, %c0_74] : memref<9x32x32xf32, #tpu.memory_space<vmem>>, vector<1x32x32xf32>
    %218 = vector.shape_cast %217 : vector<1x32x32xf32> to vector<32x32xf32>
    %cst_75 = arith.constant dense<0.000000e+00> : vector<32x256xf32>
    %219 = tpu.matmul %218, %216, %cst_75 {dimension_numbers = #tpu.dot_dimension_numbers<[1], [0], [0], [1], [0, 0, 1, 1], [], []>} : vector<32x32xf32>, vector<32x256xf32>, vector<32x256xf32> -> vector<32x256xf32>
    %220 = arith.addf %209, %219 : vector<32x256xf32>
    %221 = vector.extract_strided_slice %45 {offsets = [0, 240], sizes = [32, 16], strides = [1, 1]} : vector<32x256xf32> to vector<32x16xf32>
    %222 = vector.extract_strided_slice %45 {offsets = [0, 0], sizes = [32, 240], strides = [1, 1]} : vector<32x256xf32> to vector<32x240xf32>
    %223 = tpu.concatenate %221, %222 in 1 : vector<32x16xf32>, vector<32x240xf32> -> vector<32x256xf32>
    %c1_76 = arith.constant 1 : index
    %c0_77 = arith.constant 0 : index
    %c0_78 = arith.constant 0 : index
    %224 = vector.load %arg3[%c1_76, %c0_77, %c0_78] : memref<9x1x256xf32, #tpu.memory_space<vmem>>, vector<1x1x256xf32>
    %225 = vector.shape_cast %224 : vector<1x1x256xf32> to vector<1x256xf32>
    %226 = vector.broadcast %225 : vector<1x256xf32> to vector<32x256xf32>
    %227 = arith.mulf %223, %226 : vector<32x256xf32>
    %c1_79 = arith.constant 1 : index
    %c0_80 = arith.constant 0 : index
    %c0_81 = arith.constant 0 : index
    %228 = vector.load %arg15[%c1_79, %c0_80, %c0_81] : memref<9x32x32xf32, #tpu.memory_space<vmem>>, vector<1x32x32xf32>
    %229 = vector.shape_cast %228 : vector<1x32x32xf32> to vector<32x32xf32>
    %cst_82 = arith.constant dense<0.000000e+00> : vector<32x256xf32>
    %230 = tpu.matmul %229, %227, %cst_82 {dimension_numbers = #tpu.dot_dimension_numbers<[1], [0], [0], [1], [0, 0, 1, 1], [], []>} : vector<32x32xf32>, vector<32x256xf32>, vector<32x256xf32> -> vector<32x256xf32>
    %231 = arith.addf %220, %230 : vector<32x256xf32>
    %232 = vector.extract_strided_slice %45 {offsets = [0, 241], sizes = [32, 15], strides = [1, 1]} : vector<32x256xf32> to vector<32x15xf32>
    %233 = vector.extract_strided_slice %45 {offsets = [0, 0], sizes = [32, 241], strides = [1, 1]} : vector<32x256xf32> to vector<32x241xf32>
    %234 = tpu.concatenate %232, %233 in 1 : vector<32x15xf32>, vector<32x241xf32> -> vector<32x256xf32>
    %c2_83 = arith.constant 2 : index
    %c0_84 = arith.constant 0 : index
    %c0_85 = arith.constant 0 : index
    %235 = vector.load %arg3[%c2_83, %c0_84, %c0_85] : memref<9x1x256xf32, #tpu.memory_space<vmem>>, vector<1x1x256xf32>
    %236 = vector.shape_cast %235 : vector<1x1x256xf32> to vector<1x256xf32>
    %237 = vector.broadcast %236 : vector<1x256xf32> to vector<32x256xf32>
    %238 = arith.mulf %234, %237 : vector<32x256xf32>
    %c2_86 = arith.constant 2 : index
    %c0_87 = arith.constant 0 : index
    %c0_88 = arith.constant 0 : index
    %239 = vector.load %arg15[%c2_86, %c0_87, %c0_88] : memref<9x32x32xf32, #tpu.memory_space<vmem>>, vector<1x32x32xf32>
    %240 = vector.shape_cast %239 : vector<1x32x32xf32> to vector<32x32xf32>
    %cst_89 = arith.constant dense<0.000000e+00> : vector<32x256xf32>
    %241 = tpu.matmul %240, %238, %cst_89 {dimension_numbers = #tpu.dot_dimension_numbers<[1], [0], [0], [1], [0, 0, 1, 1], [], []>} : vector<32x32xf32>, vector<32x256xf32>, vector<32x256xf32> -> vector<32x256xf32>
    %242 = arith.addf %231, %241 : vector<32x256xf32>
    %243 = vector.extract_strided_slice %45 {offsets = [0, 255], sizes = [32, 1], strides = [1, 1]} : vector<32x256xf32> to vector<32x1xf32>
    %244 = vector.extract_strided_slice %45 {offsets = [0, 0], sizes = [32, 255], strides = [1, 1]} : vector<32x256xf32> to vector<32x255xf32>
    %245 = tpu.concatenate %243, %244 in 1 : vector<32x1xf32>, vector<32x255xf32> -> vector<32x256xf32>
    %c3_90 = arith.constant 3 : index
    %c0_91 = arith.constant 0 : index
    %c0_92 = arith.constant 0 : index
    %246 = vector.load %arg3[%c3_90, %c0_91, %c0_92] : memref<9x1x256xf32, #tpu.memory_space<vmem>>, vector<1x1x256xf32>
    %247 = vector.shape_cast %246 : vector<1x1x256xf32> to vector<1x256xf32>
    %248 = vector.broadcast %247 : vector<1x256xf32> to vector<32x256xf32>
    %249 = arith.mulf %245, %248 : vector<32x256xf32>
    %c3_93 = arith.constant 3 : index
    %c0_94 = arith.constant 0 : index
    %c0_95 = arith.constant 0 : index
    %250 = vector.load %arg15[%c3_93, %c0_94, %c0_95] : memref<9x32x32xf32, #tpu.memory_space<vmem>>, vector<1x32x32xf32>
    %251 = vector.shape_cast %250 : vector<1x32x32xf32> to vector<32x32xf32>
    %cst_96 = arith.constant dense<0.000000e+00> : vector<32x256xf32>
    %252 = tpu.matmul %251, %249, %cst_96 {dimension_numbers = #tpu.dot_dimension_numbers<[1], [0], [0], [1], [0, 0, 1, 1], [], []>} : vector<32x32xf32>, vector<32x256xf32>, vector<32x256xf32> -> vector<32x256xf32>
    %253 = arith.addf %242, %252 : vector<32x256xf32>
    %c4_97 = arith.constant 4 : index
    %c0_98 = arith.constant 0 : index
    %c0_99 = arith.constant 0 : index
    %254 = vector.load %arg15[%c4_97, %c0_98, %c0_99] : memref<9x32x32xf32, #tpu.memory_space<vmem>>, vector<1x32x32xf32>
    %255 = vector.shape_cast %254 : vector<1x32x32xf32> to vector<32x32xf32>
    %cst_100 = arith.constant dense<0.000000e+00> : vector<32x256xf32>
    %256 = tpu.matmul %255, %45, %cst_100 {dimension_numbers = #tpu.dot_dimension_numbers<[1], [0], [0], [1], [0, 0, 1, 1], [], []>} : vector<32x32xf32>, vector<32x256xf32>, vector<32x256xf32> -> vector<32x256xf32>
    %257 = arith.addf %253, %256 : vector<32x256xf32>
    %258 = vector.extract_strided_slice %45 {offsets = [0, 1], sizes = [32, 255], strides = [1, 1]} : vector<32x256xf32> to vector<32x255xf32>
    %259 = vector.extract_strided_slice %45 {offsets = [0, 0], sizes = [32, 1], strides = [1, 1]} : vector<32x256xf32> to vector<32x1xf32>
    %260 = tpu.concatenate %258, %259 in 1 : vector<32x255xf32>, vector<32x1xf32> -> vector<32x256xf32>
    %c5_101 = arith.constant 5 : index
    %c0_102 = arith.constant 0 : index
    %c0_103 = arith.constant 0 : index
    %261 = vector.load %arg3[%c5_101, %c0_102, %c0_103] : memref<9x1x256xf32, #tpu.memory_space<vmem>>, vector<1x1x256xf32>
    %262 = vector.shape_cast %261 : vector<1x1x256xf32> to vector<1x256xf32>
    %263 = vector.broadcast %262 : vector<1x256xf32> to vector<32x256xf32>
    %264 = arith.mulf %260, %263 : vector<32x256xf32>
    %c5_104 = arith.constant 5 : index
    %c0_105 = arith.constant 0 : index
    %c0_106 = arith.constant 0 : index
    %265 = vector.load %arg15[%c5_104, %c0_105, %c0_106] : memref<9x32x32xf32, #tpu.memory_space<vmem>>, vector<1x32x32xf32>
    %266 = vector.shape_cast %265 : vector<1x32x32xf32> to vector<32x32xf32>
    %cst_107 = arith.constant dense<0.000000e+00> : vector<32x256xf32>
    %267 = tpu.matmul %266, %264, %cst_107 {dimension_numbers = #tpu.dot_dimension_numbers<[1], [0], [0], [1], [0, 0, 1, 1], [], []>} : vector<32x32xf32>, vector<32x256xf32>, vector<32x256xf32> -> vector<32x256xf32>
    %268 = arith.addf %257, %267 : vector<32x256xf32>
    %269 = vector.extract_strided_slice %45 {offsets = [0, 15], sizes = [32, 241], strides = [1, 1]} : vector<32x256xf32> to vector<32x241xf32>
    %270 = vector.extract_strided_slice %45 {offsets = [0, 0], sizes = [32, 15], strides = [1, 1]} : vector<32x256xf32> to vector<32x15xf32>
    %271 = tpu.concatenate %269, %270 in 1 : vector<32x241xf32>, vector<32x15xf32> -> vector<32x256xf32>
    %c6_108 = arith.constant 6 : index
    %c0_109 = arith.constant 0 : index
    %c0_110 = arith.constant 0 : index
    %272 = vector.load %arg3[%c6_108, %c0_109, %c0_110] : memref<9x1x256xf32, #tpu.memory_space<vmem>>, vector<1x1x256xf32>
    %273 = vector.shape_cast %272 : vector<1x1x256xf32> to vector<1x256xf32>
    %274 = vector.broadcast %273 : vector<1x256xf32> to vector<32x256xf32>
    %275 = arith.mulf %271, %274 : vector<32x256xf32>
    %c6_111 = arith.constant 6 : index
    %c0_112 = arith.constant 0 : index
    %c0_113 = arith.constant 0 : index
    %276 = vector.load %arg15[%c6_111, %c0_112, %c0_113] : memref<9x32x32xf32, #tpu.memory_space<vmem>>, vector<1x32x32xf32>
    %277 = vector.shape_cast %276 : vector<1x32x32xf32> to vector<32x32xf32>
    %cst_114 = arith.constant dense<0.000000e+00> : vector<32x256xf32>
    %278 = tpu.matmul %277, %275, %cst_114 {dimension_numbers = #tpu.dot_dimension_numbers<[1], [0], [0], [1], [0, 0, 1, 1], [], []>} : vector<32x32xf32>, vector<32x256xf32>, vector<32x256xf32> -> vector<32x256xf32>
    %279 = arith.addf %268, %278 : vector<32x256xf32>
    %280 = vector.extract_strided_slice %45 {offsets = [0, 16], sizes = [32, 240], strides = [1, 1]} : vector<32x256xf32> to vector<32x240xf32>
    %281 = vector.extract_strided_slice %45 {offsets = [0, 0], sizes = [32, 16], strides = [1, 1]} : vector<32x256xf32> to vector<32x16xf32>
    %282 = tpu.concatenate %280, %281 in 1 : vector<32x240xf32>, vector<32x16xf32> -> vector<32x256xf32>
    %c7_115 = arith.constant 7 : index
    %c0_116 = arith.constant 0 : index
    %c0_117 = arith.constant 0 : index
    %283 = vector.load %arg3[%c7_115, %c0_116, %c0_117] : memref<9x1x256xf32, #tpu.memory_space<vmem>>, vector<1x1x256xf32>
    %284 = vector.shape_cast %283 : vector<1x1x256xf32> to vector<1x256xf32>
    %285 = vector.broadcast %284 : vector<1x256xf32> to vector<32x256xf32>
    %286 = arith.mulf %282, %285 : vector<32x256xf32>
    %c7_118 = arith.constant 7 : index
    %c0_119 = arith.constant 0 : index
    %c0_120 = arith.constant 0 : index
    %287 = vector.load %arg15[%c7_118, %c0_119, %c0_120] : memref<9x32x32xf32, #tpu.memory_space<vmem>>, vector<1x32x32xf32>
    %288 = vector.shape_cast %287 : vector<1x32x32xf32> to vector<32x32xf32>
    %cst_121 = arith.constant dense<0.000000e+00> : vector<32x256xf32>
    %289 = tpu.matmul %288, %286, %cst_121 {dimension_numbers = #tpu.dot_dimension_numbers<[1], [0], [0], [1], [0, 0, 1, 1], [], []>} : vector<32x32xf32>, vector<32x256xf32>, vector<32x256xf32> -> vector<32x256xf32>
    %290 = arith.addf %279, %289 : vector<32x256xf32>
    %291 = vector.extract_strided_slice %45 {offsets = [0, 17], sizes = [32, 239], strides = [1, 1]} : vector<32x256xf32> to vector<32x239xf32>
    %292 = vector.extract_strided_slice %45 {offsets = [0, 0], sizes = [32, 17], strides = [1, 1]} : vector<32x256xf32> to vector<32x17xf32>
    %293 = tpu.concatenate %291, %292 in 1 : vector<32x239xf32>, vector<32x17xf32> -> vector<32x256xf32>
    %c8_122 = arith.constant 8 : index
    %c0_123 = arith.constant 0 : index
    %c0_124 = arith.constant 0 : index
    %294 = vector.load %arg3[%c8_122, %c0_123, %c0_124] : memref<9x1x256xf32, #tpu.memory_space<vmem>>, vector<1x1x256xf32>
    %295 = vector.shape_cast %294 : vector<1x1x256xf32> to vector<1x256xf32>
    %296 = vector.broadcast %295 : vector<1x256xf32> to vector<32x256xf32>
    %297 = arith.mulf %293, %296 : vector<32x256xf32>
    %c8_125 = arith.constant 8 : index
    %c0_126 = arith.constant 0 : index
    %c0_127 = arith.constant 0 : index
    %298 = vector.load %arg15[%c8_125, %c0_126, %c0_127] : memref<9x32x32xf32, #tpu.memory_space<vmem>>, vector<1x32x32xf32>
    %299 = vector.shape_cast %298 : vector<1x32x32xf32> to vector<32x32xf32>
    %cst_128 = arith.constant dense<0.000000e+00> : vector<32x256xf32>
    %300 = tpu.matmul %299, %297, %cst_128 {dimension_numbers = #tpu.dot_dimension_numbers<[1], [0], [0], [1], [0, 0, 1, 1], [], []>} : vector<32x32xf32>, vector<32x256xf32>, vector<32x256xf32> -> vector<32x256xf32>
    %301 = arith.addf %290, %300 : vector<32x256xf32>
    %c0_129 = arith.constant 0 : index
    %c0_130 = arith.constant 0 : index
    %302 = vector.load %arg16[%c0_129, %c0_130] : memref<32x1xf32, #tpu.memory_space<vmem>>, vector<32x1xf32>
    %303 = vector.broadcast %302 : vector<32x1xf32> to vector<32x256xf32>
    %304 = arith.addf %301, %303 : vector<32x256xf32>
    %cst_131 = arith.constant 0.000000e+00 : f32
    %305 = vector.broadcast %cst_131 : f32 to vector<32x256xf32>
    %306 = arith.maximumf %304, %305 : vector<32x256xf32>
    %c0_132 = arith.constant 0 : index
    %c0_133 = arith.constant 0 : index
    %c0_134 = arith.constant 0 : index
    %307 = vector.load %arg17[%c0_132, %c0_133, %c0_134] : memref<1x32x256xf32, #tpu.memory_space<vmem>>, vector<1x32x256xf32>
    %308 = vector.shape_cast %307 : vector<1x32x256xf32> to vector<32x256xf32>
    %309 = vector.shape_cast %306 : vector<32x256xf32> to vector<1x32x256xf32>
    tpu.vector_store %arg17[%c0_132, %c0_133, %c0_134], %309 {strides = array<i32>} : memref<1x32x256xf32, #tpu.memory_space<vmem>>, vector<1x32x256xf32>,
    %310 = vector.broadcast %208 : vector<1x256xf32> to vector<32x256xf32>
    %311 = arith.mulf %10, %310 : vector<32x256xf32>
    %cst_135 = arith.constant 0.000000e+00 : f32
    %312 = vector.broadcast %cst_135 : f32 to vector<32x256xf32>
    %313 = vector.extract_strided_slice %311 {offsets = [0, 239], sizes = [32, 17], strides = [1, 1]} : vector<32x256xf32> to vector<32x17xf32>
    %314 = vector.extract_strided_slice %311 {offsets = [0, 0], sizes = [32, 239], strides = [1, 1]} : vector<32x256xf32> to vector<32x239xf32>
    %315 = tpu.concatenate %313, %314 in 1 : vector<32x17xf32>, vector<32x239xf32> -> vector<32x256xf32>
    %c0_136 = arith.constant 0 : index
    %c0_137 = arith.constant 0 : index
    %c0_138 = arith.constant 0 : index
    %316 = vector.load %arg3[%c0_136, %c0_137, %c0_138] : memref<9x1x256xf32, #tpu.memory_space<vmem>>, vector<1x1x256xf32>
    %317 = vector.shape_cast %316 : vector<1x1x256xf32> to vector<1x256xf32>
    %318 = vector.broadcast %317 : vector<1x256xf32> to vector<32x256xf32>
    %319 = arith.mulf %315, %318 : vector<32x256xf32>
    %c0_139 = arith.constant 0 : index
    %c0_140 = arith.constant 0 : index
    %c0_141 = arith.constant 0 : index
    %320 = vector.load %arg15[%c0_139, %c0_140, %c0_141] : memref<9x32x32xf32, #tpu.memory_space<vmem>>, vector<1x32x32xf32>
    %321 = vector.shape_cast %320 : vector<1x32x32xf32> to vector<32x32xf32>
    %cst_142 = arith.constant dense<0.000000e+00> : vector<32x256xf32>
    %322 = tpu.matmul %321, %319, %cst_142 {dimension_numbers = #tpu.dot_dimension_numbers<[1], [0], [0], [1], [0, 0, 1, 1], [], []>} : vector<32x32xf32>, vector<32x256xf32>, vector<32x256xf32> -> vector<32x256xf32>
    %323 = arith.addf %312, %322 : vector<32x256xf32>
    %324 = vector.extract_strided_slice %311 {offsets = [0, 240], sizes = [32, 16], strides = [1, 1]} : vector<32x256xf32> to vector<32x16xf32>
    %325 = vector.extract_strided_slice %311 {offsets = [0, 0], sizes = [32, 240], strides = [1, 1]} : vector<32x256xf32> to vector<32x240xf32>
    %326 = tpu.concatenate %324, %325 in 1 : vector<32x16xf32>, vector<32x240xf32> -> vector<32x256xf32>
    %c1_143 = arith.constant 1 : index
    %c0_144 = arith.constant 0 : index
    %c0_145 = arith.constant 0 : index
    %327 = vector.load %arg3[%c1_143, %c0_144, %c0_145] : memref<9x1x256xf32, #tpu.memory_space<vmem>>, vector<1x1x256xf32>
    %328 = vector.shape_cast %327 : vector<1x1x256xf32> to vector<1x256xf32>
    %329 = vector.broadcast %328 : vector<1x256xf32> to vector<32x256xf32>
    %330 = arith.mulf %326, %329 : vector<32x256xf32>
    %c1_146 = arith.constant 1 : index
    %c0_147 = arith.constant 0 : index
    %c0_148 = arith.constant 0 : index
    %331 = vector.load %arg15[%c1_146, %c0_147, %c0_148] : memref<9x32x32xf32, #tpu.memory_space<vmem>>, vector<1x32x32xf32>
    %332 = vector.shape_cast %331 : vector<1x32x32xf32> to vector<32x32xf32>
    %cst_149 = arith.constant dense<0.000000e+00> : vector<32x256xf32>
    %333 = tpu.matmul %332, %330, %cst_149 {dimension_numbers = #tpu.dot_dimension_numbers<[1], [0], [0], [1], [0, 0, 1, 1], [], []>} : vector<32x32xf32>, vector<32x256xf32>, vector<32x256xf32> -> vector<32x256xf32>
    %334 = arith.addf %323, %333 : vector<32x256xf32>
    %335 = vector.extract_strided_slice %311 {offsets = [0, 241], sizes = [32, 15], strides = [1, 1]} : vector<32x256xf32> to vector<32x15xf32>
    %336 = vector.extract_strided_slice %311 {offsets = [0, 0], sizes = [32, 241], strides = [1, 1]} : vector<32x256xf32> to vector<32x241xf32>
    %337 = tpu.concatenate %335, %336 in 1 : vector<32x15xf32>, vector<32x241xf32> -> vector<32x256xf32>
    %c2_150 = arith.constant 2 : index
    %c0_151 = arith.constant 0 : index
    %c0_152 = arith.constant 0 : index
    %338 = vector.load %arg3[%c2_150, %c0_151, %c0_152] : memref<9x1x256xf32, #tpu.memory_space<vmem>>, vector<1x1x256xf32>
    %339 = vector.shape_cast %338 : vector<1x1x256xf32> to vector<1x256xf32>
    %340 = vector.broadcast %339 : vector<1x256xf32> to vector<32x256xf32>
    %341 = arith.mulf %337, %340 : vector<32x256xf32>
    %c2_153 = arith.constant 2 : index
    %c0_154 = arith.constant 0 : index
    %c0_155 = arith.constant 0 : index
    %342 = vector.load %arg15[%c2_153, %c0_154, %c0_155] : memref<9x32x32xf32, #tpu.memory_space<vmem>>, vector<1x32x32xf32>
    %343 = vector.shape_cast %342 : vector<1x32x32xf32> to vector<32x32xf32>
    %cst_156 = arith.constant dense<0.000000e+00> : vector<32x256xf32>
    %344 = tpu.matmul %343, %341, %cst_156 {dimension_numbers = #tpu.dot_dimension_numbers<[1], [0], [0], [1], [0, 0, 1, 1], [], []>} : vector<32x32xf32>, vector<32x256xf32>, vector<32x256xf32> -> vector<32x256xf32>
    %345 = arith.addf %334, %344 : vector<32x256xf32>
    %346 = vector.extract_strided_slice %311 {offsets = [0, 255], sizes = [32, 1], strides = [1, 1]} : vector<32x256xf32> to vector<32x1xf32>
    %347 = vector.extract_strided_slice %311 {offsets = [0, 0], sizes = [32, 255], strides = [1, 1]} : vector<32x256xf32> to vector<32x255xf32>
    %348 = tpu.concatenate %346, %347 in 1 : vector<32x1xf32>, vector<32x255xf32> -> vector<32x256xf32>
    %c3_157 = arith.constant 3 : index
    %c0_158 = arith.constant 0 : index
    %c0_159 = arith.constant 0 : index
    %349 = vector.load %arg3[%c3_157, %c0_158, %c0_159] : memref<9x1x256xf32, #tpu.memory_space<vmem>>, vector<1x1x256xf32>
    %350 = vector.shape_cast %349 : vector<1x1x256xf32> to vector<1x256xf32>
    %351 = vector.broadcast %350 : vector<1x256xf32> to vector<32x256xf32>
    %352 = arith.mulf %348, %351 : vector<32x256xf32>
    %c3_160 = arith.constant 3 : index
    %c0_161 = arith.constant 0 : index
    %c0_162 = arith.constant 0 : index
    %353 = vector.load %arg15[%c3_160, %c0_161, %c0_162] : memref<9x32x32xf32, #tpu.memory_space<vmem>>, vector<1x32x32xf32>
    %354 = vector.shape_cast %353 : vector<1x32x32xf32> to vector<32x32xf32>
    %cst_163 = arith.constant dense<0.000000e+00> : vector<32x256xf32>
    %355 = tpu.matmul %354, %352, %cst_163 {dimension_numbers = #tpu.dot_dimension_numbers<[1], [0], [0], [1], [0, 0, 1, 1], [], []>} : vector<32x32xf32>, vector<32x256xf32>, vector<32x256xf32> -> vector<32x256xf32>
    %356 = arith.addf %345, %355 : vector<32x256xf32>
    %c4_164 = arith.constant 4 : index
    %c0_165 = arith.constant 0 : index
    %c0_166 = arith.constant 0 : index
    %357 = vector.load %arg15[%c4_164, %c0_165, %c0_166] : memref<9x32x32xf32, #tpu.memory_space<vmem>>, vector<1x32x32xf32>
    %358 = vector.shape_cast %357 : vector<1x32x32xf32> to vector<32x32xf32>
    %cst_167 = arith.constant dense<0.000000e+00> : vector<32x256xf32>
    %359 = tpu.matmul %358, %311, %cst_167 {dimension_numbers = #tpu.dot_dimension_numbers<[1], [0], [0], [1], [0, 0, 1, 1], [], []>} : vector<32x32xf32>, vector<32x256xf32>, vector<32x256xf32> -> vector<32x256xf32>
    %360 = arith.addf %356, %359 : vector<32x256xf32>
    %361 = vector.extract_strided_slice %311 {offsets = [0, 1], sizes = [32, 255], strides = [1, 1]} : vector<32x256xf32> to vector<32x255xf32>
    %362 = vector.extract_strided_slice %311 {offsets = [0, 0], sizes = [32, 1], strides = [1, 1]} : vector<32x256xf32> to vector<32x1xf32>
    %363 = tpu.concatenate %361, %362 in 1 : vector<32x255xf32>, vector<32x1xf32> -> vector<32x256xf32>
    %c5_168 = arith.constant 5 : index
    %c0_169 = arith.constant 0 : index
    %c0_170 = arith.constant 0 : index
    %364 = vector.load %arg3[%c5_168, %c0_169, %c0_170] : memref<9x1x256xf32, #tpu.memory_space<vmem>>, vector<1x1x256xf32>
    %365 = vector.shape_cast %364 : vector<1x1x256xf32> to vector<1x256xf32>
    %366 = vector.broadcast %365 : vector<1x256xf32> to vector<32x256xf32>
    %367 = arith.mulf %363, %366 : vector<32x256xf32>
    %c5_171 = arith.constant 5 : index
    %c0_172 = arith.constant 0 : index
    %c0_173 = arith.constant 0 : index
    %368 = vector.load %arg15[%c5_171, %c0_172, %c0_173] : memref<9x32x32xf32, #tpu.memory_space<vmem>>, vector<1x32x32xf32>
    %369 = vector.shape_cast %368 : vector<1x32x32xf32> to vector<32x32xf32>
    %cst_174 = arith.constant dense<0.000000e+00> : vector<32x256xf32>
    %370 = tpu.matmul %369, %367, %cst_174 {dimension_numbers = #tpu.dot_dimension_numbers<[1], [0], [0], [1], [0, 0, 1, 1], [], []>} : vector<32x32xf32>, vector<32x256xf32>, vector<32x256xf32> -> vector<32x256xf32>
    %371 = arith.addf %360, %370 : vector<32x256xf32>
    %372 = vector.extract_strided_slice %311 {offsets = [0, 15], sizes = [32, 241], strides = [1, 1]} : vector<32x256xf32> to vector<32x241xf32>
    %373 = vector.extract_strided_slice %311 {offsets = [0, 0], sizes = [32, 15], strides = [1, 1]} : vector<32x256xf32> to vector<32x15xf32>
    %374 = tpu.concatenate %372, %373 in 1 : vector<32x241xf32>, vector<32x15xf32> -> vector<32x256xf32>
    %c6_175 = arith.constant 6 : index
    %c0_176 = arith.constant 0 : index
    %c0_177 = arith.constant 0 : index
    %375 = vector.load %arg3[%c6_175, %c0_176, %c0_177] : memref<9x1x256xf32, #tpu.memory_space<vmem>>, vector<1x1x256xf32>
    %376 = vector.shape_cast %375 : vector<1x1x256xf32> to vector<1x256xf32>
    %377 = vector.broadcast %376 : vector<1x256xf32> to vector<32x256xf32>
    %378 = arith.mulf %374, %377 : vector<32x256xf32>
    %c6_178 = arith.constant 6 : index
    %c0_179 = arith.constant 0 : index
    %c0_180 = arith.constant 0 : index
    %379 = vector.load %arg15[%c6_178, %c0_179, %c0_180] : memref<9x32x32xf32, #tpu.memory_space<vmem>>, vector<1x32x32xf32>
    %380 = vector.shape_cast %379 : vector<1x32x32xf32> to vector<32x32xf32>
    %cst_181 = arith.constant dense<0.000000e+00> : vector<32x256xf32>
    %381 = tpu.matmul %380, %378, %cst_181 {dimension_numbers = #tpu.dot_dimension_numbers<[1], [0], [0], [1], [0, 0, 1, 1], [], []>} : vector<32x32xf32>, vector<32x256xf32>, vector<32x256xf32> -> vector<32x256xf32>
    %382 = arith.addf %371, %381 : vector<32x256xf32>
    %383 = vector.extract_strided_slice %311 {offsets = [0, 16], sizes = [32, 240], strides = [1, 1]} : vector<32x256xf32> to vector<32x240xf32>
    %384 = vector.extract_strided_slice %311 {offsets = [0, 0], sizes = [32, 16], strides = [1, 1]} : vector<32x256xf32> to vector<32x16xf32>
    %385 = tpu.concatenate %383, %384 in 1 : vector<32x240xf32>, vector<32x16xf32> -> vector<32x256xf32>
    %c7_182 = arith.constant 7 : index
    %c0_183 = arith.constant 0 : index
    %c0_184 = arith.constant 0 : index
    %386 = vector.load %arg3[%c7_182, %c0_183, %c0_184] : memref<9x1x256xf32, #tpu.memory_space<vmem>>, vector<1x1x256xf32>
    %387 = vector.shape_cast %386 : vector<1x1x256xf32> to vector<1x256xf32>
    %388 = vector.broadcast %387 : vector<1x256xf32> to vector<32x256xf32>
    %389 = arith.mulf %385, %388 : vector<32x256xf32>
    %c7_185 = arith.constant 7 : index
    %c0_186 = arith.constant 0 : index
    %c0_187 = arith.constant 0 : index
    %390 = vector.load %arg15[%c7_185, %c0_186, %c0_187] : memref<9x32x32xf32, #tpu.memory_space<vmem>>, vector<1x32x32xf32>
    %391 = vector.shape_cast %390 : vector<1x32x32xf32> to vector<32x32xf32>
    %cst_188 = arith.constant dense<0.000000e+00> : vector<32x256xf32>
    %392 = tpu.matmul %391, %389, %cst_188 {dimension_numbers = #tpu.dot_dimension_numbers<[1], [0], [0], [1], [0, 0, 1, 1], [], []>} : vector<32x32xf32>, vector<32x256xf32>, vector<32x256xf32> -> vector<32x256xf32>
    %393 = arith.addf %382, %392 : vector<32x256xf32>
    %394 = vector.extract_strided_slice %311 {offsets = [0, 17], sizes = [32, 239], strides = [1, 1]} : vector<32x256xf32> to vector<32x239xf32>
    %395 = vector.extract_strided_slice %311 {offsets = [0, 0], sizes = [32, 17], strides = [1, 1]} : vector<32x256xf32> to vector<32x17xf32>
    %396 = tpu.concatenate %394, %395 in 1 : vector<32x239xf32>, vector<32x17xf32> -> vector<32x256xf32>
    %c8_189 = arith.constant 8 : index
    %c0_190 = arith.constant 0 : index
    %c0_191 = arith.constant 0 : index
    %397 = vector.load %arg3[%c8_189, %c0_190, %c0_191] : memref<9x1x256xf32, #tpu.memory_space<vmem>>, vector<1x1x256xf32>
    %398 = vector.shape_cast %397 : vector<1x1x256xf32> to vector<1x256xf32>
    %399 = vector.broadcast %398 : vector<1x256xf32> to vector<32x256xf32>
    %400 = arith.mulf %396, %399 : vector<32x256xf32>
    %c8_192 = arith.constant 8 : index
    %c0_193 = arith.constant 0 : index
    %c0_194 = arith.constant 0 : index
    %401 = vector.load %arg15[%c8_192, %c0_193, %c0_194] : memref<9x32x32xf32, #tpu.memory_space<vmem>>, vector<1x32x32xf32>
    %402 = vector.shape_cast %401 : vector<1x32x32xf32> to vector<32x32xf32>
    %cst_195 = arith.constant dense<0.000000e+00> : vector<32x256xf32>
    %403 = tpu.matmul %402, %400, %cst_195 {dimension_numbers = #tpu.dot_dimension_numbers<[1], [0], [0], [1], [0, 0, 1, 1], [], []>} : vector<32x32xf32>, vector<32x256xf32>, vector<32x256xf32> -> vector<32x256xf32>
    %404 = arith.addf %393, %403 : vector<32x256xf32>
    %c0_196 = arith.constant 0 : index
    %c0_197 = arith.constant 0 : index
    %405 = vector.load %arg16[%c0_196, %c0_197] : memref<32x1xf32, #tpu.memory_space<vmem>>, vector<32x1xf32>
    %406 = vector.broadcast %405 : vector<32x1xf32> to vector<32x256xf32>
    %407 = arith.addf %404, %406 : vector<32x256xf32>
    %cst_198 = arith.constant 0.000000e+00 : f32
    %408 = vector.broadcast %cst_198 : f32 to vector<32x256xf32>
    %409 = arith.maximumf %407, %408 : vector<32x256xf32>
    %c0_199 = arith.constant 0 : index
    %c0_200 = arith.constant 0 : index
    %c0_201 = arith.constant 0 : index
    %410 = vector.load %arg18[%c0_199, %c0_200, %c0_201] : memref<1x32x256xf32, #tpu.memory_space<vmem>>, vector<1x32x256xf32>
    %411 = vector.shape_cast %410 : vector<1x32x256xf32> to vector<32x256xf32>
    %412 = vector.shape_cast %409 : vector<32x256xf32> to vector<1x32x256xf32>
    tpu.vector_store %arg18[%c0_199, %c0_200, %c0_201], %412 {strides = array<i32>} : memref<1x32x256xf32, #tpu.memory_space<vmem>>, vector<1x32x256xf32>,
    return
  }
  func.func @transform_0(%arg0: i32) -> (i32, i32, i32) {
    %c0_i32 = arith.constant 0 : i32
    %c0_i32_0 = arith.constant 0 : i32
    %c0_i32_1 = arith.constant 0 : i32
    return %arg0, %c0_i32, %c0_i32_0 : i32, i32, i32
  }
  func.func @transform_1(%arg0: i32) -> (i32, i32, i32) {
    %c0_i32 = arith.constant 0 : i32
    %c0_i32_0 = arith.constant 0 : i32
    %c0_i32_1 = arith.constant 0 : i32
    return %arg0, %c0_i32, %c0_i32_0 : i32, i32, i32
  }
  func.func @transform_2(%arg0: i32) -> (i32, i32, i32) {
    %c0_i32 = arith.constant 0 : i32
    %c0_i32_0 = arith.constant 0 : i32
    %c0_i32_1 = arith.constant 0 : i32
    %c0_i32_2 = arith.constant 0 : i32
    return %c0_i32, %c0_i32_0, %c0_i32_1 : i32, i32, i32
  }
  func.func @transform_3(%arg0: i32) -> i32 {
    %c0_i32 = arith.constant 0 : i32
    %c0_i32_0 = arith.constant 0 : i32
    return %c0_i32 : i32
  }
  func.func @transform_4(%arg0: i32) -> (i32, i32) {
    %c0_i32 = arith.constant 0 : i32
    %c0_i32_0 = arith.constant 0 : i32
    %c0_i32_1 = arith.constant 0 : i32
    return %c0_i32, %c0_i32_0 : i32, i32
  }
  func.func @transform_5(%arg0: i32) -> (i32, i32) {
    %c0_i32 = arith.constant 0 : i32
    %c0_i32_0 = arith.constant 0 : i32
    %c0_i32_1 = arith.constant 0 : i32
    return %c0_i32, %c0_i32_0 : i32, i32
  }
  func.func @transform_6(%arg0: i32) -> (i32, i32) {
    %c0_i32 = arith.constant 0 : i32
    %c0_i32_0 = arith.constant 0 : i32
    %c0_i32_1 = arith.constant 0 : i32
    return %c0_i32, %c0_i32_0 : i32, i32
  }
  func.func @transform_7(%arg0: i32) -> (i32, i32) {
    %c0_i32 = arith.constant 0 : i32
    %c0_i32_0 = arith.constant 0 : i32
    %c0_i32_1 = arith.constant 0 : i32
    return %c0_i32, %c0_i32_0 : i32, i32
  }
  func.func @transform_8(%arg0: i32) -> (i32, i32) {
    %c0_i32 = arith.constant 0 : i32
    %c0_i32_0 = arith.constant 0 : i32
    %c0_i32_1 = arith.constant 0 : i32
    return %c0_i32, %c0_i32_0 : i32, i32
  }
  func.func @transform_9(%arg0: i32) -> (i32, i32) {
    %c0_i32 = arith.constant 0 : i32
    %c0_i32_0 = arith.constant 0 : i32
    %c0_i32_1 = arith.constant 0 : i32
    return %c0_i32, %c0_i32_0 : i32, i32
  }
  func.func @transform_10(%arg0: i32) -> (i32, i32) {
    %c0_i32 = arith.constant 0 : i32
    %c0_i32_0 = arith.constant 0 : i32
    %c0_i32_1 = arith.constant 0 : i32
    return %c0_i32, %c0_i32_0 : i32, i32
  }
  func.func @transform_11(%arg0: i32) -> (i32, i32) {
    %c0_i32 = arith.constant 0 : i32
    %c0_i32_0 = arith.constant 0 : i32
    %c0_i32_1 = arith.constant 0 : i32
    return %c0_i32, %c0_i32_0 : i32, i32
  }
  func.func @transform_12(%arg0: i32) -> (i32, i32) {
    %c0_i32 = arith.constant 0 : i32
    %c0_i32_0 = arith.constant 0 : i32
    %c0_i32_1 = arith.constant 0 : i32
    return %c0_i32, %c0_i32_0 : i32, i32
  }
  func.func @transform_13(%arg0: i32) -> (i32, i32) {
    %c0_i32 = arith.constant 0 : i32
    %c0_i32_0 = arith.constant 0 : i32
    %c0_i32_1 = arith.constant 0 : i32
    return %c0_i32, %c0_i32_0 : i32, i32
  }
  func.func @transform_14(%arg0: i32) -> (i32, i32, i32) {
    %c0_i32 = arith.constant 0 : i32
    %c0_i32_0 = arith.constant 0 : i32
    %c0_i32_1 = arith.constant 0 : i32
    %c0_i32_2 = arith.constant 0 : i32
    return %c0_i32, %c0_i32_0, %c0_i32_1 : i32, i32, i32
  }
  func.func @transform_15(%arg0: i32) -> (i32, i32) {
    %c0_i32 = arith.constant 0 : i32
    %c0_i32_0 = arith.constant 0 : i32
    %c0_i32_1 = arith.constant 0 : i32
    return %c0_i32, %c0_i32_0 : i32, i32
  }
  func.func @transform_16(%arg0: i32) -> (i32, i32, i32) {
    %c0_i32 = arith.constant 0 : i32
    %c0_i32_0 = arith.constant 0 : i32
    %c0_i32_1 = arith.constant 0 : i32
    return %arg0, %c0_i32, %c0_i32_0 : i32, i32, i32
  }
  func.func @transform_17(%arg0: i32) -> (i32, i32, i32) {
    %c0_i32 = arith.constant 0 : i32
    %c0_i32_0 = arith.constant 0 : i32
    %c0_i32_1 = arith.constant 0 : i32
    return %arg0, %c0_i32, %c0_i32_0 : i32, i32, i32
  }
}

</mosaic_0001>

<llo_original>
// kernel: tpu_custom_call.1
$region0: #{tpu_custom_call.1}
  #allocation0 [shape = 'u32[]', space=smem, size = 0x4, offset = 0x4, fixed_abs, tag = 'smem constant byte address 0x4 - core index']
  #allocation1 [shape = 'u32[144,128]{1,0:T(1,128)}', space=vmem, size = 0x12000, scoped, tag = 'internal scratch']
  %s0 = inlined_call_operand.hbm [shape: f32[8,128], index: 0, kind: input, shape index: {}]
  %s1 = inlined_call_operand.hbm [shape: f32[8,128], index: 1, kind: output, shape index: {}]
  %s2 = sld [smem:[#allocation0]]
  $region18: #{tpu_custom_call.1} parent=0
    _
  %s4 = ssub.s32 1, %s2
  %s5 = scalar_select 0, %s4, %s2
  $region1: #{tpu_custom_call.1} parent=0
    #allocation2 [shape = 'u8[4096]{0}', space=vmem, size = 0x1000, scoped, tag = 'input window, operand 0, single buffered']
    #allocation3 [shape = 's32[1]{0}', space=sflag, size = 0x4, scoped, tag = 'scoped memory for tpu_custom_call.1']
    #allocation4 [shape = 's32[1]{0}', space=sflag, size = 0x4, scoped, tag = 'scoped memory for tpu_custom_call.1']
    #allocation5 [shape = 'u8[4096]{0}', space=vmem, size = 0x1000, scoped, tag = 'output window, operand 0, single buffered']
    %6 = vsyncpa [#allocation3], 0
    %7 = vsyncpa [#allocation4], 0
    // Predicated region
    $region2: #{tpu_custom_call.1} parent=1 // pred_check
      _
    $region3: #{tpu_custom_call.1} parent=1 // pred_check_branch
      %9 = sbr.rel (0) target = $region5
    $region4: #{tpu_custom_call.1} parent=1 // pred_region
      %s11 = ssub.s32 128, 128
      %12 = vsyncadd [#allocation3], %s11
      %s14 = sshll.u32 [#allocation2], 4
      %s15 = int_to_ptr.vmem [resolvable:$true] %s14
      %17 = dma.hbm_to_vmem [thread:$0]  %s0, 128, %s15, [#allocation3]
    $region5: #{tpu_custom_call.1} parent=1 // pred_fallthru
      _
    // Predicated region
    $region6: #{tpu_custom_call.1} parent=1 // pred_check
      _
    $region7: #{tpu_custom_call.1} parent=1 // pred_check_branch
      %19 = sbr.rel (0) target = $region9
    $region8: #{tpu_custom_call.1} parent=1 // pred_region
      %20 = dma.done [#allocation3], 128
    $region9: #{tpu_custom_call.1} parent=1 // pred_fallthru
      _
    %v21 = vld [vmem:[#allocation2] sm:$0xff]
    %22 = vrot.lane.b32.xlu0 %v21, 1
    %v23 = vpop.permute.xlu0 %22
    %24 = vst [vmem:[#allocation5] sm:$0xff] %v23
    // Predicated region
    $region10: #{tpu_custom_call.1} parent=1 // pred_check
      _
    $region11: #{tpu_custom_call.1} parent=1 // pred_check_branch
      %26 = sbr.rel (0) target = $region13
    $region12: #{tpu_custom_call.1} parent=1 // pred_region
      %s28 = ssub.s32 128, 128
      %29 = vsyncadd [#allocation4], %s28
      %s31 = sshll.u32 [#allocation5], 4
      %s32 = int_to_ptr.vmem [resolvable:$true] %s31
      %34 = dma.vmem_to_hbm [thread:$0]  %s32, 128, %s1, [#allocation4]
    $region13: #{tpu_custom_call.1} parent=1 // pred_fallthru
      _
    // Predicated region
    $region14: #{tpu_custom_call.1} parent=1 // pred_check
      _
    $region15: #{tpu_custom_call.1} parent=1 // pred_check_branch
      %36 = sbr.rel (0) target = $region17
    $region16: #{tpu_custom_call.1} parent=1 // pred_region
      %37 = dma.done [#allocation4], 128
    $region17: #{tpu_custom_call.1} parent=1 // pred_fallthru
      _
    %38 = vsyncpa [#allocation3], 1
    %39 = vsyncpa [#allocation4], 1

// kernel: cross_feature_interaction.1
$region0: #{cross_feature_interaction.1}
  #allocation0 [shape = 'u32[]', space=smem, size = 0x4, offset = 0x4, fixed_abs, tag = 'smem constant byte address 0x4 - core index']
  #allocation1 [shape = 'u32[144,128]{1,0:T(1,128)}', space=vmem, size = 0x12000, scoped, tag = 'internal scratch']
  %s0 = inlined_call_operand.vmem [shape: f32[2,16,256], index: 0, kind: input, shape index: {}]
  %s1 = inlined_call_operand.vmem [shape: f32[2,32,256], index: 1, kind: input, shape index: {}]
  %s2 = inlined_call_operand.vmem [shape: f32[9,1,256], index: 2, kind: input, shape index: {}]
  %s3 = inlined_call_operand.vmem [shape: f32[18], index: 3, kind: input, shape index: {}]
  %s4 = inlined_call_operand.vmem [shape: f32[32,16], index: 4, kind: input, shape index: {}]
  %s5 = inlined_call_operand.vmem [shape: f32[32,1], index: 5, kind: input, shape index: {}]
  %s6 = inlined_call_operand.vmem [shape: f32[32,8], index: 6, kind: input, shape index: {}]
  %s7 = inlined_call_operand.vmem [shape: f32[1,8], index: 7, kind: input, shape index: {}]
  %s8 = inlined_call_operand.vmem [shape: f32[8,32], index: 8, kind: input, shape index: {}]
  %s9 = inlined_call_operand.vmem [shape: f32[1,32], index: 9, kind: input, shape index: {}]
  %s10 = inlined_call_operand.vmem [shape: f32[32,2], index: 10, kind: input, shape index: {}]
  %s11 = inlined_call_operand.vmem [shape: f32[32,2], index: 11, kind: input, shape index: {}]
  %s12 = inlined_call_operand.vmem [shape: f32[8,32], index: 12, kind: input, shape index: {}]
  %s13 = inlined_call_operand.vmem [shape: f32[8,1], index: 13, kind: input, shape index: {}]
  %s14 = inlined_call_operand.vmem [shape: f32[9,32,32], index: 14, kind: input, shape index: {}]
  %s15 = inlined_call_operand.vmem [shape: f32[32,1], index: 15, kind: input, shape index: {}]
  %s16 = inlined_call_operand.vmem [shape: f32[2,32,256], index: 16, kind: output, shape index: {0}]
  %s17 = inlined_call_operand.vmem [shape: f32[2,32,256], index: 17, kind: output, shape index: {1}]
  %18 = xla_tuple %s16, %s17
  %s19 = sld [smem:[#allocation0]]
  $region109: #{cross_feature_interaction.1} parent=0
    _
  %s21 = ssub.s32 1, %s19
  %s22 = scalar_select 0, %s21, %s19
  $region1: #{cross_feature_interaction.1} parent=0
    #allocation2 [shape = 'u8[512]{0}', space=smem, size = 0x200, scoped, tag = 'input window, operand 3, single buffered']
    #allocation3 [shape = 's32[2]{0}', space=sflag, size = 0x8, scoped, tag = 'scoped memory for cross_feature_interaction.1']
    %23 = vsyncpa [#allocation3], 0
    loop: start=0, step=1, limit=4
    $region2: #{cross_feature_interaction.1} parent=1 // loop_pre_header
      _
    $region3: #{cross_feature_interaction.1} parent=1 // loop_header
      %s25 = sphi 0, %s29
      %p26 = scmp.ge.s32.totalorder %s25, 4
      %s35 = sphi 0, %s37
      %s38 = sphi 0, %s35
      %s39 = sphi 0, %s38
      %s55 = sphi 0, %s39
      %s61 = sphi 0, %s63
      %s64 = sphi 0, %s61
      %s65 = sphi 0, %s64
      %s81 = sphi 0, %s65
      %s85 = sphi 0, %s85
      %s87 = sphi 0, %s85
      %s88 = sphi 0, %s87
      %s102 = sphi 0, %s88
      %s106 = sphi 0, %s106
      %s108 = sphi 0, %s106
      %s109 = sphi 0, %s108
      %s123 = sphi 0, %s109
      %s127 = sphi 0, %s127
      %s129 = sphi 0, %s127
      %s130 = sphi 0, %s129
      %s144 = sphi 0, %s130
      %s148 = sphi 0, %s148
      %s150 = sphi 0, %s148
      %s151 = sphi 0, %s150
      %s165 = sphi 0, %s151
      %s169 = sphi 0, %s169
      %s171 = sphi 0, %s169
      %s172 = sphi 0, %s171
      %s186 = sphi 0, %s172
      %s190 = sphi 0, %s190
      %s192 = sphi 0, %s190
      %s193 = sphi 0, %s192
      %s207 = sphi 0, %s193
      %s211 = sphi 0, %s211
      %s213 = sphi 0, %s211
      %s214 = sphi 0, %s213
      %s228 = sphi 0, %s214
      %s232 = sphi 0, %s232
      %s234 = sphi 0, %s232
      %s235 = sphi 0, %s234
      %s249 = sphi 0, %s235
      %s253 = sphi 0, %s253
      %s255 = sphi 0, %s253
      %s256 = sphi 0, %s255
      %s270 = sphi 0, %s256
      %s274 = sphi 0, %s274
      %s276 = sphi 0, %s274
      %s277 = sphi 0, %s276
      %s291 = sphi 0, %s277
      %s295 = sphi 0, %s295
      %s297 = sphi 0, %s295
      %s298 = sphi 0, %s297
      %s312 = sphi 0, %s298
      %s316 = sphi 0, %s316
      %s318 = sphi 0, %s316
      %s319 = sphi 0, %s318
      %s333 = sphi 0, %s319
      %s337 = sphi 0, %s337
      %s339 = sphi 0, %s337
      %s340 = sphi 0, %s339
      %s354 = sphi 0, %s340
      %s358 = sphi 0, %s358
      %s360 = sphi 0, %s358
      %s361 = sphi 0, %s360
      %s375 = sphi 0, %s361
      %s381 = sphi 0, %s383
      %s384 = sphi 0, %s381
      %s385 = sphi 0, %s384
      %s401 = sphi 0, %s385
      %s407 = sphi 0, %s409
      %s410 = sphi 0, %s407
      %s411 = sphi 0, %s410
      %s427 = sphi 0, %s411
    $region4: #{cross_feature_interaction.1} parent=1 // loop_header_branch
      %28 = sbr.rel (%p26) target = $region8
    $region5: #{cross_feature_interaction.1} parent=1 // loop_body
      %s30 = ssub.s32 %s25, 1
      %s31 = ssub.s32 %s25, 2
      %s32 = sadd.s32 %s25, 1
      %s33 = ssub.s32 %s25, %s32
      %p34 = scmp.eq.s32.totalorder %s33, 0
      %s36 = sadd.s32 %s35, 1
      %s37 = scalar_select %p34, %s35, %s36
      %p40 = pneg %p34
      %p41 = scmp.eq.s32.totalorder %s25, 1
      %p42 = por %p40, %p41
      %p43 = scmp.ne.s32.totalorder %s35, %s38
      %p44 = scmp.eq.s32.totalorder %s25, 0
      %p45 = por %p43, %p44
      %p46 = scmp.ne.s32.totalorder %s35, %s38
      %p47 = scmp.eq.s32.totalorder %s30, 1
      %p48 = por %p46, %p47
      %p49 = scmp.ne.s32.totalorder %s38, %s39
      %p50 = scmp.eq.s32.totalorder %s30, 0
      %p51 = por %p49, %p50
      %p52 = scmp.ne.s32.totalorder %s38, %s39
      %p53 = scmp.eq.s32.totalorder %s31, 1
      %p54 = por %p52, %p53
      %p56 = scmp.ne.s32.totalorder %s39, %s55
      %p57 = scmp.eq.s32.totalorder %s31, 0
      %p58 = por %p56, %p57
      %s59 = ssub.s32 %s25, %s32
      %p60 = scmp.eq.s32.totalorder %s59, 0
      %s62 = sadd.s32 %s61, 1
      %s63 = scalar_select %p60, %s61, %s62
      %p66 = pneg %p60
      %p67 = scmp.eq.s32.totalorder %s25, 1
      %p68 = por %p66, %p67
      %p69 = scmp.ne.s32.totalorder %s61, %s64
      %p70 = scmp.eq.s32.totalorder %s25, 0
      %p71 = por %p69, %p70
      %p72 = scmp.ne.s32.totalorder %s61, %s64
      %p73 = scmp.eq.s32.totalorder %s30, 1
      %p74 = por %p72, %p73
      %p75 = scmp.ne.s32.totalorder %s64, %s65
      %p76 = scmp.eq.s32.totalorder %s30, 0
      %p77 = por %p75, %p76
      %p78 = scmp.ne.s32.totalorder %s64, %s65
      %p79 = scmp.eq.s32.totalorder %s31, 1
      %p80 = por %p78, %p79
      %p82 = scmp.ne.s32.totalorder %s65, %s81
      %p83 = scmp.eq.s32.totalorder %s31, 0
      %p84 = por %p82, %p83
      %s86 = sadd.s32 %s85, 1
      %p89 = scmp.eq.s32.totalorder %s25, 1
      %p90 = scmp.ne.s32.totalorder %s85, %s87
      %p91 = scmp.eq.s32.totalorder %s25, 0
      %p92 = por %p90, %p91
      %p93 = scmp.ne.s32.totalorder %s85, %s87
      %p94 = scmp.eq.s32.totalorder %s30, 1
      %p95 = por %p93, %p94
      %p96 = scmp.ne.s32.totalorder %s87, %s88
      %p97 = scmp.eq.s32.totalorder %s30, 0
      %p98 = por %p96, %p97
      %p99 = scmp.ne.s32.totalorder %s87, %s88
      %p100 = scmp.eq.s32.totalorder %s31, 1
      %p101 = por %p99, %p100
      %p103 = scmp.ne.s32.totalorder %s88, %s102
      %p104 = scmp.eq.s32.totalorder %s31, 0
      %p105 = por %p103, %p104
      %s107 = sadd.s32 %s106, 1
      %p110 = scmp.eq.s32.totalorder %s25, 1
      %p111 = scmp.ne.s32.totalorder %s106, %s108
      %p112 = scmp.eq.s32.totalorder %s25, 0
      %p113 = por %p111, %p112
      %p114 = scmp.ne.s32.totalorder %s106, %s108
      %p115 = scmp.eq.s32.totalorder %s30, 1
      %p116 = por %p114, %p115
      %p117 = scmp.ne.s32.totalorder %s108, %s109
      %p118 = scmp.eq.s32.totalorder %s30, 0
      %p119 = por %p117, %p118
      %p120 = scmp.ne.s32.totalorder %s108, %s109
      %p121 = scmp.eq.s32.totalorder %s31, 1
      %p122 = por %p120, %p121
      %p124 = scmp.ne.s32.totalorder %s109, %s123
      %p125 = scmp.eq.s32.totalorder %s31, 0
      %p126 = por %p124, %p125
      %s128 = sadd.s32 %s127, 1
      %p131 = scmp.eq.s32.totalorder %s25, 1
      %p132 = scmp.ne.s32.totalorder %s127, %s129
      %p133 = scmp.eq.s32.totalorder %s25, 0
      %p134 = por %p132, %p133
      %p135 = scmp.ne.s32.totalorder %s127, %s129
      %p136 = scmp.eq.s32.totalorder %s30, 1
      %p137 = por %p135, %p136
      %p138 = scmp.ne.s32.totalorder %s129, %s130
      %p139 = scmp.eq.s32.totalorder %s30, 0
      %p140 = por %p138, %p139
      %p141 = scmp.ne.s32.totalorder %s129, %s130
      %p142 = scmp.eq.s32.totalorder %s31, 1
      %p143 = por %p141, %p142
      %p145 = scmp.ne.s32.totalorder %s130, %s144
      %p146 = scmp.eq.s32.totalorder %s31, 0
      %p147 = por %p145, %p146
      %s149 = sadd.s32 %s148, 1
      %p152 = scmp.eq.s32.totalorder %s25, 1
      %p153 = scmp.ne.s32.totalorder %s148, %s150
      %p154 = scmp.eq.s32.totalorder %s25, 0
      %p155 = por %p153, %p154
      %p156 = scmp.ne.s32.totalorder %s148, %s150
      %p157 = scmp.eq.s32.totalorder %s30, 1
      %p158 = por %p156, %p157
      %p159 = scmp.ne.s32.totalorder %s150, %s151
      %p160 = scmp.eq.s32.totalorder %s30, 0
      %p161 = por %p159, %p160
      %p162 = scmp.ne.s32.totalorder %s150, %s151
      %p163 = scmp.eq.s32.totalorder %s31, 1
      %p164 = por %p162, %p163
      %p166 = scmp.ne.s32.totalorder %s151, %s165
      %p167 = scmp.eq.s32.totalorder %s31, 0
      %p168 = por %p166, %p167
      %s170 = sadd.s32 %s169, 1
      %p173 = scmp.eq.s32.totalorder %s25, 1
      %p174 = scmp.ne.s32.totalorder %s169, %s171
      %p175 = scmp.eq.s32.totalorder %s25, 0
      %p176 = por %p174, %p175
      %p177 = scmp.ne.s32.totalorder %s169, %s171
      %p178 = scmp.eq.s32.totalorder %s30, 1
      %p179 = por %p177, %p178
      %p180 = scmp.ne.s32.totalorder %s171, %s172
      %p181 = scmp.eq.s32.totalorder %s30, 0
      %p182 = por %p180, %p181
      %p183 = scmp.ne.s32.totalorder %s171, %s172
      %p184 = scmp.eq.s32.totalorder %s31, 1
      %p185 = por %p183, %p184
      %p187 = scmp.ne.s32.totalorder %s172, %s186
      %p188 = scmp.eq.s32.totalorder %s31, 0
      %p189 = por %p187, %p188
      %s191 = sadd.s32 %s190, 1
      %p194 = scmp.eq.s32.totalorder %s25, 1
      %p195 = scmp.ne.s32.totalorder %s190, %s192
      %p196 = scmp.eq.s32.totalorder %s25, 0
      %p197 = por %p195, %p196
      %p198 = scmp.ne.s32.totalorder %s190, %s192
      %p199 = scmp.eq.s32.totalorder %s30, 1
      %p200 = por %p198, %p199
      %p201 = scmp.ne.s32.totalorder %s192, %s193
      %p202 = scmp.eq.s32.totalorder %s30, 0
      %p203 = por %p201, %p202
      %p204 = scmp.ne.s32.totalorder %s192, %s193
      %p205 = scmp.eq.s32.totalorder %s31, 1
      %p206 = por %p204, %p205
      %p208 = scmp.ne.s32.totalorder %s193, %s207
      %p209 = scmp.eq.s32.totalorder %s31, 0
      %p210 = por %p208, %p209
      %s212 = sadd.s32 %s211, 1
      %p215 = scmp.eq.s32.totalorder %s25, 1
      %p216 = scmp.ne.s32.totalorder %s211, %s213
      %p217 = scmp.eq.s32.totalorder %s25, 0
      %p218 = por %p216, %p217
      %p219 = scmp.ne.s32.totalorder %s211, %s213
      %p220 = scmp.eq.s32.totalorder %s30, 1
      %p221 = por %p219, %p220
      %p222 = scmp.ne.s32.totalorder %s213, %s214
      %p223 = scmp.eq.s32.totalorder %s30, 0
      %p224 = por %p222, %p223
      %p225 = scmp.ne.s32.totalorder %s213, %s214
      %p226 = scmp.eq.s32.totalorder %s31, 1
      %p227 = por %p225, %p226
      %p229 = scmp.ne.s32.totalorder %s214, %s228
      %p230 = scmp.eq.s32.totalorder %s31, 0
      %p231 = por %p229, %p230
      %s233 = sadd.s32 %s232, 1
      %p236 = scmp.eq.s32.totalorder %s25, 1
      %p237 = scmp.ne.s32.totalorder %s232, %s234
      %p238 = scmp.eq.s32.totalorder %s25, 0
      %p239 = por %p237, %p238
      %p240 = scmp.ne.s32.totalorder %s232, %s234
      %p241 = scmp.eq.s32.totalorder %s30, 1
      %p242 = por %p240, %p241
      %p243 = scmp.ne.s32.totalorder %s234, %s235
      %p244 = scmp.eq.s32.totalorder %s30, 0
      %p245 = por %p243, %p244
      %p246 = scmp.ne.s32.totalorder %s234, %s235
      %p247 = scmp.eq.s32.totalorder %s31, 1
      %p248 = por %p246, %p247
      %p250 = scmp.ne.s32.totalorder %s235, %s249
      %p251 = scmp.eq.s32.totalorder %s31, 0
      %p252 = por %p250, %p251
      %s254 = sadd.s32 %s253, 1
      %p257 = scmp.eq.s32.totalorder %s25, 1
      %p258 = scmp.ne.s32.totalorder %s253, %s255
      %p259 = scmp.eq.s32.totalorder %s25, 0
      %p260 = por %p258, %p259
      %p261 = scmp.ne.s32.totalorder %s253, %s255
      %p262 = scmp.eq.s32.totalorder %s30, 1
      %p263 = por %p261, %p262
      %p264 = scmp.ne.s32.totalorder %s255, %s256
      %p265 = scmp.eq.s32.totalorder %s30, 0
      %p266 = por %p264, %p265
      %p267 = scmp.ne.s32.totalorder %s255, %s256
      %p268 = scmp.eq.s32.totalorder %s31, 1
      %p269 = por %p267, %p268
      %p271 = scmp.ne.s32.totalorder %s256, %s270
      %p272 = scmp.eq.s32.totalorder %s31, 0
      %p273 = por %p271, %p272
      %s275 = sadd.s32 %s274, 1
      %p278 = scmp.eq.s32.totalorder %s25, 1
      %p279 = scmp.ne.s32.totalorder %s274, %s276
      %p280 = scmp.eq.s32.totalorder %s25, 0
      %p281 = por %p279, %p280
      %p282 = scmp.ne.s32.totalorder %s274, %s276
      %p283 = scmp.eq.s32.totalorder %s30, 1
      %p284 = por %p282, %p283
      %p285 = scmp.ne.s32.totalorder %s276, %s277
      %p286 = scmp.eq.s32.totalorder %s30, 0
      %p287 = por %p285, %p286
      %p288 = scmp.ne.s32.totalorder %s276, %s277
      %p289 = scmp.eq.s32.totalorder %s31, 1
      %p290 = por %p288, %p289
      %p292 = scmp.ne.s32.totalorder %s277, %s291
      %p293 = scmp.eq.s32.totalorder %s31, 0
      %p294 = por %p292, %p293
      %s296 = sadd.s32 %s295, 1
      %p299 = scmp.eq.s32.totalorder %s25, 1
      %p300 = scmp.ne.s32.totalorder %s295, %s297
      %p301 = scmp.eq.s32.totalorder %s25, 0
      %p302 = por %p300, %p301
      %p303 = scmp.ne.s32.totalorder %s295, %s297
      %p304 = scmp.eq.s32.totalorder %s30, 1
      %p305 = por %p303, %p304
      %p306 = scmp.ne.s32.totalorder %s297, %s298
      %p307 = scmp.eq.s32.totalorder %s30, 0
      %p308 = por %p306, %p307
      %p309 = scmp.ne.s32.totalorder %s297, %s298
      %p310 = scmp.eq.s32.totalorder %s31, 1
      %p311 = por %p309, %p310
      %p313 = scmp.ne.s32.totalorder %s298, %s312
      %p314 = scmp.eq.s32.totalorder %s31, 0
      %p315 = por %p313, %p314
      %s317 = sadd.s32 %s316, 1
      %p320 = scmp.eq.s32.totalorder %s25, 1
      %p321 = scmp.ne.s32.totalorder %s316, %s318
      %p322 = scmp.eq.s32.totalorder %s25, 0
      %p323 = por %p321, %p322
      %p324 = scmp.ne.s32.totalorder %s316, %s318
      %p325 = scmp.eq.s32.totalorder %s30, 1
      %p326 = por %p324, %p325
      %p327 = scmp.ne.s32.totalorder %s318, %s319
      %p328 = scmp.eq.s32.totalorder %s30, 0
      %p329 = por %p327, %p328
      %p330 = scmp.ne.s32.totalorder %s318, %s319
      %p331 = scmp.eq.s32.totalorder %s31, 1
      %p332 = por %p330, %p331
      %p334 = scmp.ne.s32.totalorder %s319, %s333
      %p335 = scmp.eq.s32.totalorder %s31, 0
      %p336 = por %p334, %p335
      %s338 = sadd.s32 %s337, 1
      %p341 = scmp.eq.s32.totalorder %s25, 1
      %p342 = scmp.ne.s32.totalorder %s337, %s339
      %p343 = scmp.eq.s32.totalorder %s25, 0
      %p344 = por %p342, %p343
      %p345 = scmp.ne.s32.totalorder %s337, %s339
      %p346 = scmp.eq.s32.totalorder %s30, 1
      %p347 = por %p345, %p346
      %p348 = scmp.ne.s32.totalorder %s339, %s340
      %p349 = scmp.eq.s32.totalorder %s30, 0
      %p350 = por %p348, %p349
      %p351 = scmp.ne.s32.totalorder %s339, %s340
      %p352 = scmp.eq.s32.totalorder %s31, 1
      %p353 = por %p351, %p352
      %p355 = scmp.ne.s32.totalorder %s340, %s354
      %p356 = scmp.eq.s32.totalorder %s31, 0
      %p357 = por %p355, %p356
      %s359 = sadd.s32 %s358, 1
      %p362 = scmp.eq.s32.totalorder %s25, 1
      %p363 = scmp.ne.s32.totalorder %s358, %s360
      %p364 = scmp.eq.s32.totalorder %s25, 0
      %p365 = por %p363, %p364
      %p366 = scmp.ne.s32.totalorder %s358, %s360
      %p367 = scmp.eq.s32.totalorder %s30, 1
      %p368 = por %p366, %p367
      %p369 = scmp.ne.s32.totalorder %s360, %s361
      %p370 = scmp.eq.s32.totalorder %s30, 0
      %p371 = por %p369, %p370
      %p372 = scmp.ne.s32.totalorder %s360, %s361
      %p373 = scmp.eq.s32.totalorder %s31, 1
      %p374 = por %p372, %p373
      %p376 = scmp.ne.s32.totalorder %s361, %s375
      %p377 = scmp.eq.s32.totalorder %s31, 0
      %p378 = por %p376, %p377
      %s379 = ssub.s32 %s25, %s32
      %p380 = scmp.eq.s32.totalorder %s379, 0
      %s382 = sadd.s32 %s381, 1
      %s383 = scalar_select %p380, %s381, %s382
      %p386 = pneg %p380
      %p387 = scmp.eq.s32.totalorder %s25, 1
      %p388 = por %p386, %p387
      %p389 = scmp.ne.s32.totalorder %s381, %s384
      %p390 = scmp.eq.s32.totalorder %s25, 0
      %p391 = por %p389, %p390
      %p392 = scmp.ne.s32.totalorder %s381, %s384
      %p393 = scmp.eq.s32.totalorder %s30, 1
      %p394 = por %p392, %p393
      %p395 = scmp.ne.s32.totalorder %s384, %s385
      %p396 = scmp.eq.s32.totalorder %s30, 0
      %p397 = por %p395, %p396
      %p398 = scmp.ne.s32.totalorder %s384, %s385
      %p399 = scmp.eq.s32.totalorder %s31, 1
      %p400 = por %p398, %p399
      %p402 = scmp.ne.s32.totalorder %s385, %s401
      %p403 = scmp.eq.s32.totalorder %s31, 0
      %p404 = por %p402, %p403
      %s405 = ssub.s32 %s25, %s32
      %p406 = scmp.eq.s32.totalorder %s405, 0
      %s408 = sadd.s32 %s407, 1
      %s409 = scalar_select %p406, %s407, %s408
      %p412 = pneg %p406
      %p413 = scmp.eq.s32.totalorder %s25, 1
      %p414 = por %p412, %p413
      %p415 = scmp.ne.s32.totalorder %s407, %s410
      %p416 = scmp.eq.s32.totalorder %s25, 0
      %p417 = por %p415, %p416
      %p418 = scmp.ne.s32.totalorder %s407, %s410
      %p419 = scmp.eq.s32.totalorder %s30, 1
      %p420 = por %p418, %p419
      %p421 = scmp.ne.s32.totalorder %s410, %s411
      %p422 = scmp.eq.s32.totalorder %s30, 0
      %p423 = por %p421, %p422
      %p424 = scmp.ne.s32.totalorder %s410, %s411
      %p425 = scmp.eq.s32.totalorder %s31, 1
      %p426 = por %p424, %p425
      %p428 = scmp.ne.s32.totalorder %s411, %s427
      %p429 = scmp.eq.s32.totalorder %s31, 0
      %p430 = por %p428, %p429
      %p431 = scmp.le.s32.totalorder 1, %s25
      %p432 = scmp.lt.s32.totalorder %s25, 3
      %p433 = pnand %p431, %p432
      %p434 = pneg %p433
      // Predicated region
      $region9: #{cross_feature_interaction.1} parent=5 // pred_check
        _
      $region10: #{cross_feature_interaction.1} parent=5 // pred_check_branch
        %436 = sbr.rel (%p433) target = $region12
      $region11: #{cross_feature_interaction.1} parent=5 // pred_region
        %s437 = ssub.s32 %s25, 1
        // Predicated region
        $region13: #{cross_feature_interaction.1} parent=11 // pred_check
          %p438 = pneg %p98
        $region14: #{cross_feature_interaction.1} parent=11 // pred_check_branch
          %440 = sbr.rel (%p438) target = $region16
        $region15: #{cross_feature_interaction.1} parent=11 // pred_region
          _
        $region16: #{cross_feature_interaction.1} parent=11 // pred_fallthru
          _
        // Predicated region
        $region17: #{cross_feature_interaction.1} parent=11 // pred_check
          %p441 = pneg %p119
        $region18: #{cross_feature_interaction.1} parent=11 // pred_check_branch
          %443 = sbr.rel (%p441) target = $region20
        $region19: #{cross_feature_interaction.1} parent=11 // pred_region
          %s445 = ssub.s32 16, 16
          %446 = vsyncadd [#allocation3], %s445
          %s448 = sshll.u32 %s3, 4
          %s449 = int_to_ptr.vmem [resolvable:$true] %s448
          %451 = dma.vmem_to_smem %s449, 16, [#allocation2], [#allocation3]
        $region20: #{cross_feature_interaction.1} parent=11 // pred_fallthru
          _
        // Predicated region
        $region21: #{cross_feature_interaction.1} parent=11 // pred_check
          %p452 = pneg %p140
        $region22: #{cross_feature_interaction.1} parent=11 // pred_check_branch
          %454 = sbr.rel (%p452) target = $region24
        $region23: #{cross_feature_interaction.1} parent=11 // pred_region
          _
        $region24: #{cross_feature_interaction.1} parent=11 // pred_fallthru
          _
        // Predicated region
        $region25: #{cross_feature_interaction.1} parent=11 // pred_check
          %p455 = pneg %p161
        $region26: #{cross_feature_interaction.1} parent=11 // pred_check_branch
          %457 = sbr.rel (%p455) target = $region28
        $region27: #{cross_feature_interaction.1} parent=11 // pred_region
          _
        $region28: #{cross_feature_interaction.1} parent=11 // pred_fallthru
          _
        // Predicated region
        $region29: #{cross_feature_interaction.1} parent=11 // pred_check
          %p458 = pneg %p182
        $region30: #{cross_feature_interaction.1} parent=11 // pred_check_branch
          %460 = sbr.rel (%p458) target = $region32
        $region31: #{cross_feature_interaction.1} parent=11 // pred_region
          _
        $region32: #{cross_feature_interaction.1} parent=11 // pred_fallthru
          _
        // Predicated region
        $region33: #{cross_feature_interaction.1} parent=11 // pred_check
          %p461 = pneg %p203
        $region34: #{cross_feature_interaction.1} parent=11 // pred_check_branch
          %463 = sbr.rel (%p461) target = $region36
        $region35: #{cross_feature_interaction.1} parent=11 // pred_region
          _
        $region36: #{cross_feature_interaction.1} parent=11 // pred_fallthru
          _
        // Predicated region
        $region37: #{cross_feature_interaction.1} parent=11 // pred_check
          %p464 = pneg %p224
        $region38: #{cross_feature_interaction.1} parent=11 // pred_check_branch
          %466 = sbr.rel (%p464) target = $region40
        $region39: #{cross_feature_interaction.1} parent=11 // pred_region
          _
        $region40: #{cross_feature_interaction.1} parent=11 // pred_fallthru
          _
        // Predicated region
        $region41: #{cross_feature_interaction.1} parent=11 // pred_check
          %p467 = pneg %p245
        $region42: #{cross_feature_interaction.1} parent=11 // pred_check_branch
          %469 = sbr.rel (%p467) target = $region44
        $region43: #{cross_feature_interaction.1} parent=11 // pred_region
          _
        $region44: #{cross_feature_interaction.1} parent=11 // pred_fallthru
          _
        // Predicated region
        $region45: #{cross_feature_interaction.1} parent=11 // pred_check
          %p470 = pneg %p266
        $region46: #{cross_feature_interaction.1} parent=11 // pred_check_branch
          %472 = sbr.rel (%p470) target = $region48
        $region47: #{cross_feature_interaction.1} parent=11 // pred_region
          _
        $region48: #{cross_feature_interaction.1} parent=11 // pred_fallthru
          _
        // Predicated region
        $region49: #{cross_feature_interaction.1} parent=11 // pred_check
          %p473 = pneg %p287
        $region50: #{cross_feature_interaction.1} parent=11 // pred_check_branch
          %475 = sbr.rel (%p473) target = $region52
        $region51: #{cross_feature_interaction.1} parent=11 // pred_region
          _
        $region52: #{cross_feature_interaction.1} parent=11 // pred_fallthru
          _
        // Predicated region
        $region53: #{cross_feature_interaction.1} parent=11 // pred_check
          %p476 = pneg %p308
        $region54: #{cross_feature_interaction.1} parent=11 // pred_check_branch
          %478 = sbr.rel (%p476) target = $region56
        $region55: #{cross_feature_interaction.1} parent=11 // pred_region
          _
        $region56: #{cross_feature_interaction.1} parent=11 // pred_fallthru
          _
        // Predicated region
        $region57: #{cross_feature_interaction.1} parent=11 // pred_check
          %p479 = pneg %p329
        $region58: #{cross_feature_interaction.1} parent=11 // pred_check_branch
          %481 = sbr.rel (%p479) target = $region60
        $region59: #{cross_feature_interaction.1} parent=11 // pred_region
          _
        $region60: #{cross_feature_interaction.1} parent=11 // pred_fallthru
          _
        // Predicated region
        $region61: #{cross_feature_interaction.1} parent=11 // pred_check
          %p482 = pneg %p350
        $region62: #{cross_feature_interaction.1} parent=11 // pred_check_branch
          %484 = sbr.rel (%p482) target = $region64
        $region63: #{cross_feature_interaction.1} parent=11 // pred_region
          _
        $region64: #{cross_feature_interaction.1} parent=11 // pred_fallthru
          _
        // Predicated region
        $region65: #{cross_feature_interaction.1} parent=11 // pred_check
          %p485 = pneg %p371
        $region66: #{cross_feature_interaction.1} parent=11 // pred_check_branch
          %487 = sbr.rel (%p485) target = $region68
        $region67: #{cross_feature_interaction.1} parent=11 // pred_region
          _
        $region68: #{cross_feature_interaction.1} parent=11 // pred_fallthru
          _
      $region12: #{cross_feature_interaction.1} parent=5 // pred_fallthru
        _
      %p488 = scmp.lt.s32.totalorder %s25, 2
      // Predicated region
      $region69: #{cross_feature_interaction.1} parent=5 // pred_check
        %p489 = pneg %p488
      $region70: #{cross_feature_interaction.1} parent=5 // pred_check_branch
        %491 = sbr.rel (%p489) target = $region72
      $region71: #{cross_feature_interaction.1} parent=5 // pred_region
        // Predicated region
        $region73: #{cross_feature_interaction.1} parent=71 // pred_check
          %p492 = pneg %p45
        $region74: #{cross_feature_interaction.1} parent=71 // pred_check_branch
          %494 = sbr.rel (%p492) target = $region76
        $region75: #{cross_feature_interaction.1} parent=71 // pred_region
          %p495 = scmp.lt.s32.totalorder %s25, 1
          %s496 = scalar_select %p495, %s25, 1
          %s497 = smul.addr %s496, 4
          %s498 = smul.addr %s497, 8
          %s499 = scalar_lea.vmem %s0, %s498
        $region76: #{cross_feature_interaction.1} parent=71 // pred_fallthru
          _
        // Predicated region
        $region77: #{cross_feature_interaction.1} parent=71 // pred_check
          %p500 = pneg %p71
        $region78: #{cross_feature_interaction.1} parent=71 // pred_check_branch
          %502 = sbr.rel (%p500) target = $region80
        $region79: #{cross_feature_interaction.1} parent=71 // pred_region
          %p503 = scmp.lt.s32.totalorder %s25, 1
          %s504 = scalar_select %p503, %s25, 1
          %s505 = smul.addr %s504, 8
          %s506 = smul.addr %s505, 8
          %s507 = scalar_lea.vmem %s1, %s506
        $region80: #{cross_feature_interaction.1} parent=71 // pred_fallthru
          _
      $region72: #{cross_feature_interaction.1} parent=5 // pred_fallthru
        _
      %p508 = scmp.le.s32.totalorder 1, %s25
      %p509 = scmp.lt.s32.totalorder %s25, 3
      %p510 = pnand %p508, %p509
      %p511 = pneg %p510
      // Predicated region
      $region81: #{cross_feature_interaction.1} parent=5 // pred_check
        _
      $region82: #{cross_feature_interaction.1} parent=5 // pred_check_branch
        %513 = sbr.rel (%p510) target = $region84
      $region83: #{cross_feature_interaction.1} parent=5 // pred_region
        %s514 = ssub.s32 %s25, 1
        // Predicated region
        $region85: #{cross_feature_interaction.1} parent=83 // pred_check
          %p515 = pneg %p119
        $region86: #{cross_feature_interaction.1} parent=83 // pred_check_branch
          %517 = sbr.rel (%p515) target = $region88
        $region87: #{cross_feature_interaction.1} parent=83 // pred_region
          %518 = dma.done [#allocation3], 16
        $region88: #{cross_feature_interaction.1} parent=83 // pred_fallthru
          _
        %519 = sfence
        %p520 = scmp.lt.s32.totalorder %s30, 1
        %s521 = scalar_select %p520, %s30, 1
        %s522 = smul.addr %s521, 4
        %s523 = smul.addr %s522, 8
        %s524 = scalar_lea.vmem %s0, %s523
        %p525 = pneg %p51
        %p526 = pneg %p48
        %p527 = scmp.lt.s32.totalorder %s30, 1
        %s528 = scalar_select %p527, %s30, 1
        %s529 = smul.addr %s528, 8
        %s530 = smul.addr %s529, 8
        %s531 = scalar_lea.vmem %s1, %s530
        %p532 = pneg %p77
        %p533 = pneg %p74
        %p534 = pneg %p98
        %p535 = pneg %p95
        %p536 = pneg %p119
        %p537 = pneg %p116
        %p538 = pneg %p140
        %p539 = pneg %p137
        %p540 = pneg %p161
        %p541 = pneg %p158
        %p542 = pneg %p182
        %p543 = pneg %p179
        %p544 = pneg %p203
        %p545 = pneg %p200
        %p546 = pneg %p224
        %p547 = pneg %p221
        %p548 = pneg %p245
        %p549 = pneg %p242
        %p550 = pneg %p266
        %p551 = pneg %p263
        %p552 = pneg %p287
        %p553 = pneg %p284
        %p554 = pneg %p308
        %p555 = pneg %p305
        %p556 = pneg %p329
        %p557 = pneg %p326
        %p558 = pneg %p350
        %p559 = pneg %p347
        %p560 = pneg %p371
        %p561 = pneg %p368
        %p562 = pneg %p397
        %p563 = pneg %p394
        %p564 = scmp.lt.s32.totalorder %s30, 1
        %s565 = scalar_select %p564, %s30, 1
        %s566 = smul.addr %s565, 8
        %s567 = smul.addr %s566, 8
        %s568 = scalar_lea.vmem %s16, %s567
        %p569 = pneg %p423
        %p570 = pneg %p420
        %p571 = scmp.lt.s32.totalorder %s30, 1
        %s572 = scalar_select %p571, %s30, 1
        %s573 = smul.addr %s572, 8
        %s574 = smul.addr %s573, 8
        %s575 = scalar_lea.vmem %s17, %s574
        %p576 = scmp.lt.s32.totalorder %s30, 1
        %s577 = scalar_select %p576, %s30, 1
        %s578 = smul.addr %s577, 4
        %s579 = smul.addr %s578, 8
        %s580 = scalar_lea.vmem %s0, %s579
        %p581 = scmp.lt.s32.totalorder %s30, 1
        %s582 = scalar_select %p581, %s30, 1
        %s583 = smul.addr %s582, 8
        %s584 = smul.addr %s583, 8
        %s585 = scalar_lea.vmem %s1, %s584
        %p586 = scmp.lt.s32.totalorder %s30, 1
        %s587 = scalar_select %p586, %s30, 1
        %s588 = smul.addr %s587, 8
        %s589 = smul.addr %s588, 8
        %s590 = scalar_lea.vmem %s16, %s589
        %p591 = scmp.lt.s32.totalorder %s30, 1
        %s592 = scalar_select %p591, %s30, 1
        %s593 = smul.addr %s592, 8
        %s594 = smul.addr %s593, 8
        %s595 = scalar_lea.vmem %s17, %s594
        %v596 = vld [vmem:[%s580] sm:$0xff]
        %v597 = vld [vmem:[%s580 + $0x8] sm:$0xff]
        %v598 = vld [vmem:[%s580 + $0x10] sm:$0xff]
        %v599 = vld [vmem:[%s580 + $0x18] sm:$0xff]
        %v600 = vld [vmem:[%s585] sm:$0xff]
        %v601 = vld [vmem:[%s585 + $0x8] sm:$0xff]
        %v602 = vld [vmem:[%s585 + $0x10] sm:$0xff]
        %v603 = vld [vmem:[%s585 + $0x18] sm:$0xff]
        %v604 = vld [vmem:[%s585 + $0x20] sm:$0xff]
        %v605 = vld [vmem:[%s585 + $0x28] sm:$0xff]
        %v606 = vld [vmem:[%s585 + $0x30] sm:$0xff]
        %v607 = vld [vmem:[%s585 + $0x38] sm:$0xff]
        %v608 = vld [vmem:[%s4] sm:$0xff]
        %v609 = vld [vmem:[%s4 + $0x8] sm:$0xff]
        %v610 = vld [vmem:[%s4 + $0x10] sm:$0xff]
        %v611 = vld [vmem:[%s4 + $0x18] sm:$0xff]
        %v612 = vld [vmem:[%s5] sm:$0xff]
        %v613 = vld [vmem:[%s5 + $0x8] sm:$0xff]
        %v614 = vld [vmem:[%s5 + $0x10] sm:$0xff]
        %v615 = vld [vmem:[%s5 + $0x18] sm:$0xff]
        %617 = vset.pattern.permute.xlu0 0
        %618 = vperm.xlu0 %617, %v612
        %v619 = vpop.permute.xlu0 %618
        %622 = vset.pattern.permute.xlu0 0
        %623 = vperm.xlu0 %622, %v613
        %v624 = vpop.permute.xlu0 %623
        %627 = vset.pattern.permute.xlu0 0
        %628 = vperm.xlu0 %627, %v614
        %v629 = vpop.permute.xlu0 %628
        %632 = vset.pattern.permute.xlu0 0
        %633 = vperm.xlu0 %632, %v615
        %v634 = vpop.permute.xlu0 %633
        %vm636 = vcmask 130048
        %v638 = vsel %vm636, %v608, 0
        %v641 = vsel %vm636, %v609, 0
        %v644 = vsel %vm636, %v610, 0
        %v647 = vsel %vm636, %v611, 0
        %649 = vmatprep.subr.mxu0 %v597
        %650 = vmatpush1.msra.mxu0 %v596
        %651 = vmatprep.subr.mxu0 %v599
        %652 = vmatpush1.msra.mxu0 %v598
        %653 = vmatprep.subr.mxu0 0.0
        %654 = vmatpush1.msra.mxu0 0.0
        %655 = vmatprep.subr.mxu0 0.0
        %656 = vmatpush1.msra.mxu0 0.0
        %657 = vmatprep.subr.mxu0 0.0
        %658 = vmatpush1.msra.mxu0 0.0
        %659 = vmatprep.subr.mxu0 0.0
        %660 = vmatpush1.msra.mxu0 0.0
        %661 = vmatprep.subr.mxu0 0.0
        %662 = vmatpush1.msra.mxu0 0.0
        %663 = vmatprep.subr.mxu0 0.0
        %664 = vmatpush1.msra.mxu0 0.0
        %665 = vmatprep.subr.mxu0 0.0
        %666 = vmatpush1.msra.mxu0 0.0
        %667 = vmatprep.subr.mxu0 0.0
        %668 = vmatpush1.msra.mxu0 0.0
        %669 = vmatprep.subr.mxu0 0.0
        %670 = vmatpush1.msra.mxu0 0.0
        %671 = vmatprep.subr.mxu0 0.0
        %672 = vmatpush1.msra.mxu0 0.0
        %673 = vmatprep.subr.mxu0 0.0
        %674 = vmatpush1.msra.mxu0 0.0
        %675 = vmatprep.subr.mxu0 0.0
        %676 = vmatpush1.msra.mxu0 0.0
        %677 = vmatprep.subr.mxu0 0.0
        %678 = vmatpush1.msra.mxu0 0.0
        %679 = vmatprep.subr.mxu0 0.0
        %680 = vmatpush1.msra.mxu0 0.0
        %681 = vmatprep.subr.mxu0 0.0
        %682 = vmatpush1.msra.mxu0 0.0
        %683 = vmatprep.subr.mxu0 0.0
        %684 = vmatpush1.msra.mxu0 0.0
        %685 = vmatprep.subr.mxu0 0.0
        %686 = vmatpush1.msra.mxu0 0.0
        %687 = vmatprep.subr.mxu0 0.0
        %688 = vmatpush1.msra.mxu0 0.0
        %689 = vmatprep.subr.mxu0 0.0
        %690 = vmatpush1.msra.mxu0 0.0
        %691 = vmatprep.subr.mxu0 0.0
        %692 = vmatpush1.msra.mxu0 0.0
        %693 = vmatprep.subr.mxu0 0.0
        %694 = vmatpush1.msra.mxu0 0.0
        %695 = vmatprep.subr.mxu0 0.0
        %696 = vmatpush1.msra.mxu0 0.0
        %697 = vmatprep.subr.mxu0 0.0
        %698 = vmatpush1.msra.mxu0 0.0
        %699 = vmatprep.subr.mxu0 0.0
        %700 = vmatpush1.msra.mxu0 0.0
        %701 = vmatprep.subr.mxu0 0.0
        %702 = vmatpush1.msra.mxu0 0.0
        %703 = vmatprep.subr.mxu0 0.0
        %704 = vmatpush1.msra.mxu0 0.0
        %705 = vmatprep.subr.mxu0 0.0
        %706 = vmatpush1.msra.mxu0 0.0
        %707 = vmatprep.subr.mxu0 0.0
        %708 = vmatpush1.msra.mxu0 0.0
        %709 = vmatprep.subr.mxu0 0.0
        %710 = vmatpush1.msra.mxu0 0.0
        %711 = vmatprep.subr.mxu0 0.0
        %712 = vmatpush1.msra.mxu0 0.0
        %713 = vmatprep.mubr.f32.mxu0 0.0
        %714 = vmatmul.mubr.f32.gmra.mrb[0].mxu0 %v638
        %v715 = vpop.f32.mrb[0].mxu0
        %v716 = vadd.f32 %v619, %v715
        %v717 = vpop.f32.mrb[0].mxu0
        %v718 = vadd.f32 %v619, %v717
        %719 = vmatprep.mubr.f32.mxu0 0.0
        %720 = vmatmul.mubr.f32.gmra.mrb[0].mxu0 %v641
        %v721 = vpop.f32.mrb[0].mxu0
        %v722 = vadd.f32 %v624, %v721
        %v723 = vpop.f32.mrb[0].mxu0
        %v724 = vadd.f32 %v624, %v723
        %725 = vmatprep.mubr.f32.mxu0 0.0
        %726 = vmatmul.mubr.f32.gmra.mrb[0].mxu0 %v644
        %v727 = vpop.f32.mrb[0].mxu0
        %v728 = vadd.f32 %v629, %v727
        %v729 = vpop.f32.mrb[0].mxu0
        %v730 = vadd.f32 %v629, %v729
        %731 = vmatprep.mubr.f32.mxu0 0.0
        %732 = vmatmul.mubr.f32.gmra.mrb[0].mxu0 %v647
        %v733 = vpop.f32.mrb[0].mxu0
        %v734 = vadd.f32 %v634, %v733
        %v735 = vpop.f32.mrb[0].mxu0
        %v736 = vadd.f32 %v634, %v735
        %737 = vdwg.mxu0
        %v738 = vmax.f32 %v716, 0.0
        %v739 = vmax.f32 %v718, 0.0
        %v740 = vmax.f32 %v722, 0.0
        %v741 = vmax.f32 %v724, 0.0
        %v742 = vmax.f32 %v728, 0.0
        %v743 = vmax.f32 %v730, 0.0
        %v744 = vmax.f32 %v734, 0.0
        %v745 = vmax.f32 %v736, 0.0
        %v746 = vadd.f32 %v738, %v739
        %747 = vadd.xlane.f32.xlu0 %v746
        %v748 = vpop.xlane.xlu0 %747
        %v749 = vadd.f32 %v740, %v741
        %750 = vadd.xlane.f32.xlu0 %v749
        %v751 = vpop.xlane.xlu0 %750
        %v752 = vadd.f32 %v742, %v743
        %753 = vadd.xlane.f32.xlu0 %v752
        %v754 = vpop.xlane.xlu0 %753
        %v755 = vadd.f32 %v744, %v745
        %756 = vadd.xlane.f32.xlu0 %v755
        %v757 = vpop.xlane.xlu0 %756
        %v758 = vrcp.pop 256.0
        %v759 = vmul.f32 %v748, %v758
        %v760 = vmul.f32 %v751, %v758
        %v761 = vmul.f32 %v754, %v758
        %v762 = vmul.f32 %v757, %v758
        %v763 = vld [vmem:[%s6] sm:$0xff]
        %v764 = vld [vmem:[%s6 + $0x8] sm:$0xff]
        %v765 = vld [vmem:[%s6 + $0x10] sm:$0xff]
        %v766 = vld [vmem:[%s6 + $0x18] sm:$0xff]
        %v767 = vmul.f32 %v763, %v759
        %v768 = vmul.f32 %v764, %v760
        %v769 = vmul.f32 %v765, %v761
        %v770 = vmul.f32 %v766, %v762
        %vm771 = vcmask 64512
        %v772 = vsel %vm771, %v767, 0.0
        %v773 = vsel %vm771, %v768, 0.0
        %v774 = vadd.f32 %v772, %v773
        %v775 = vsel %vm771, %v769, 0.0
        %v776 = vadd.f32 %v774, %v775
        %v777 = vsel %vm771, %v770, 0.0
        %v778 = vadd.f32 %v776, %v777
        %v779 = vrot.slane %v778, 4
        %v780 = vadd.f32 %v778, %v779
        %v781 = vrot.slane %v780, 2
        %v782 = vadd.f32 %v780, %v781
        %v783 = vrot.slane %v782, 1
        %v784 = vadd.f32 %v782, %v783
        %v785 = vld [vmem:[%s7] sm:$0x1]
        %v786 = vadd.f32 %v784, %v785
        %v787 = vmax.f32 %v786, 0.0
        %v788 = vld [vmem:[%s8] sm:$0xff]
        %v789 = vld [vmem:[%s9] sm:$0x1]
        %v791 = vsel %vm771, %v787, 0
        %793 = vmatprep.subr.mxu0 0.0
        %794 = vmatpush1.msra.mxu0 %v788
        %795 = vmatprep.subr.mxu0 0.0
        %796 = vmatpush1.msra.mxu0 0.0
        %797 = vmatprep.subr.mxu0 0.0
        %798 = vmatpush1.msra.mxu0 0.0
        %799 = vmatprep.subr.mxu0 0.0
        %800 = vmatpush1.msra.mxu0 0.0
        %801 = vmatprep.subr.mxu0 0.0
        %802 = vmatpush1.msra.mxu0 0.0
        %803 = vmatprep.subr.mxu0 0.0
        %804 = vmatpush1.msra.mxu0 0.0
        %805 = vmatprep.subr.mxu0 0.0
        %806 = vmatpush1.msra.mxu0 0.0
        %807 = vmatprep.subr.mxu0 0.0
        %808 = vmatpush1.msra.mxu0 0.0
        %809 = vmatprep.subr.mxu0 0.0
        %810 = vmatpush1.msra.mxu0 0.0
        %811 = vmatprep.subr.mxu0 0.0
        %812 = vmatpush1.msra.mxu0 0.0
        %813 = vmatprep.subr.mxu0 0.0
        %814 = vmatpush1.msra.mxu0 0.0
        %815 = vmatprep.subr.mxu0 0.0
        %816 = vmatpush1.msra.mxu0 0.0
        %817 = vmatprep.subr.mxu0 0.0
        %818 = vmatpush1.msra.mxu0 0.0
        %819 = vmatprep.subr.mxu0 0.0
        %820 = vmatpush1.msra.mxu0 0.0
        %821 = vmatprep.subr.mxu0 0.0
        %822 = vmatpush1.msra.mxu0 0.0
        %823 = vmatprep.subr.mxu0 0.0
        %824 = vmatpush1.msra.mxu0 0.0
        %825 = vmatprep.subr.mxu0 0.0
        %826 = vmatpush1.msra.mxu0 0.0
        %827 = vmatprep.subr.mxu0 0.0
        %828 = vmatpush1.msra.mxu0 0.0
        %829 = vmatprep.subr.mxu0 0.0
        %830 = vmatpush1.msra.mxu0 0.0
        %831 = vmatprep.subr.mxu0 0.0
        %832 = vmatpush1.msra.mxu0 0.0
        %833 = vmatprep.subr.mxu0 0.0
        %834 = vmatpush1.msra.mxu0 0.0
        %835 = vmatprep.subr.mxu0 0.0
        %836 = vmatpush1.msra.mxu0 0.0
        %837 = vmatprep.subr.mxu0 0.0
        %838 = vmatpush1.msra.mxu0 0.0
        %839 = vmatprep.subr.mxu0 0.0
        %840 = vmatpush1.msra.mxu0 0.0
        %841 = vmatprep.subr.mxu0 0.0
        %842 = vmatpush1.msra.mxu0 0.0
        %843 = vmatprep.subr.mxu0 0.0
        %844 = vmatpush1.msra.mxu0 0.0
        %845 = vmatprep.subr.mxu0 0.0
        %846 = vmatpush1.msra.mxu0 0.0
        %847 = vmatprep.subr.mxu0 0.0
        %848 = vmatpush1.msra.mxu0 0.0
        %849 = vmatprep.subr.mxu0 0.0
        %850 = vmatpush1.msra.mxu0 0.0
        %851 = vmatprep.subr.mxu0 0.0
        %852 = vmatpush1.msra.mxu0 0.0
        %853 = vmatprep.subr.mxu0 0.0
        %854 = vmatpush1.msra.mxu0 0.0
        %855 = vmatprep.subr.mxu0 0.0
        %856 = vmatpush1.msra.mxu0 0.0
        %857 = vmatprep.mubr.f32.mxu0 0.0
        %858 = vmatmul.mubr.f32.gmra.mrb[0].mxu0 %v791
        %v859 = vpop.f32.mrb[0].mxu0
        %v860 = vadd.f32 %v789, %v859
        %v861 = vpop.f32.mrb[0].mxu0
        %862 = vdwg.mxu0
        %v863 = vld [vmem:[%s10] sm:$0xff]
        %v864 = vld [vmem:[%s10 + $0x8] sm:$0xff]
        %v865 = vld [vmem:[%s10 + $0x10] sm:$0xff]
        %v866 = vld [vmem:[%s10 + $0x18] sm:$0xff]
        %vm867 = vcmask 261120
        %v869 = vsel %vm867, %v860, 0
        %871 = vmatprep.subr.mxu0 0.0
        %872 = vmatpush1.msra.mxu0 %v863
        %873 = vmatprep.subr.mxu0 0.0
        %874 = vmatpush1.msra.mxu0 %v864
        %875 = vmatprep.subr.mxu0 0.0
        %876 = vmatpush1.msra.mxu0 %v865
        %877 = vmatprep.subr.mxu0 0.0
        %878 = vmatpush1.msra.mxu0 %v866
        %879 = vmatprep.subr.mxu0 0.0
        %880 = vmatpush1.msra.mxu0 0.0
        %881 = vmatprep.subr.mxu0 0.0
        %882 = vmatpush1.msra.mxu0 0.0
        %883 = vmatprep.subr.mxu0 0.0
        %884 = vmatpush1.msra.mxu0 0.0
        %885 = vmatprep.subr.mxu0 0.0
        %886 = vmatpush1.msra.mxu0 0.0
        %887 = vmatprep.subr.mxu0 0.0
        %888 = vmatpush1.msra.mxu0 0.0
        %889 = vmatprep.subr.mxu0 0.0
        %890 = vmatpush1.msra.mxu0 0.0
        %891 = vmatprep.subr.mxu0 0.0
        %892 = vmatpush1.msra.mxu0 0.0
        %893 = vmatprep.subr.mxu0 0.0
        %894 = vmatpush1.msra.mxu0 0.0
        %895 = vmatprep.subr.mxu0 0.0
        %896 = vmatpush1.msra.mxu0 0.0
        %897 = vmatprep.subr.mxu0 0.0
        %898 = vmatpush1.msra.mxu0 0.0
        %899 = vmatprep.subr.mxu0 0.0
        %900 = vmatpush1.msra.mxu0 0.0
        %901 = vmatprep.subr.mxu0 0.0
        %902 = vmatpush1.msra.mxu0 0.0
        %903 = vmatprep.subr.mxu0 0.0
        %904 = vmatpush1.msra.mxu0 0.0
        %905 = vmatprep.subr.mxu0 0.0
        %906 = vmatpush1.msra.mxu0 0.0
        %907 = vmatprep.subr.mxu0 0.0
        %908 = vmatpush1.msra.mxu0 0.0
        %909 = vmatprep.subr.mxu0 0.0
        %910 = vmatpush1.msra.mxu0 0.0
        %911 = vmatprep.subr.mxu0 0.0
        %912 = vmatpush1.msra.mxu0 0.0
        %913 = vmatprep.subr.mxu0 0.0
        %914 = vmatpush1.msra.mxu0 0.0
        %915 = vmatprep.subr.mxu0 0.0
        %916 = vmatpush1.msra.mxu0 0.0
        %917 = vmatprep.subr.mxu0 0.0
        %918 = vmatpush1.msra.mxu0 0.0
        %919 = vmatprep.subr.mxu0 0.0
        %920 = vmatpush1.msra.mxu0 0.0
        %921 = vmatprep.subr.mxu0 0.0
        %922 = vmatpush1.msra.mxu0 0.0
        %923 = vmatprep.subr.mxu0 0.0
        %924 = vmatpush1.msra.mxu0 0.0
        %925 = vmatprep.subr.mxu0 0.0
        %926 = vmatpush1.msra.mxu0 0.0
        %927 = vmatprep.subr.mxu0 0.0
        %928 = vmatpush1.msra.mxu0 0.0
        %929 = vmatprep.subr.mxu0 0.0
        %930 = vmatpush1.msra.mxu0 0.0
        %931 = vmatprep.subr.mxu0 0.0
        %932 = vmatpush1.msra.mxu0 0.0
        %933 = vmatprep.subr.mxu0 0.0
        %934 = vmatpush1.msra.mxu0 0.0
        %935 = vmatprep.mubr.f32.mxu0 0.0
        %936 = vmatmul.mubr.f32.gmra.mrb[0].mxu0 %v869
        %v937 = vpop.f32.mrb[0].mxu0
        %v938 = vadd.f32 0.0, %v937
        %v939 = vpop.f32.mrb[0].mxu0
        %940 = vdwg.mxu0
        %v941 = vmax.f32 %v938, 0.0
        %v942 = vld [vmem:[%s11] sm:$0xff]
        %v943 = vld [vmem:[%s11 + $0x8] sm:$0xff]
        %v944 = vld [vmem:[%s11 + $0x10] sm:$0xff]
        %v945 = vld [vmem:[%s11 + $0x18] sm:$0xff]
        %v946 = vlaneseq
        %v947 = vshrl.u32 %v946, 7
        %v948 = vsub.s32 0, %v947
        %v949 = vrot.slane %v941, %v948
        %v950 = vmul.f32 %v942, %v949
        %v951 = vmul.f32 %v943, %v949
        %v952 = vmul.f32 %v944, %v949
        %v953 = vmul.f32 %v945, %v949
        %vm954 = vcmask 15360
        %v955 = vsel %vm954, %v950, 0.0
        %956 = vadd.xlane.f32.xlu0 %v955
        %v957 = vpop.xlane.xlu0 %956
        %v958 = vsel %vm954, %v951, 0.0
        %959 = vadd.xlane.f32.xlu0 %v958
        %v960 = vpop.xlane.xlu0 %959
        %v961 = vsel %vm954, %v952, 0.0
        %962 = vadd.xlane.f32.xlu0 %v961
        %v963 = vpop.xlane.xlu0 %962
        %v964 = vsel %vm954, %v953, 0.0
        %965 = vadd.xlane.f32.xlu0 %v964
        %v966 = vpop.xlane.xlu0 %965
        %v967 = vmul.f32 %v957, 2.0
        %v968 = vmul.f32 %v960, 2.0
        %v969 = vmul.f32 %v963, 2.0
        %v970 = vmul.f32 %v966, 2.0
        %v971 = vxor.u32 %v967, 2147483648
        %v972 = vxor.u32 %v968, 2147483648
        %v973 = vxor.u32 %v969, 2147483648
        %v974 = vxor.u32 %v970, 2147483648
        %v975 = vmul.f32 %v971, 1.442695
        %v976 = vpow.pop %v975
        %v977 = vmul.f32 %v972, 1.442695
        %v978 = vpow.pop %v977
        %v979 = vmul.f32 %v973, 1.442695
        %v980 = vpow.pop %v979
        %v981 = vmul.f32 %v974, 1.442695
        %v982 = vpow.pop %v981
        %v983 = vadd.f32 %v976, 1.0
        %v984 = vadd.f32 %v978, 1.0
        %v985 = vadd.f32 %v980, 1.0
        %v986 = vadd.f32 %v982, 1.0
        %v987 = vrcp.pop %v983
        %v988 = vmul.f32 1.0, %v987
        %v989 = vrcp.pop %v984
        %v990 = vmul.f32 1.0, %v989
        %v991 = vrcp.pop %v985
        %v992 = vmul.f32 1.0, %v991
        %v993 = vrcp.pop %v986
        %v994 = vmul.f32 1.0, %v993
        %v995 = vmul.f32 %v600, %v988
        %v996 = vmul.f32 %v601, %v988
        %v997 = vmul.f32 %v602, %v990
        %v998 = vmul.f32 %v603, %v990
        %v999 = vmul.f32 %v604, %v992
        %v1000 = vmul.f32 %v605, %v992
        %v1001 = vmul.f32 %v606, %v994
        %v1002 = vmul.f32 %v607, %v994
        %v1003 = vld [vmem:[%s12] sm:$0xff]
        %v1004 = vld [vmem:[%s13] sm:$0xff]
        %1006 = vset.pattern.permute.xlu0 0
        %1007 = vperm.xlu0 %1006, %v1004
        %v1008 = vpop.permute.xlu0 %1007
        %v1011 = vsel %vm867, %v1003, 0
        %1013 = vmatprep.subr.mxu0 %v996
        %1014 = vmatpush1.msra.mxu0 %v995
        %1015 = vmatprep.subr.mxu0 %v998
        %1016 = vmatpush1.msra.mxu0 %v997
        %1017 = vmatprep.subr.mxu0 %v1000
        %1018 = vmatpush1.msra.mxu0 %v999
        %1019 = vmatprep.subr.mxu0 %v1002
        %1020 = vmatpush1.msra.mxu0 %v1001
        %1021 = vmatprep.subr.mxu0 0.0
        %1022 = vmatpush1.msra.mxu0 0.0
        %1023 = vmatprep.subr.mxu0 0.0
        %1024 = vmatpush1.msra.mxu0 0.0
        %1025 = vmatprep.subr.mxu0 0.0
        %1026 = vmatpush1.msra.mxu0 0.0
        %1027 = vmatprep.subr.mxu0 0.0
        %1028 = vmatpush1.msra.mxu0 0.0
        %1029 = vmatprep.subr.mxu0 0.0
        %1030 = vmatpush1.msra.mxu0 0.0
        %1031 = vmatprep.subr.mxu0 0.0
        %1032 = vmatpush1.msra.mxu0 0.0
        %1033 = vmatprep.subr.mxu0 0.0
        %1034 = vmatpush1.msra.mxu0 0.0
        %1035 = vmatprep.subr.mxu0 0.0
        %1036 = vmatpush1.msra.mxu0 0.0
        %1037 = vmatprep.subr.mxu0 0.0
        %1038 = vmatpush1.msra.mxu0 0.0
        %1039 = vmatprep.subr.mxu0 0.0
        %1040 = vmatpush1.msra.mxu0 0.0
        %1041 = vmatprep.subr.mxu0 0.0
        %1042 = vmatpush1.msra.mxu0 0.0
        %1043 = vmatprep.subr.mxu0 0.0
        %1044 = vmatpush1.msra.mxu0 0.0
        %1045 = vmatprep.subr.mxu0 0.0
        %1046 = vmatpush1.msra.mxu0 0.0
        %1047 = vmatprep.subr.mxu0 0.0
        %1048 = vmatpush1.msra.mxu0 0.0
        %1049 = vmatprep.subr.mxu0 0.0
        %1050 = vmatpush1.msra.mxu0 0.0
        %1051 = vmatprep.subr.mxu0 0.0
        %1052 = vmatpush1.msra.mxu0 0.0
        %1053 = vmatprep.subr.mxu0 0.0
        %1054 = vmatpush1.msra.mxu0 0.0
        %1055 = vmatprep.subr.mxu0 0.0
        %1056 = vmatpush1.msra.mxu0 0.0
        %1057 = vmatprep.subr.mxu0 0.0
        %1058 = vmatpush1.msra.mxu0 0.0
        %1059 = vmatprep.subr.mxu0 0.0
        %1060 = vmatpush1.msra.mxu0 0.0
        %1061 = vmatprep.subr.mxu0 0.0
        %1062 = vmatpush1.msra.mxu0 0.0
        %1063 = vmatprep.subr.mxu0 0.0
        %1064 = vmatpush1.msra.mxu0 0.0
        %1065 = vmatprep.subr.mxu0 0.0
        %1066 = vmatpush1.msra.mxu0 0.0
        %1067 = vmatprep.subr.mxu0 0.0
        %1068 = vmatpush1.msra.mxu0 0.0
        %1069 = vmatprep.subr.mxu0 0.0
        %1070 = vmatpush1.msra.mxu0 0.0
        %1071 = vmatprep.subr.mxu0 0.0
        %1072 = vmatpush1.msra.mxu0 0.0
        %1073 = vmatprep.subr.mxu0 0.0
        %1074 = vmatpush1.msra.mxu0 0.0
        %1075 = vmatprep.subr.mxu0 0.0
        %1076 = vmatpush1.msra.mxu0 0.0
        %1077 = vmatprep.mubr.f32.mxu0 0.0
        %1078 = vmatmul.mubr.f32.gmra.mrb[0].mxu0 %v1011
        %v1079 = vpop.f32.mrb[0].mxu0
        %v1080 = vadd.f32 %v1008, %v1079
        %v1081 = vpop.f32.mrb[0].mxu0
        %v1082 = vadd.f32 %v1008, %v1081
        %1083 = vdwg.mxu0
        %v1084 = vmax.f32 %v1080, 0.0
        %v1085 = vmax.f32 %v1082, 0.0
        %v1086 = vrot.slane %v1084, 4
        %v1087 = vadd.f32 %v1084, %v1086
        %v1088 = vrot.slane %v1087, 2
        %v1089 = vadd.f32 %v1087, %v1088
        %v1090 = vrot.slane %v1089, 1
        %v1091 = vadd.f32 %v1089, %v1090
        %v1092 = vrot.slane %v1085, 4
        %v1093 = vadd.f32 %v1085, %v1092
        %v1094 = vrot.slane %v1093, 2
        %v1095 = vadd.f32 %v1093, %v1094
        %v1096 = vrot.slane %v1095, 1
        %v1097 = vadd.f32 %v1095, %v1096
        %v1098 = vrcp.pop 8.0
        %v1099 = vmul.f32 %v1091, %v1098
        %v1100 = vmul.f32 %v1097, %v1098
        %v1101 = vrot.slane %v1084, 4
        %v1102 = vmax.f32 %v1084, %v1101
        %v1103 = vrot.slane %v1102, 2
        %v1104 = vmax.f32 %v1102, %v1103
        %v1105 = vrot.slane %v1104, 1
        %v1106 = vmax.f32 %v1104, %v1105
        %v1107 = vrot.slane %v1085, 4
        %v1108 = vmax.f32 %v1085, %v1107
        %v1109 = vrot.slane %v1108, 2
        %v1110 = vmax.f32 %v1108, %v1109
        %v1111 = vrot.slane %v1110, 1
        %v1112 = vmax.f32 %v1110, %v1111
        %s1113 = sld [smem:[#allocation2]]
        %s1114 = sld [smem:[#allocation2 + $0x1]]
        %1116 = vrot.lane.b32.xlu0 %v1100, 17
        %v1117 = vpop.permute.xlu0 %1116
        %1120 = vrot.lane.b32.xlu0 %v1099, 17
        %v1121 = vpop.permute.xlu0 %1120
        %vm1122 = vcmask 138240
        %v1123 = vsel %vm1122, %v1121, %v1117
        %v1126 = vsel %vm1122, %v1117, %v1121
        %v1127 = vstv %s1113
        %v1128 = vmul.f32 %v1127, %v1126
        %v1129 = vmul.f32 %v1127, %v1123
        %1131 = vrot.lane.b32.xlu0 %v1112, 17
        %v1132 = vpop.permute.xlu0 %1131
        %1135 = vrot.lane.b32.xlu0 %v1106, 17
        %v1136 = vpop.permute.xlu0 %1135
        %v1137 = vsel %vm1122, %v1136, %v1132
        %v1140 = vsel %vm1122, %v1132, %v1136
        %v1141 = vstv %s1114
        %v1142 = vmul.f32 %v1141, %v1140
        %v1143 = vmul.f32 %v1141, %v1137
        %v1144 = vadd.f32 %v1128, %v1142
        %v1145 = vadd.f32 %v1129, %v1143
        %v1146 = vld [vmem:[%s2] sm:$0x3]
        %v1148 = vlaneseq
        %v1149 = vshrl.u32 %v1148, 7
        %v1150 = vsub.s32 0, %v1149
        %v1151 = vrot.slane %v1146, %v1150
        %v1152 = vlaneseq
        %v1153 = vshrl.u32 %v1152, 7
        %v1154 = vsub.s32 1, %v1153
        %v1155 = vrot.slane %v1146, %v1154
        %v1158 = vmul.f32 %v1144, %v1151
        %v1159 = vmul.f32 %v1145, %v1155
        %v1160 = vadd.f32 %v1158, 0.0
        %v1161 = vadd.f32 %v1159, 0.0
        %s1162 = sld [smem:[#allocation2 + $0x2]]
        %s1163 = sld [smem:[#allocation2 + $0x3]]
        %1164 = vrot.lane.b32.xlu0 %v1100, 16
        %v1165 = vpop.permute.xlu0 %1164
        %1167 = vrot.lane.b32.xlu0 %v1099, 16
        %v1168 = vpop.permute.xlu0 %1167
        %v1169 = vsel %vm636, %v1168, %v1165
        %v1172 = vsel %vm636, %v1165, %v1168
        %v1173 = vstv %s1162
        %v1174 = vmul.f32 %v1173, %v1172
        %v1175 = vmul.f32 %v1173, %v1169
        %1176 = vrot.lane.b32.xlu0 %v1112, 16
        %v1177 = vpop.permute.xlu0 %1176
        %1179 = vrot.lane.b32.xlu0 %v1106, 16
        %v1180 = vpop.permute.xlu0 %1179
        %v1181 = vsel %vm636, %v1180, %v1177
        %v1184 = vsel %vm636, %v1177, %v1180
        %v1185 = vstv %s1163
        %v1186 = vmul.f32 %v1185, %v1184
        %v1187 = vmul.f32 %v1185, %v1181
        %v1188 = vadd.f32 %v1174, %v1186
        %v1189 = vadd.f32 %v1175, %v1187
        %s1190 = scalar_lea.vmem %s2, 2
        %v1191 = vld [vmem:[%s1190] sm:$0x3]
        %v1193 = vlaneseq
        %v1194 = vshrl.u32 %v1193, 7
        %v1195 = vsub.s32 0, %v1194
        %v1196 = vrot.slane %v1191, %v1195
        %v1197 = vlaneseq
        %v1198 = vshrl.u32 %v1197, 7
        %v1199 = vsub.s32 1, %v1198
        %v1200 = vrot.slane %v1191, %v1199
        %v1203 = vmul.f32 %v1188, %v1196
        %v1204 = vmul.f32 %v1189, %v1200
        %v1205 = vadd.f32 %v1160, %v1203
        %v1206 = vadd.f32 %v1161, %v1204
        %s1207 = sld [smem:[#allocation2 + $0x4]]
        %s1208 = sld [smem:[#allocation2 + $0x5]]
        %1209 = vrot.lane.b32.xlu0 %v1100, 15
        %v1210 = vpop.permute.xlu0 %1209
        %1212 = vrot.lane.b32.xlu0 %v1099, 15
        %v1213 = vpop.permute.xlu0 %1212
        %vm1214 = vcmask 121856
        %v1215 = vsel %vm1214, %v1213, %v1210
        %v1218 = vsel %vm1214, %v1210, %v1213
        %v1219 = vstv %s1207
        %v1220 = vmul.f32 %v1219, %v1218
        %v1221 = vmul.f32 %v1219, %v1215
        %1222 = vrot.lane.b32.xlu0 %v1112, 15
        %v1223 = vpop.permute.xlu0 %1222
        %1225 = vrot.lane.b32.xlu0 %v1106, 15
        %v1226 = vpop.permute.xlu0 %1225
        %v1227 = vsel %vm1214, %v1226, %v1223
        %v1230 = vsel %vm1214, %v1223, %v1226
        %v1231 = vstv %s1208
        %v1232 = vmul.f32 %v1231, %v1230
        %v1233 = vmul.f32 %v1231, %v1227
        %v1234 = vadd.f32 %v1220, %v1232
        %v1235 = vadd.f32 %v1221, %v1233
        %s1236 = scalar_lea.vmem %s2, 4
        %v1237 = vld [vmem:[%s1236] sm:$0x3]
        %v1239 = vlaneseq
        %v1240 = vshrl.u32 %v1239, 7
        %v1241 = vsub.s32 0, %v1240
        %v1242 = vrot.slane %v1237, %v1241
        %v1243 = vlaneseq
        %v1244 = vshrl.u32 %v1243, 7
        %v1245 = vsub.s32 1, %v1244
        %v1246 = vrot.slane %v1237, %v1245
        %v1249 = vmul.f32 %v1234, %v1242
        %v1250 = vmul.f32 %v1235, %v1246
        %v1251 = vadd.f32 %v1205, %v1249
        %v1252 = vadd.f32 %v1206, %v1250
        %s1253 = sld [smem:[#allocation2 + $0x6]]
        %s1254 = sld [smem:[#allocation2 + $0x7]]
        %1255 = vrot.lane.b32.xlu0 %v1100, 1
        %v1256 = vpop.permute.xlu0 %1255
        %1258 = vrot.lane.b32.xlu0 %v1099, 1
        %v1259 = vpop.permute.xlu0 %1258
        %vm1260 = vcmask 7168
        %v1261 = vsel %vm1260, %v1259, %v1256
        %v1264 = vsel %vm1260, %v1256, %v1259
        %v1265 = vstv %s1253
        %v1266 = vmul.f32 %v1265, %v1264
        %v1267 = vmul.f32 %v1265, %v1261
        %1268 = vrot.lane.b32.xlu0 %v1112, 1
        %v1269 = vpop.permute.xlu0 %1268
        %1271 = vrot.lane.b32.xlu0 %v1106, 1
        %v1272 = vpop.permute.xlu0 %1271
        %v1273 = vsel %vm1260, %v1272, %v1269
        %v1276 = vsel %vm1260, %v1269, %v1272
        %v1277 = vstv %s1254
        %v1278 = vmul.f32 %v1277, %v1276
        %v1279 = vmul.f32 %v1277, %v1273
        %v1280 = vadd.f32 %v1266, %v1278
        %v1281 = vadd.f32 %v1267, %v1279
        %s1282 = scalar_lea.vmem %s2, 6
        %v1283 = vld [vmem:[%s1282] sm:$0x3]
        %v1285 = vlaneseq
        %v1286 = vshrl.u32 %v1285, 7
        %v1287 = vsub.s32 0, %v1286
        %v1288 = vrot.slane %v1283, %v1287
        %v1289 = vlaneseq
        %v1290 = vshrl.u32 %v1289, 7
        %v1291 = vsub.s32 1, %v1290
        %v1292 = vrot.slane %v1283, %v1291
        %v1295 = vmul.f32 %v1280, %v1288
        %v1296 = vmul.f32 %v1281, %v1292
        %v1297 = vadd.f32 %v1251, %v1295
        %v1298 = vadd.f32 %v1252, %v1296
        %s1299 = sld [smem:[#allocation2 + $0x8]]
        %s1300 = sld [smem:[#allocation2 + $0x9]]
        %v1301 = vstv %s1299
        %v1302 = vmul.f32 %v1301, %v1099
        %v1303 = vmul.f32 %v1301, %v1100
        %v1304 = vadd.f32 %v1297, %v1302
        %v1305 = vadd.f32 %v1298, %v1303
        %v1306 = vstv %s1300
        %v1307 = vmul.f32 %v1306, %v1106
        %v1308 = vmul.f32 %v1306, %v1112
        %v1309 = vadd.f32 %v1304, %v1307
        %v1310 = vadd.f32 %v1305, %v1308
        %s1311 = sld [smem:[#allocation2 + $0xa]]
        %s1312 = sld [smem:[#allocation2 + $0xb]]
        %1313 = vrot.lane.b32.xlu0 %v1099, 127
        %v1314 = vpop.permute.xlu0 %1313
        %1315 = vrot.lane.b32.xlu0 %v1100, 127
        %v1316 = vpop.permute.xlu0 %1315
        %vm1317 = vcmask 1039360
        %v1318 = vsel %vm1317, %v1314, %v1316
        %v1322 = vsel %vm1317, %v1316, %v1314
        %v1323 = vstv %s1311
        %v1324 = vmul.f32 %v1323, %v1318
        %v1325 = vmul.f32 %v1323, %v1322
        %1326 = vrot.lane.b32.xlu0 %v1106, 127
        %v1327 = vpop.permute.xlu0 %1326
        %1328 = vrot.lane.b32.xlu0 %v1112, 127
        %v1329 = vpop.permute.xlu0 %1328
        %v1330 = vsel %vm1317, %v1327, %v1329
        %v1334 = vsel %vm1317, %v1329, %v1327
        %v1335 = vstv %s1312
        %v1336 = vmul.f32 %v1335, %v1330
        %v1337 = vmul.f32 %v1335, %v1334
        %v1338 = vadd.f32 %v1324, %v1336
        %v1339 = vadd.f32 %v1325, %v1337
        %s1340 = scalar_lea.vmem %s2, 10
        %v1341 = vld [vmem:[%s1340] sm:$0x3]
        %v1343 = vlaneseq
        %v1344 = vshrl.u32 %v1343, 7
        %v1345 = vsub.s32 0, %v1344
        %v1346 = vrot.slane %v1341, %v1345
        %v1347 = vlaneseq
        %v1348 = vshrl.u32 %v1347, 7
        %v1349 = vsub.s32 1, %v1348
        %v1350 = vrot.slane %v1341, %v1349
        %v1353 = vmul.f32 %v1338, %v1346
        %v1354 = vmul.f32 %v1339, %v1350
        %v1355 = vadd.f32 %v1309, %v1353
        %v1356 = vadd.f32 %v1310, %v1354
        %s1357 = sld [smem:[#allocation2 + $0xc]]
        %s1358 = sld [smem:[#allocation2 + $0xd]]
        %1359 = vrot.lane.b32.xlu0 %v1099, 113
        %v1360 = vpop.permute.xlu0 %1359
        %1361 = vrot.lane.b32.xlu0 %v1100, 113
        %v1362 = vpop.permute.xlu0 %1361
        %vm1363 = vcmask 924672
        %v1364 = vsel %vm1363, %v1360, %v1362
        %v1368 = vsel %vm1363, %v1362, %v1360
        %v1369 = vstv %s1357
        %v1370 = vmul.f32 %v1369, %v1364
        %v1371 = vmul.f32 %v1369, %v1368
        %1372 = vrot.lane.b32.xlu0 %v1106, 113
        %v1373 = vpop.permute.xlu0 %1372
        %1374 = vrot.lane.b32.xlu0 %v1112, 113
        %v1375 = vpop.permute.xlu0 %1374
        %v1376 = vsel %vm1363, %v1373, %v1375
        %v1380 = vsel %vm1363, %v1375, %v1373
        %v1381 = vstv %s1358
        %v1382 = vmul.f32 %v1381, %v1376
        %v1383 = vmul.f32 %v1381, %v1380
        %v1384 = vadd.f32 %v1370, %v1382
        %v1385 = vadd.f32 %v1371, %v1383
        %s1386 = scalar_lea.vmem %s2, 12
        %v1387 = vld [vmem:[%s1386] sm:$0x3]
        %v1389 = vlaneseq
        %v1390 = vshrl.u32 %v1389, 7
        %v1391 = vsub.s32 0, %v1390
        %v1392 = vrot.slane %v1387, %v1391
        %v1393 = vlaneseq
        %v1394 = vshrl.u32 %v1393, 7
        %v1395 = vsub.s32 1, %v1394
        %v1396 = vrot.slane %v1387, %v1395
        %v1399 = vmul.f32 %v1384, %v1392
        %v1400 = vmul.f32 %v1385, %v1396
        %v1401 = vadd.f32 %v1355, %v1399
        %v1402 = vadd.f32 %v1356, %v1400
        %s1403 = sld [smem:[#allocation2 + $0xe]]
        %s1404 = sld [smem:[#allocation2 + $0xf]]
        %1405 = vrot.lane.b32.xlu0 %v1099, 112
        %v1406 = vpop.permute.xlu0 %1405
        %1407 = vrot.lane.b32.xlu0 %v1100, 112
        %v1408 = vpop.permute.xlu0 %1407
        %vm1409 = vcmask 916480
        %v1410 = vsel %vm1409, %v1406, %v1408
        %v1414 = vsel %vm1409, %v1408, %v1406
        %v1415 = vstv %s1403
        %v1416 = vmul.f32 %v1415, %v1410
        %v1417 = vmul.f32 %v1415, %v1414
        %1418 = vrot.lane.b32.xlu0 %v1106, 112
        %v1419 = vpop.permute.xlu0 %1418
        %1420 = vrot.lane.b32.xlu0 %v1112, 112
        %v1421 = vpop.permute.xlu0 %1420
        %v1422 = vsel %vm1409, %v1419, %v1421
        %v1426 = vsel %vm1409, %v1421, %v1419
        %v1427 = vstv %s1404
        %v1428 = vmul.f32 %v1427, %v1422
        %v1429 = vmul.f32 %v1427, %v1426
        %v1430 = vadd.f32 %v1416, %v1428
        %v1431 = vadd.f32 %v1417, %v1429
        %s1432 = scalar_lea.vmem %s2, 14
        %v1433 = vld [vmem:[%s1432] sm:$0x3]
        %v1435 = vlaneseq
        %v1436 = vshrl.u32 %v1435, 7
        %v1437 = vsub.s32 0, %v1436
        %v1438 = vrot.slane %v1433, %v1437
        %v1439 = vlaneseq
        %v1440 = vshrl.u32 %v1439, 7
        %v1441 = vsub.s32 1, %v1440
        %v1442 = vrot.slane %v1433, %v1441
        %v1445 = vmul.f32 %v1430, %v1438
        %v1446 = vmul.f32 %v1431, %v1442
        %v1447 = vadd.f32 %v1401, %v1445
        %v1448 = vadd.f32 %v1402, %v1446
        %s1449 = sld [smem:[#allocation2 + $0x10]]
        %s1450 = sld [smem:[#allocation2 + $0x11]]
        %1451 = vrot.lane.b32.xlu0 %v1099, 111
        %v1452 = vpop.permute.xlu0 %1451
        %1453 = vrot.lane.b32.xlu0 %v1100, 111
        %v1454 = vpop.permute.xlu0 %1453
        %vm1455 = vcmask 908288
        %v1456 = vsel %vm1455, %v1452, %v1454
        %v1460 = vsel %vm1455, %v1454, %v1452
        %v1461 = vstv %s1449
        %v1462 = vmul.f32 %v1461, %v1456
        %v1463 = vmul.f32 %v1461, %v1460
        %1464 = vrot.lane.b32.xlu0 %v1106, 111
        %v1465 = vpop.permute.xlu0 %1464
        %1466 = vrot.lane.b32.xlu0 %v1112, 111
        %v1467 = vpop.permute.xlu0 %1466
        %v1468 = vsel %vm1455, %v1465, %v1467
        %v1472 = vsel %vm1455, %v1467, %v1465
        %v1473 = vstv %s1450
        %v1474 = vmul.f32 %v1473, %v1468
        %v1475 = vmul.f32 %v1473, %v1472
        %v1476 = vadd.f32 %v1462, %v1474
        %v1477 = vadd.f32 %v1463, %v1475
        %s1478 = scalar_lea.vmem %s2, 16
        %v1479 = vld [vmem:[%s1478] sm:$0x3]
        %v1481 = vlaneseq
        %v1482 = vshrl.u32 %v1481, 7
        %v1483 = vsub.s32 0, %v1482
        %v1484 = vrot.slane %v1479, %v1483
        %v1485 = vlaneseq
        %v1486 = vshrl.u32 %v1485, 7
        %v1487 = vsub.s32 1, %v1486
        %v1488 = vrot.slane %v1479, %v1487
        %v1491 = vmul.f32 %v1476, %v1484
        %v1492 = vmul.f32 %v1477, %v1488
        %v1493 = vadd.f32 %v1447, %v1491
        %v1494 = vadd.f32 %v1448, %v1492
        %v1495 = vxor.u32 %v1493, 2147483648
        %v1496 = vxor.u32 %v1494, 2147483648
        %v1497 = vmul.f32 %v1495, 1.442695
        %v1498 = vpow.pop %v1497
        %v1499 = vmul.f32 %v1496, 1.442695
        %v1500 = vpow.pop %v1499
        %v1501 = vadd.f32 %v1498, 1.0
        %v1502 = vadd.f32 %v1500, 1.0
        %v1503 = vrcp.pop %v1501
        %v1504 = vmul.f32 1.0, %v1503
        %v1505 = vrcp.pop %v1502
        %v1506 = vmul.f32 1.0, %v1505
        %1511 = vrot.lane.b32.xlu0 %v996, 17
        %v1512 = vpop.permute.xlu0 %1511
        %1513 = vrot.lane.b32.xlu0 %v998, 17
        %v1514 = vpop.permute.xlu0 %1513
        %1515 = vrot.lane.b32.xlu0 %v1000, 17
        %v1516 = vpop.permute.xlu0 %1515
        %1517 = vrot.lane.b32.xlu0 %v1002, 17
        %v1518 = vpop.permute.xlu0 %1517
        %1527 = vrot.lane.b32.xlu0 %v995, 17
        %v1528 = vpop.permute.xlu0 %1527
        %1529 = vrot.lane.b32.xlu0 %v997, 17
        %v1530 = vpop.permute.xlu0 %1529
        %1531 = vrot.lane.b32.xlu0 %v999, 17
        %v1532 = vpop.permute.xlu0 %1531
        %1533 = vrot.lane.b32.xlu0 %v1001, 17
        %v1534 = vpop.permute.xlu0 %1533
        %v1535 = vsel %vm1122, %v1528, %v1512
        %v1536 = vsel %vm1122, %v1530, %v1514
        %v1537 = vsel %vm1122, %v1532, %v1516
        %v1538 = vsel %vm1122, %v1534, %v1518
        %v1547 = vsel %vm1122, %v1512, %v1528
        %v1548 = vsel %vm1122, %v1514, %v1530
        %v1549 = vsel %vm1122, %v1516, %v1532
        %v1550 = vsel %vm1122, %v1518, %v1534
        %v1551 = vmul.f32 %v1547, %v1151
        %v1552 = vmul.f32 %v1535, %v1155
        %v1553 = vmul.f32 %v1548, %v1151
        %v1554 = vmul.f32 %v1536, %v1155
        %v1555 = vmul.f32 %v1549, %v1151
        %v1556 = vmul.f32 %v1537, %v1155
        %v1557 = vmul.f32 %v1550, %v1151
        %v1558 = vmul.f32 %v1538, %v1155
        %v1559 = vld [vmem:[%s14] sm:$0xff]
        %v1560 = vld [vmem:[%s14 + $0x8] sm:$0xff]
        %v1561 = vld [vmem:[%s14 + $0x10] sm:$0xff]
        %v1562 = vld [vmem:[%s14 + $0x18] sm:$0xff]
        %1563 = vrot.lane.b32.xlu0 %v996, 16
        %v1564 = vpop.permute.xlu0 %1563
        %1565 = vrot.lane.b32.xlu0 %v998, 16
        %v1566 = vpop.permute.xlu0 %1565
        %1567 = vrot.lane.b32.xlu0 %v1000, 16
        %v1568 = vpop.permute.xlu0 %1567
        %1569 = vrot.lane.b32.xlu0 %v1002, 16
        %v1570 = vpop.permute.xlu0 %1569
        %1575 = vrot.lane.b32.xlu0 %v995, 16
        %v1576 = vpop.permute.xlu0 %1575
        %1577 = vrot.lane.b32.xlu0 %v997, 16
        %v1578 = vpop.permute.xlu0 %1577
        %1579 = vrot.lane.b32.xlu0 %v999, 16
        %v1580 = vpop.permute.xlu0 %1579
        %1581 = vrot.lane.b32.xlu0 %v1001, 16
        %v1582 = vpop.permute.xlu0 %1581
        %v1583 = vsel %vm636, %v1576, %v1564
        %v1584 = vsel %vm636, %v1578, %v1566
        %v1585 = vsel %vm636, %v1580, %v1568
        %v1586 = vsel %vm636, %v1582, %v1570
        %v1595 = vsel %vm636, %v1564, %v1576
        %v1596 = vsel %vm636, %v1566, %v1578
        %v1597 = vsel %vm636, %v1568, %v1580
        %v1598 = vsel %vm636, %v1570, %v1582
        %v1599 = vmul.f32 %v1595, %v1196
        %v1600 = vmul.f32 %v1583, %v1200
        %v1601 = vmul.f32 %v1596, %v1196
        %v1602 = vmul.f32 %v1584, %v1200
        %v1603 = vmul.f32 %v1597, %v1196
        %v1604 = vmul.f32 %v1585, %v1200
        %v1605 = vmul.f32 %v1598, %v1196
        %v1606 = vmul.f32 %v1586, %v1200
        %s1607 = scalar_lea.vmem %s14, 32
        %v1608 = vld [vmem:[%s1607] sm:$0xff]
        %v1609 = vld [vmem:[%s1607 + $0x8] sm:$0xff]
        %v1610 = vld [vmem:[%s1607 + $0x10] sm:$0xff]
        %v1611 = vld [vmem:[%s1607 + $0x18] sm:$0xff]
        %v1613 = vsel %vm867, %v1608, 0
        %v1616 = vsel %vm867, %v1609, 0
        %v1619 = vsel %vm867, %v1610, 0
        %v1622 = vsel %vm867, %v1611, 0
        %1624 = vmatprep.subr.mxu0 %v1600
        %1625 = vmatpush1.msra.mxu0 %v1599
        %1626 = vmatprep.subr.mxu0 %v1602
        %1627 = vmatpush1.msra.mxu0 %v1601
        %1628 = vmatprep.subr.mxu0 %v1604
        %1629 = vmatpush1.msra.mxu0 %v1603
        %1630 = vmatprep.subr.mxu0 %v1606
        %1631 = vmatpush1.msra.mxu0 %v1605
        %1632 = vmatprep.subr.mxu0 0.0
        %1633 = vmatpush1.msra.mxu0 0.0
        %1634 = vmatprep.subr.mxu0 0.0
        %1635 = vmatpush1.msra.mxu0 0.0
        %1636 = vmatprep.subr.mxu0 0.0
        %1637 = vmatpush1.msra.mxu0 0.0
        %1638 = vmatprep.subr.mxu0 0.0
        %1639 = vmatpush1.msra.mxu0 0.0
        %1640 = vmatprep.subr.mxu0 0.0
        %1641 = vmatpush1.msra.mxu0 0.0
        %1642 = vmatprep.subr.mxu0 0.0
        %1643 = vmatpush1.msra.mxu0 0.0
        %1644 = vmatprep.subr.mxu0 0.0
        %1645 = vmatpush1.msra.mxu0 0.0
        %1646 = vmatprep.subr.mxu0 0.0
        %1647 = vmatpush1.msra.mxu0 0.0
        %1648 = vmatprep.subr.mxu0 0.0
        %1649 = vmatpush1.msra.mxu0 0.0
        %1650 = vmatprep.subr.mxu0 0.0
        %1651 = vmatpush1.msra.mxu0 0.0
        %1652 = vmatprep.subr.mxu0 0.0
        %1653 = vmatpush1.msra.mxu0 0.0
        %1654 = vmatprep.subr.mxu0 0.0
        %1655 = vmatpush1.msra.mxu0 0.0
        %1656 = vmatprep.subr.mxu0 0.0
        %1657 = vmatpush1.msra.mxu0 0.0
        %1658 = vmatprep.subr.mxu0 0.0
        %1659 = vmatpush1.msra.mxu0 0.0
        %1660 = vmatprep.subr.mxu0 0.0
        %1661 = vmatpush1.msra.mxu0 0.0
        %1662 = vmatprep.subr.mxu0 0.0
        %1663 = vmatpush1.msra.mxu0 0.0
        %1664 = vmatprep.subr.mxu0 0.0
        %1665 = vmatpush1.msra.mxu0 0.0
        %1666 = vmatprep.subr.mxu0 0.0
        %1667 = vmatpush1.msra.mxu0 0.0
        %1668 = vmatprep.subr.mxu0 0.0
        %1669 = vmatpush1.msra.mxu0 0.0
        %1670 = vmatprep.subr.mxu0 0.0
        %1671 = vmatpush1.msra.mxu0 0.0
        %1672 = vmatprep.subr.mxu0 0.0
        %1673 = vmatpush1.msra.mxu0 0.0
        %1674 = vmatprep.subr.mxu0 0.0
        %1675 = vmatpush1.msra.mxu0 0.0
        %1676 = vmatprep.subr.mxu0 0.0
        %1677 = vmatpush1.msra.mxu0 0.0
        %1678 = vmatprep.subr.mxu0 0.0
        %1679 = vmatpush1.msra.mxu0 0.0
        %1680 = vmatprep.subr.mxu0 0.0
        %1681 = vmatpush1.msra.mxu0 0.0
        %1682 = vmatprep.subr.mxu0 0.0
        %1683 = vmatpush1.msra.mxu0 0.0
        %1684 = vmatprep.subr.mxu0 0.0
        %1685 = vmatpush1.msra.mxu0 0.0
        %1686 = vmatprep.subr.mxu0 0.0
        %1687 = vmatpush1.msra.mxu0 0.0
        %1688 = vmatprep.mubr.f32.mxu0 0.0
        %1689 = vmatmul.mubr.f32.gmra.mrb[0].mxu0 %v1613
        %v1690 = vpop.f32.mrb[0].mxu0
        %v1691 = vadd.f32 0.0, %v1690
        %v1692 = vpop.f32.mrb[0].mxu0
        %v1693 = vadd.f32 0.0, %v1692
        %1694 = vmatprep.mubr.f32.mxu0 0.0
        %1695 = vmatmul.mubr.f32.gmra.mrb[0].mxu0 %v1616
        %v1696 = vpop.f32.mrb[0].mxu0
        %v1697 = vadd.f32 0.0, %v1696
        %v1698 = vpop.f32.mrb[0].mxu0
        %v1699 = vadd.f32 0.0, %v1698
        %1700 = vmatprep.mubr.f32.mxu0 0.0
        %1701 = vmatmul.mubr.f32.gmra.mrb[0].mxu0 %v1619
        %v1702 = vpop.f32.mrb[0].mxu0
        %v1703 = vadd.f32 0.0, %v1702
        %v1704 = vpop.f32.mrb[0].mxu0
        %v1705 = vadd.f32 0.0, %v1704
        %1706 = vmatprep.mubr.f32.mxu0 0.0
        %1707 = vmatmul.mubr.f32.gmra.mrb[0].mxu0 %v1622
        %v1708 = vpop.f32.mrb[0].mxu0
        %v1709 = vadd.f32 0.0, %v1708
        %v1710 = vpop.f32.mrb[0].mxu0
        %v1711 = vadd.f32 0.0, %v1710
        %1712 = vdwg.mxu0
        %v1714 = vsel %vm867, %v1559, 0
        %v1717 = vsel %vm867, %v1560, 0
        %v1720 = vsel %vm867, %v1561, 0
        %v1723 = vsel %vm867, %v1562, 0
        %1725 = vmatprep.subr.mxu0 %v1552
        %1726 = vmatpush1.msra.mxu0 %v1551
        %1727 = vmatprep.subr.mxu0 %v1554
        %1728 = vmatpush1.msra.mxu0 %v1553
        %1729 = vmatprep.subr.mxu0 %v1556
        %1730 = vmatpush1.msra.mxu0 %v1555
        %1731 = vmatprep.subr.mxu0 %v1558
        %1732 = vmatpush1.msra.mxu0 %v1557
        %1733 = vmatprep.subr.mxu0 0.0
        %1734 = vmatpush1.msra.mxu0 0.0
        %1735 = vmatprep.subr.mxu0 0.0
        %1736 = vmatpush1.msra.mxu0 0.0
        %1737 = vmatprep.subr.mxu0 0.0
        %1738 = vmatpush1.msra.mxu0 0.0
        %1739 = vmatprep.subr.mxu0 0.0
        %1740 = vmatpush1.msra.mxu0 0.0
        %1741 = vmatprep.subr.mxu0 0.0
        %1742 = vmatpush1.msra.mxu0 0.0
        %1743 = vmatprep.subr.mxu0 0.0
        %1744 = vmatpush1.msra.mxu0 0.0
        %1745 = vmatprep.subr.mxu0 0.0
        %1746 = vmatpush1.msra.mxu0 0.0
        %1747 = vmatprep.subr.mxu0 0.0
        %1748 = vmatpush1.msra.mxu0 0.0
        %1749 = vmatprep.subr.mxu0 0.0
        %1750 = vmatpush1.msra.mxu0 0.0
        %1751 = vmatprep.subr.mxu0 0.0
        %1752 = vmatpush1.msra.mxu0 0.0
        %1753 = vmatprep.subr.mxu0 0.0
        %1754 = vmatpush1.msra.mxu0 0.0
        %1755 = vmatprep.subr.mxu0 0.0
        %1756 = vmatpush1.msra.mxu0 0.0
        %1757 = vmatprep.subr.mxu0 0.0
        %1758 = vmatpush1.msra.mxu0 0.0
        %1759 = vmatprep.subr.mxu0 0.0
        %1760 = vmatpush1.msra.mxu0 0.0
        %1761 = vmatprep.subr.mxu0 0.0
        %1762 = vmatpush1.msra.mxu0 0.0
        %1763 = vmatprep.subr.mxu0 0.0
        %1764 = vmatpush1.msra.mxu0 0.0
        %1765 = vmatprep.subr.mxu0 0.0
        %1766 = vmatpush1.msra.mxu0 0.0
        %1767 = vmatprep.subr.mxu0 0.0
        %1768 = vmatpush1.msra.mxu0 0.0
        %1769 = vmatprep.subr.mxu0 0.0
        %1770 = vmatpush1.msra.mxu0 0.0
        %1771 = vmatprep.subr.mxu0 0.0
        %1772 = vmatpush1.msra.mxu0 0.0
        %1773 = vmatprep.subr.mxu0 0.0
        %1774 = vmatpush1.msra.mxu0 0.0
        %1775 = vmatprep.subr.mxu0 0.0
        %1776 = vmatpush1.msra.mxu0 0.0
        %1777 = vmatprep.subr.mxu0 0.0
        %1778 = vmatpush1.msra.mxu0 0.0
        %1779 = vmatprep.subr.mxu0 0.0
        %1780 = vmatpush1.msra.mxu0 0.0
        %1781 = vmatprep.subr.mxu0 0.0
        %1782 = vmatpush1.msra.mxu0 0.0
        %1783 = vmatprep.subr.mxu0 0.0
        %1784 = vmatpush1.msra.mxu0 0.0
        %1785 = vmatprep.subr.mxu0 0.0
        %1786 = vmatpush1.msra.mxu0 0.0
        %1787 = vmatprep.subr.mxu0 0.0
        %1788 = vmatpush1.msra.mxu0 0.0
        %1789 = vmatprep.mubr.f32.mxu0 0.0
        %1790 = vmatmul.mubr.f32.gmra.mrb[0].mxu0 %v1714
        %v1791 = vpop.f32.mrb[0].mxu0
        %v1792 = vadd.f32 %v1691, %v1791
        %v1793 = vpop.f32.mrb[0].mxu0
        %v1794 = vadd.f32 %v1693, %v1793
        %1795 = vmatprep.mubr.f32.mxu0 0.0
        %1796 = vmatmul.mubr.f32.gmra.mrb[0].mxu0 %v1717
        %v1797 = vpop.f32.mrb[0].mxu0
        %v1798 = vadd.f32 %v1697, %v1797
        %v1799 = vpop.f32.mrb[0].mxu0
        %v1800 = vadd.f32 %v1699, %v1799
        %1801 = vmatprep.mubr.f32.mxu0 0.0
        %1802 = vmatmul.mubr.f32.gmra.mrb[0].mxu0 %v1720
        %v1803 = vpop.f32.mrb[0].mxu0
        %v1804 = vadd.f32 %v1703, %v1803
        %v1805 = vpop.f32.mrb[0].mxu0
        %v1806 = vadd.f32 %v1705, %v1805
        %1807 = vmatprep.mubr.f32.mxu0 0.0
        %1808 = vmatmul.mubr.f32.gmra.mrb[0].mxu0 %v1723
        %v1809 = vpop.f32.mrb[0].mxu0
        %v1810 = vadd.f32 %v1709, %v1809
        %v1811 = vpop.f32.mrb[0].mxu0
        %v1812 = vadd.f32 %v1711, %v1811
        %1813 = vdwg.mxu0
        %1814 = vrot.lane.b32.xlu0 %v996, 15
        %v1815 = vpop.permute.xlu0 %1814
        %1816 = vrot.lane.b32.xlu0 %v998, 15
        %v1817 = vpop.permute.xlu0 %1816
        %1818 = vrot.lane.b32.xlu0 %v1000, 15
        %v1819 = vpop.permute.xlu0 %1818
        %1820 = vrot.lane.b32.xlu0 %v1002, 15
        %v1821 = vpop.permute.xlu0 %1820
        %1826 = vrot.lane.b32.xlu0 %v995, 15
        %v1827 = vpop.permute.xlu0 %1826
        %1828 = vrot.lane.b32.xlu0 %v997, 15
        %v1829 = vpop.permute.xlu0 %1828
        %1830 = vrot.lane.b32.xlu0 %v999, 15
        %v1831 = vpop.permute.xlu0 %1830
        %1832 = vrot.lane.b32.xlu0 %v1001, 15
        %v1833 = vpop.permute.xlu0 %1832
        %v1834 = vsel %vm1214, %v1827, %v1815
        %v1835 = vsel %vm1214, %v1829, %v1817
        %v1836 = vsel %vm1214, %v1831, %v1819
        %v1837 = vsel %vm1214, %v1833, %v1821
        %v1846 = vsel %vm1214, %v1815, %v1827
        %v1847 = vsel %vm1214, %v1817, %v1829
        %v1848 = vsel %vm1214, %v1819, %v1831
        %v1849 = vsel %vm1214, %v1821, %v1833
        %v1850 = vmul.f32 %v1846, %v1242
        %v1851 = vmul.f32 %v1834, %v1246
        %v1852 = vmul.f32 %v1847, %v1242
        %v1853 = vmul.f32 %v1835, %v1246
        %v1854 = vmul.f32 %v1848, %v1242
        %v1855 = vmul.f32 %v1836, %v1246
        %v1856 = vmul.f32 %v1849, %v1242
        %v1857 = vmul.f32 %v1837, %v1246
        %s1858 = scalar_lea.vmem %s14, 64
        %v1859 = vld [vmem:[%s1858] sm:$0xff]
        %v1860 = vld [vmem:[%s1858 + $0x8] sm:$0xff]
        %v1861 = vld [vmem:[%s1858 + $0x10] sm:$0xff]
        %v1862 = vld [vmem:[%s1858 + $0x18] sm:$0xff]
        %v1864 = vsel %vm867, %v1859, 0
        %v1867 = vsel %vm867, %v1860, 0
        %v1870 = vsel %vm867, %v1861, 0
        %v1873 = vsel %vm867, %v1862, 0
        %1875 = vmatprep.subr.mxu0 %v1851
        %1876 = vmatpush1.msra.mxu0 %v1850
        %1877 = vmatprep.subr.mxu0 %v1853
        %1878 = vmatpush1.msra.mxu0 %v1852
        %1879 = vmatprep.subr.mxu0 %v1855
        %1880 = vmatpush1.msra.mxu0 %v1854
        %1881 = vmatprep.subr.mxu0 %v1857
        %1882 = vmatpush1.msra.mxu0 %v1856
        %1883 = vmatprep.subr.mxu0 0.0
        %1884 = vmatpush1.msra.mxu0 0.0
        %1885 = vmatprep.subr.mxu0 0.0
        %1886 = vmatpush1.msra.mxu0 0.0
        %1887 = vmatprep.subr.mxu0 0.0
        %1888 = vmatpush1.msra.mxu0 0.0
        %1889 = vmatprep.subr.mxu0 0.0
        %1890 = vmatpush1.msra.mxu0 0.0
        %1891 = vmatprep.subr.mxu0 0.0
        %1892 = vmatpush1.msra.mxu0 0.0
        %1893 = vmatprep.subr.mxu0 0.0
        %1894 = vmatpush1.msra.mxu0 0.0
        %1895 = vmatprep.subr.mxu0 0.0
        %1896 = vmatpush1.msra.mxu0 0.0
        %1897 = vmatprep.subr.mxu0 0.0
        %1898 = vmatpush1.msra.mxu0 0.0
        %1899 = vmatprep.subr.mxu0 0.0
        %1900 = vmatpush1.msra.mxu0 0.0
        %1901 = vmatprep.subr.mxu0 0.0
        %1902 = vmatpush1.msra.mxu0 0.0
        %1903 = vmatprep.subr.mxu0 0.0
        %1904 = vmatpush1.msra.mxu0 0.0
        %1905 = vmatprep.subr.mxu0 0.0
        %1906 = vmatpush1.msra.mxu0 0.0
        %1907 = vmatprep.subr.mxu0 0.0
        %1908 = vmatpush1.msra.mxu0 0.0
        %1909 = vmatprep.subr.mxu0 0.0
        %1910 = vmatpush1.msra.mxu0 0.0
        %1911 = vmatprep.subr.mxu0 0.0
        %1912 = vmatpush1.msra.mxu0 0.0
        %1913 = vmatprep.subr.mxu0 0.0
        %1914 = vmatpush1.msra.mxu0 0.0
        %1915 = vmatprep.subr.mxu0 0.0
        %1916 = vmatpush1.msra.mxu0 0.0
        %1917 = vmatprep.subr.mxu0 0.0
        %1918 = vmatpush1.msra.mxu0 0.0
        %1919 = vmatprep.subr.mxu0 0.0
        %1920 = vmatpush1.msra.mxu0 0.0
        %1921 = vmatprep.subr.mxu0 0.0
        %1922 = vmatpush1.msra.mxu0 0.0
        %1923 = vmatprep.subr.mxu0 0.0
        %1924 = vmatpush1.msra.mxu0 0.0
        %1925 = vmatprep.subr.mxu0 0.0
        %1926 = vmatpush1.msra.mxu0 0.0
        %1927 = vmatprep.subr.mxu0 0.0
        %1928 = vmatpush1.msra.mxu0 0.0
        %1929 = vmatprep.subr.mxu0 0.0
        %1930 = vmatpush1.msra.mxu0 0.0
        %1931 = vmatprep.subr.mxu0 0.0
        %1932 = vmatpush1.msra.mxu0 0.0
        %1933 = vmatprep.subr.mxu0 0.0
        %1934 = vmatpush1.msra.mxu0 0.0
        %1935 = vmatprep.subr.mxu0 0.0
        %1936 = vmatpush1.msra.mxu0 0.0
        %1937 = vmatprep.subr.mxu0 0.0
        %1938 = vmatpush1.msra.mxu0 0.0
        %1939 = vmatprep.mubr.f32.mxu0 0.0
        %1940 = vmatmul.mubr.f32.gmra.mrb[0].mxu0 %v1864
        %v1941 = vpop.f32.mrb[0].mxu0
        %v1942 = vadd.f32 0.0, %v1941
        %v1943 = vpop.f32.mrb[0].mxu0
        %v1944 = vadd.f32 0.0, %v1943
        %1945 = vmatprep.mubr.f32.mxu0 0.0
        %1946 = vmatmul.mubr.f32.gmra.mrb[0].mxu0 %v1867
        %v1947 = vpop.f32.mrb[0].mxu0
        %v1948 = vadd.f32 0.0, %v1947
        %v1949 = vpop.f32.mrb[0].mxu0
        %v1950 = vadd.f32 0.0, %v1949
        %1951 = vmatprep.mubr.f32.mxu0 0.0
        %1952 = vmatmul.mubr.f32.gmra.mrb[0].mxu0 %v1870
        %v1953 = vpop.f32.mrb[0].mxu0
        %v1954 = vadd.f32 0.0, %v1953
        %v1955 = vpop.f32.mrb[0].mxu0
        %v1956 = vadd.f32 0.0, %v1955
        %1957 = vmatprep.mubr.f32.mxu0 0.0
        %1958 = vmatmul.mubr.f32.gmra.mrb[0].mxu0 %v1873
        %v1959 = vpop.f32.mrb[0].mxu0
        %v1960 = vadd.f32 0.0, %v1959
        %v1961 = vpop.f32.mrb[0].mxu0
        %v1962 = vadd.f32 0.0, %v1961
        %1963 = vdwg.mxu0
        %v1964 = vadd.f32 %v1792, %v1942
        %v1965 = vadd.f32 %v1794, %v1944
        %v1966 = vadd.f32 %v1798, %v1948
        %v1967 = vadd.f32 %v1800, %v1950
        %v1968 = vadd.f32 %v1804, %v1954
        %v1969 = vadd.f32 %v1806, %v1956
        %v1970 = vadd.f32 %v1810, %v1960
        %v1971 = vadd.f32 %v1812, %v1962
        %1972 = vrot.lane.b32.xlu0 %v996, 1
        %v1973 = vpop.permute.xlu0 %1972
        %1974 = vrot.lane.b32.xlu0 %v998, 1
        %v1975 = vpop.permute.xlu0 %1974
        %1976 = vrot.lane.b32.xlu0 %v1000, 1
        %v1977 = vpop.permute.xlu0 %1976
        %1978 = vrot.lane.b32.xlu0 %v1002, 1
        %v1979 = vpop.permute.xlu0 %1978
        %1984 = vrot.lane.b32.xlu0 %v995, 1
        %v1985 = vpop.permute.xlu0 %1984
        %1986 = vrot.lane.b32.xlu0 %v997, 1
        %v1987 = vpop.permute.xlu0 %1986
        %1988 = vrot.lane.b32.xlu0 %v999, 1
        %v1989 = vpop.permute.xlu0 %1988
        %1990 = vrot.lane.b32.xlu0 %v1001, 1
        %v1991 = vpop.permute.xlu0 %1990
        %v1992 = vsel %vm1260, %v1985, %v1973
        %v1993 = vsel %vm1260, %v1987, %v1975
        %v1994 = vsel %vm1260, %v1989, %v1977
        %v1995 = vsel %vm1260, %v1991, %v1979
        %v2004 = vsel %vm1260, %v1973, %v1985
        %v2005 = vsel %vm1260, %v1975, %v1987
        %v2006 = vsel %vm1260, %v1977, %v1989
        %v2007 = vsel %vm1260, %v1979, %v1991
        %v2008 = vmul.f32 %v2004, %v1288
        %v2009 = vmul.f32 %v1992, %v1292
        %v2010 = vmul.f32 %v2005, %v1288
        %v2011 = vmul.f32 %v1993, %v1292
        %v2012 = vmul.f32 %v2006, %v1288
        %v2013 = vmul.f32 %v1994, %v1292
        %v2014 = vmul.f32 %v2007, %v1288
        %v2015 = vmul.f32 %v1995, %v1292
        %s2016 = scalar_lea.vmem %s14, 96
        %v2017 = vld [vmem:[%s2016] sm:$0xff]
        %v2018 = vld [vmem:[%s2016 + $0x8] sm:$0xff]
        %v2019 = vld [vmem:[%s2016 + $0x10] sm:$0xff]
        %v2020 = vld [vmem:[%s2016 + $0x18] sm:$0xff]
        %v2022 = vsel %vm867, %v2017, 0
        %v2025 = vsel %vm867, %v2018, 0
        %v2028 = vsel %vm867, %v2019, 0
        %v2031 = vsel %vm867, %v2020, 0
        %2033 = vmatprep.subr.mxu0 %v2009
        %2034 = vmatpush1.msra.mxu0 %v2008
        %2035 = vmatprep.subr.mxu0 %v2011
        %2036 = vmatpush1.msra.mxu0 %v2010
        %2037 = vmatprep.subr.mxu0 %v2013
        %2038 = vmatpush1.msra.mxu0 %v2012
        %2039 = vmatprep.subr.mxu0 %v2015
        %2040 = vmatpush1.msra.mxu0 %v2014
        %2041 = vmatprep.subr.mxu0 0.0
        %2042 = vmatpush1.msra.mxu0 0.0
        %2043 = vmatprep.subr.mxu0 0.0
        %2044 = vmatpush1.msra.mxu0 0.0
        %2045 = vmatprep.subr.mxu0 0.0
        %2046 = vmatpush1.msra.mxu0 0.0
        %2047 = vmatprep.subr.mxu0 0.0
        %2048 = vmatpush1.msra.mxu0 0.0
        %2049 = vmatprep.subr.mxu0 0.0
        %2050 = vmatpush1.msra.mxu0 0.0
        %2051 = vmatprep.subr.mxu0 0.0
        %2052 = vmatpush1.msra.mxu0 0.0
        %2053 = vmatprep.subr.mxu0 0.0
        %2054 = vmatpush1.msra.mxu0 0.0
        %2055 = vmatprep.subr.mxu0 0.0
        %2056 = vmatpush1.msra.mxu0 0.0
        %2057 = vmatprep.subr.mxu0 0.0
        %2058 = vmatpush1.msra.mxu0 0.0
        %2059 = vmatprep.subr.mxu0 0.0
        %2060 = vmatpush1.msra.mxu0 0.0
        %2061 = vmatprep.subr.mxu0 0.0
        %2062 = vmatpush1.msra.mxu0 0.0
        %2063 = vmatprep.subr.mxu0 0.0
        %2064 = vmatpush1.msra.mxu0 0.0
        %2065 = vmatprep.subr.mxu0 0.0
        %2066 = vmatpush1.msra.mxu0 0.0
        %2067 = vmatprep.subr.mxu0 0.0
        %2068 = vmatpush1.msra.mxu0 0.0
        %2069 = vmatprep.subr.mxu0 0.0
        %2070 = vmatpush1.msra.mxu0 0.0
        %2071 = vmatprep.subr.mxu0 0.0
        %2072 = vmatpush1.msra.mxu0 0.0
        %2073 = vmatprep.subr.mxu0 0.0
        %2074 = vmatpush1.msra.mxu0 0.0
        %2075 = vmatprep.subr.mxu0 0.0
        %2076 = vmatpush1.msra.mxu0 0.0
        %2077 = vmatprep.subr.mxu0 0.0
        %2078 = vmatpush1.msra.mxu0 0.0
        %2079 = vmatprep.subr.mxu0 0.0
        %2080 = vmatpush1.msra.mxu0 0.0
        %2081 = vmatprep.subr.mxu0 0.0
        %2082 = vmatpush1.msra.mxu0 0.0
        %2083 = vmatprep.subr.mxu0 0.0
        %2084 = vmatpush1.msra.mxu0 0.0
        %2085 = vmatprep.subr.mxu0 0.0
        %2086 = vmatpush1.msra.mxu0 0.0
        %2087 = vmatprep.subr.mxu0 0.0
        %2088 = vmatpush1.msra.mxu0 0.0
        %2089 = vmatprep.subr.mxu0 0.0
        %2090 = vmatpush1.msra.mxu0 0.0
        %2091 = vmatprep.subr.mxu0 0.0
        %2092 = vmatpush1.msra.mxu0 0.0
        %2093 = vmatprep.subr.mxu0 0.0
        %2094 = vmatpush1.msra.mxu0 0.0
        %2095 = vmatprep.subr.mxu0 0.0
        %2096 = vmatpush1.msra.mxu0 0.0
        %2097 = vmatprep.mubr.f32.mxu0 0.0
        %2098 = vmatmul.mubr.f32.gmra.mrb[0].mxu0 %v2022
        %v2099 = vpop.f32.mrb[0].mxu0
        %v2100 = vadd.f32 0.0, %v2099
        %v2101 = vpop.f32.mrb[0].mxu0
        %v2102 = vadd.f32 0.0, %v2101
        %2103 = vmatprep.mubr.f32.mxu0 0.0
        %2104 = vmatmul.mubr.f32.gmra.mrb[0].mxu0 %v2025
        %v2105 = vpop.f32.mrb[0].mxu0
        %v2106 = vadd.f32 0.0, %v2105
        %v2107 = vpop.f32.mrb[0].mxu0
        %v2108 = vadd.f32 0.0, %v2107
        %2109 = vmatprep.mubr.f32.mxu0 0.0
        %2110 = vmatmul.mubr.f32.gmra.mrb[0].mxu0 %v2028
        %v2111 = vpop.f32.mrb[0].mxu0
        %v2112 = vadd.f32 0.0, %v2111
        %v2113 = vpop.f32.mrb[0].mxu0
        %v2114 = vadd.f32 0.0, %v2113
        %2115 = vmatprep.mubr.f32.mxu0 0.0
        %2116 = vmatmul.mubr.f32.gmra.mrb[0].mxu0 %v2031
        %v2117 = vpop.f32.mrb[0].mxu0
        %v2118 = vadd.f32 0.0, %v2117
        %v2119 = vpop.f32.mrb[0].mxu0
        %v2120 = vadd.f32 0.0, %v2119
        %2121 = vdwg.mxu0
        %v2122 = vadd.f32 %v1964, %v2100
        %v2123 = vadd.f32 %v1965, %v2102
        %v2124 = vadd.f32 %v1966, %v2106
        %v2125 = vadd.f32 %v1967, %v2108
        %v2126 = vadd.f32 %v1968, %v2112
        %v2127 = vadd.f32 %v1969, %v2114
        %v2128 = vadd.f32 %v1970, %v2118
        %v2129 = vadd.f32 %v1971, %v2120
        %s2130 = scalar_lea.vmem %s14, 128
        %v2131 = vld [vmem:[%s2130] sm:$0xff]
        %v2132 = vld [vmem:[%s2130 + $0x8] sm:$0xff]
        %v2133 = vld [vmem:[%s2130 + $0x10] sm:$0xff]
        %v2134 = vld [vmem:[%s2130 + $0x18] sm:$0xff]
        %v2136 = vsel %vm867, %v2131, 0
        %v2139 = vsel %vm867, %v2132, 0
        %v2142 = vsel %vm867, %v2133, 0
        %v2145 = vsel %vm867, %v2134, 0
        %2147 = vmatprep.subr.mxu0 %v996
        %2148 = vmatpush1.msra.mxu0 %v995
        %2149 = vmatprep.subr.mxu0 %v998
        %2150 = vmatpush1.msra.mxu0 %v997
        %2151 = vmatprep.subr.mxu0 %v1000
        %2152 = vmatpush1.msra.mxu0 %v999
        %2153 = vmatprep.subr.mxu0 %v1002
        %2154 = vmatpush1.msra.mxu0 %v1001
        %2155 = vmatprep.subr.mxu0 0.0
        %2156 = vmatpush1.msra.mxu0 0.0
        %2157 = vmatprep.subr.mxu0 0.0
        %2158 = vmatpush1.msra.mxu0 0.0
        %2159 = vmatprep.subr.mxu0 0.0
        %2160 = vmatpush1.msra.mxu0 0.0
        %2161 = vmatprep.subr.mxu0 0.0
        %2162 = vmatpush1.msra.mxu0 0.0
        %2163 = vmatprep.subr.mxu0 0.0
        %2164 = vmatpush1.msra.mxu0 0.0
        %2165 = vmatprep.subr.mxu0 0.0
        %2166 = vmatpush1.msra.mxu0 0.0
        %2167 = vmatprep.subr.mxu0 0.0
        %2168 = vmatpush1.msra.mxu0 0.0
        %2169 = vmatprep.subr.mxu0 0.0
        %2170 = vmatpush1.msra.mxu0 0.0
        %2171 = vmatprep.subr.mxu0 0.0
        %2172 = vmatpush1.msra.mxu0 0.0
        %2173 = vmatprep.subr.mxu0 0.0
        %2174 = vmatpush1.msra.mxu0 0.0
        %2175 = vmatprep.subr.mxu0 0.0
        %2176 = vmatpush1.msra.mxu0 0.0
        %2177 = vmatprep.subr.mxu0 0.0
        %2178 = vmatpush1.msra.mxu0 0.0
        %2179 = vmatprep.subr.mxu0 0.0
        %2180 = vmatpush1.msra.mxu0 0.0
        %2181 = vmatprep.subr.mxu0 0.0
        %2182 = vmatpush1.msra.mxu0 0.0
        %2183 = vmatprep.subr.mxu0 0.0
        %2184 = vmatpush1.msra.mxu0 0.0
        %2185 = vmatprep.subr.mxu0 0.0
        %2186 = vmatpush1.msra.mxu0 0.0
        %2187 = vmatprep.subr.mxu0 0.0
        %2188 = vmatpush1.msra.mxu0 0.0
        %2189 = vmatprep.subr.mxu0 0.0
        %2190 = vmatpush1.msra.mxu0 0.0
        %2191 = vmatprep.subr.mxu0 0.0
        %2192 = vmatpush1.msra.mxu0 0.0
        %2193 = vmatprep.subr.mxu0 0.0
        %2194 = vmatpush1.msra.mxu0 0.0
        %2195 = vmatprep.subr.mxu0 0.0
        %2196 = vmatpush1.msra.mxu0 0.0
        %2197 = vmatprep.subr.mxu0 0.0
        %2198 = vmatpush1.msra.mxu0 0.0
        %2199 = vmatprep.subr.mxu0 0.0
        %2200 = vmatpush1.msra.mxu0 0.0
        %2201 = vmatprep.subr.mxu0 0.0
        %2202 = vmatpush1.msra.mxu0 0.0
        %2203 = vmatprep.subr.mxu0 0.0
        %2204 = vmatpush1.msra.mxu0 0.0
        %2205 = vmatprep.subr.mxu0 0.0
        %2206 = vmatpush1.msra.mxu0 0.0
        %2207 = vmatprep.subr.mxu0 0.0
        %2208 = vmatpush1.msra.mxu0 0.0
        %2209 = vmatprep.subr.mxu0 0.0
        %2210 = vmatpush1.msra.mxu0 0.0
        %2211 = vmatprep.mubr.f32.mxu0 0.0
        %2212 = vmatmul.mubr.f32.gmra.mrb[0].mxu0 %v2136
        %v2213 = vpop.f32.mrb[0].mxu0
        %v2214 = vadd.f32 0.0, %v2213
        %v2215 = vpop.f32.mrb[0].mxu0
        %v2216 = vadd.f32 0.0, %v2215
        %2217 = vmatprep.mubr.f32.mxu0 0.0
        %2218 = vmatmul.mubr.f32.gmra.mrb[0].mxu0 %v2139
        %v2219 = vpop.f32.mrb[0].mxu0
        %v2220 = vadd.f32 0.0, %v2219
        %v2221 = vpop.f32.mrb[0].mxu0
        %v2222 = vadd.f32 0.0, %v2221
        %2223 = vmatprep.mubr.f32.mxu0 0.0
        %2224 = vmatmul.mubr.f32.gmra.mrb[0].mxu0 %v2142
        %v2225 = vpop.f32.mrb[0].mxu0
        %v2226 = vadd.f32 0.0, %v2225
        %v2227 = vpop.f32.mrb[0].mxu0
        %v2228 = vadd.f32 0.0, %v2227
        %2229 = vmatprep.mubr.f32.mxu0 0.0
        %2230 = vmatmul.mubr.f32.gmra.mrb[0].mxu0 %v2145
        %v2231 = vpop.f32.mrb[0].mxu0
        %v2232 = vadd.f32 0.0, %v2231
        %v2233 = vpop.f32.mrb[0].mxu0
        %v2234 = vadd.f32 0.0, %v2233
        %2235 = vdwg.mxu0
        %v2236 = vadd.f32 %v2122, %v2214
        %v2237 = vadd.f32 %v2123, %v2216
        %v2238 = vadd.f32 %v2124, %v2220
        %v2239 = vadd.f32 %v2125, %v2222
        %v2240 = vadd.f32 %v2126, %v2226
        %v2241 = vadd.f32 %v2127, %v2228
        %v2242 = vadd.f32 %v2128, %v2232
        %v2243 = vadd.f32 %v2129, %v2234
        %2244 = vrot.lane.b32.xlu0 %v995, 127
        %v2245 = vpop.permute.xlu0 %2244
        %2246 = vrot.lane.b32.xlu0 %v996, 127
        %v2247 = vpop.permute.xlu0 %2246
        %2248 = vrot.lane.b32.xlu0 %v997, 127
        %v2249 = vpop.permute.xlu0 %2248
        %2250 = vrot.lane.b32.xlu0 %v998, 127
        %v2251 = vpop.permute.xlu0 %2250
        %2252 = vrot.lane.b32.xlu0 %v999, 127
        %v2253 = vpop.permute.xlu0 %2252
        %2254 = vrot.lane.b32.xlu0 %v1000, 127
        %v2255 = vpop.permute.xlu0 %2254
        %2256 = vrot.lane.b32.xlu0 %v1001, 127
        %v2257 = vpop.permute.xlu0 %2256
        %2258 = vrot.lane.b32.xlu0 %v1002, 127
        %v2259 = vpop.permute.xlu0 %2258
        %v2260 = vsel %vm1317, %v2245, %v2247
        %v2261 = vsel %vm1317, %v2249, %v2251
        %v2262 = vsel %vm1317, %v2253, %v2255
        %v2263 = vsel %vm1317, %v2257, %v2259
        %v2276 = vsel %vm1317, %v2247, %v2245
        %v2277 = vsel %vm1317, %v2251, %v2249
        %v2278 = vsel %vm1317, %v2255, %v2253
        %v2279 = vsel %vm1317, %v2259, %v2257
        %v2280 = vmul.f32 %v2260, %v1346
        %v2281 = vmul.f32 %v2276, %v1350
        %v2282 = vmul.f32 %v2261, %v1346
        %v2283 = vmul.f32 %v2277, %v1350
        %v2284 = vmul.f32 %v2262, %v1346
        %v2285 = vmul.f32 %v2278, %v1350
        %v2286 = vmul.f32 %v2263, %v1346
        %v2287 = vmul.f32 %v2279, %v1350
        %s2288 = scalar_lea.vmem %s14, 160
        %v2289 = vld [vmem:[%s2288] sm:$0xff]
        %v2290 = vld [vmem:[%s2288 + $0x8] sm:$0xff]
        %v2291 = vld [vmem:[%s2288 + $0x10] sm:$0xff]
        %v2292 = vld [vmem:[%s2288 + $0x18] sm:$0xff]
        %v2294 = vsel %vm867, %v2289, 0
        %v2297 = vsel %vm867, %v2290, 0
        %v2300 = vsel %vm867, %v2291, 0
        %v2303 = vsel %vm867, %v2292, 0
        %2305 = vmatprep.subr.mxu0 %v2281
        %2306 = vmatpush1.msra.mxu0 %v2280
        %2307 = vmatprep.subr.mxu0 %v2283
        %2308 = vmatpush1.msra.mxu0 %v2282
        %2309 = vmatprep.subr.mxu0 %v2285
        %2310 = vmatpush1.msra.mxu0 %v2284
        %2311 = vmatprep.subr.mxu0 %v2287
        %2312 = vmatpush1.msra.mxu0 %v2286
        %2313 = vmatprep.subr.mxu0 0.0
        %2314 = vmatpush1.msra.mxu0 0.0
        %2315 = vmatprep.subr.mxu0 0.0
        %2316 = vmatpush1.msra.mxu0 0.0
        %2317 = vmatprep.subr.mxu0 0.0
        %2318 = vmatpush1.msra.mxu0 0.0
        %2319 = vmatprep.subr.mxu0 0.0
        %2320 = vmatpush1.msra.mxu0 0.0
        %2321 = vmatprep.subr.mxu0 0.0
        %2322 = vmatpush1.msra.mxu0 0.0
        %2323 = vmatprep.subr.mxu0 0.0
        %2324 = vmatpush1.msra.mxu0 0.0
        %2325 = vmatprep.subr.mxu0 0.0
        %2326 = vmatpush1.msra.mxu0 0.0
        %2327 = vmatprep.subr.mxu0 0.0
        %2328 = vmatpush1.msra.mxu0 0.0
        %2329 = vmatprep.subr.mxu0 0.0
        %2330 = vmatpush1.msra.mxu0 0.0
        %2331 = vmatprep.subr.mxu0 0.0
        %2332 = vmatpush1.msra.mxu0 0.0
        %2333 = vmatprep.subr.mxu0 0.0
        %2334 = vmatpush1.msra.mxu0 0.0
        %2335 = vmatprep.subr.mxu0 0.0
        %2336 = vmatpush1.msra.mxu0 0.0
        %2337 = vmatprep.subr.mxu0 0.0
        %2338 = vmatpush1.msra.mxu0 0.0
        %2339 = vmatprep.subr.mxu0 0.0
        %2340 = vmatpush1.msra.mxu0 0.0
        %2341 = vmatprep.subr.mxu0 0.0
        %2342 = vmatpush1.msra.mxu0 0.0
        %2343 = vmatprep.subr.mxu0 0.0
        %2344 = vmatpush1.msra.mxu0 0.0
        %2345 = vmatprep.subr.mxu0 0.0
        %2346 = vmatpush1.msra.mxu0 0.0
        %2347 = vmatprep.subr.mxu0 0.0
        %2348 = vmatpush1.msra.mxu0 0.0
        %2349 = vmatprep.subr.mxu0 0.0
        %2350 = vmatpush1.msra.mxu0 0.0
        %2351 = vmatprep.subr.mxu0 0.0
        %2352 = vmatpush1.msra.mxu0 0.0
        %2353 = vmatprep.subr.mxu0 0.0
        %2354 = vmatpush1.msra.mxu0 0.0
        %2355 = vmatprep.subr.mxu0 0.0
        %2356 = vmatpush1.msra.mxu0 0.0
        %2357 = vmatprep.subr.mxu0 0.0
        %2358 = vmatpush1.msra.mxu0 0.0
        %2359 = vmatprep.subr.mxu0 0.0
        %2360 = vmatpush1.msra.mxu0 0.0
        %2361 = vmatprep.subr.mxu0 0.0
        %2362 = vmatpush1.msra.mxu0 0.0
        %2363 = vmatprep.subr.mxu0 0.0
        %2364 = vmatpush1.msra.mxu0 0.0
        %2365 = vmatprep.subr.mxu0 0.0
        %2366 = vmatpush1.msra.mxu0 0.0
        %2367 = vmatprep.subr.mxu0 0.0
        %2368 = vmatpush1.msra.mxu0 0.0
        %2369 = vmatprep.mubr.f32.mxu0 0.0
        %2370 = vmatmul.mubr.f32.gmra.mrb[0].mxu0 %v2294
        %v2371 = vpop.f32.mrb[0].mxu0
        %v2372 = vadd.f32 0.0, %v2371
        %v2373 = vpop.f32.mrb[0].mxu0
        %v2374 = vadd.f32 0.0, %v2373
        %2375 = vmatprep.mubr.f32.mxu0 0.0
        %2376 = vmatmul.mubr.f32.gmra.mrb[0].mxu0 %v2297
        %v2377 = vpop.f32.mrb[0].mxu0
        %v2378 = vadd.f32 0.0, %v2377
        %v2379 = vpop.f32.mrb[0].mxu0
        %v2380 = vadd.f32 0.0, %v2379
        %2381 = vmatprep.mubr.f32.mxu0 0.0
        %2382 = vmatmul.mubr.f32.gmra.mrb[0].mxu0 %v2300
        %v2383 = vpop.f32.mrb[0].mxu0
        %v2384 = vadd.f32 0.0, %v2383
        %v2385 = vpop.f32.mrb[0].mxu0
        %v2386 = vadd.f32 0.0, %v2385
        %2387 = vmatprep.mubr.f32.mxu0 0.0
        %2388 = vmatmul.mubr.f32.gmra.mrb[0].mxu0 %v2303
        %v2389 = vpop.f32.mrb[0].mxu0
        %v2390 = vadd.f32 0.0, %v2389
        %v2391 = vpop.f32.mrb[0].mxu0
        %v2392 = vadd.f32 0.0, %v2391
        %2393 = vdwg.mxu0
        %v2394 = vadd.f32 %v2236, %v2372
        %v2395 = vadd.f32 %v2237, %v2374
        %v2396 = vadd.f32 %v2238, %v2378
        %v2397 = vadd.f32 %v2239, %v2380
        %v2398 = vadd.f32 %v2240, %v2384
        %v2399 = vadd.f32 %v2241, %v2386
        %v2400 = vadd.f32 %v2242, %v2390
        %v2401 = vadd.f32 %v2243, %v2392
        %2402 = vrot.lane.b32.xlu0 %v995, 113
        %v2403 = vpop.permute.xlu0 %2402
        %2404 = vrot.lane.b32.xlu0 %v996, 113
        %v2405 = vpop.permute.xlu0 %2404
        %2406 = vrot.lane.b32.xlu0 %v997, 113
        %v2407 = vpop.permute.xlu0 %2406
        %2408 = vrot.lane.b32.xlu0 %v998, 113
        %v2409 = vpop.permute.xlu0 %2408
        %2410 = vrot.lane.b32.xlu0 %v999, 113
        %v2411 = vpop.permute.xlu0 %2410
        %2412 = vrot.lane.b32.xlu0 %v1000, 113
        %v2413 = vpop.permute.xlu0 %2412
        %2414 = vrot.lane.b32.xlu0 %v1001, 113
        %v2415 = vpop.permute.xlu0 %2414
        %2416 = vrot.lane.b32.xlu0 %v1002, 113
        %v2417 = vpop.permute.xlu0 %2416
        %v2418 = vsel %vm1363, %v2403, %v2405
        %v2419 = vsel %vm1363, %v2407, %v2409
        %v2420 = vsel %vm1363, %v2411, %v2413
        %v2421 = vsel %vm1363, %v2415, %v2417
        %v2434 = vsel %vm1363, %v2405, %v2403
        %v2435 = vsel %vm1363, %v2409, %v2407
        %v2436 = vsel %vm1363, %v2413, %v2411
        %v2437 = vsel %vm1363, %v2417, %v2415
        %v2438 = vmul.f32 %v2418, %v1392
        %v2439 = vmul.f32 %v2434, %v1396
        %v2440 = vmul.f32 %v2419, %v1392
        %v2441 = vmul.f32 %v2435, %v1396
        %v2442 = vmul.f32 %v2420, %v1392
        %v2443 = vmul.f32 %v2436, %v1396
        %v2444 = vmul.f32 %v2421, %v1392
        %v2445 = vmul.f32 %v2437, %v1396
        %s2446 = scalar_lea.vmem %s14, 192
        %v2447 = vld [vmem:[%s2446] sm:$0xff]
        %v2448 = vld [vmem:[%s2446 + $0x8] sm:$0xff]
        %v2449 = vld [vmem:[%s2446 + $0x10] sm:$0xff]
        %v2450 = vld [vmem:[%s2446 + $0x18] sm:$0xff]
        %v2452 = vsel %vm867, %v2447, 0
        %v2455 = vsel %vm867, %v2448, 0
        %v2458 = vsel %vm867, %v2449, 0
        %v2461 = vsel %vm867, %v2450, 0
        %2463 = vmatprep.subr.mxu0 %v2439
        %2464 = vmatpush1.msra.mxu0 %v2438
        %2465 = vmatprep.subr.mxu0 %v2441
        %2466 = vmatpush1.msra.mxu0 %v2440
        %2467 = vmatprep.subr.mxu0 %v2443
        %2468 = vmatpush1.msra.mxu0 %v2442
        %2469 = vmatprep.subr.mxu0 %v2445
        %2470 = vmatpush1.msra.mxu0 %v2444
        %2471 = vmatprep.subr.mxu0 0.0
        %2472 = vmatpush1.msra.mxu0 0.0
        %2473 = vmatprep.subr.mxu0 0.0
        %2474 = vmatpush1.msra.mxu0 0.0
        %2475 = vmatprep.subr.mxu0 0.0
        %2476 = vmatpush1.msra.mxu0 0.0
        %2477 = vmatprep.subr.mxu0 0.0
        %2478 = vmatpush1.msra.mxu0 0.0
        %2479 = vmatprep.subr.mxu0 0.0
        %2480 = vmatpush1.msra.mxu0 0.0
        %2481 = vmatprep.subr.mxu0 0.0
        %2482 = vmatpush1.msra.mxu0 0.0
        %2483 = vmatprep.subr.mxu0 0.0
        %2484 = vmatpush1.msra.mxu0 0.0
        %2485 = vmatprep.subr.mxu0 0.0
        %2486 = vmatpush1.msra.mxu0 0.0
        %2487 = vmatprep.subr.mxu0 0.0
        %2488 = vmatpush1.msra.mxu0 0.0
        %2489 = vmatprep.subr.mxu0 0.0
        %2490 = vmatpush1.msra.mxu0 0.0
        %2491 = vmatprep.subr.mxu0 0.0
        %2492 = vmatpush1.msra.mxu0 0.0
        %2493 = vmatprep.subr.mxu0 0.0
        %2494 = vmatpush1.msra.mxu0 0.0
        %2495 = vmatprep.subr.mxu0 0.0
        %2496 = vmatpush1.msra.mxu0 0.0
        %2497 = vmatprep.subr.mxu0 0.0
        %2498 = vmatpush1.msra.mxu0 0.0
        %2499 = vmatprep.subr.mxu0 0.0
        %2500 = vmatpush1.msra.mxu0 0.0
        %2501 = vmatprep.subr.mxu0 0.0
        %2502 = vmatpush1.msra.mxu0 0.0
        %2503 = vmatprep.subr.mxu0 0.0
        %2504 = vmatpush1.msra.mxu0 0.0
        %2505 = vmatprep.subr.mxu0 0.0
        %2506 = vmatpush1.msra.mxu0 0.0
        %2507 = vmatprep.subr.mxu0 0.0
        %2508 = vmatpush1.msra.mxu0 0.0
        %2509 = vmatprep.subr.mxu0 0.0
        %2510 = vmatpush1.msra.mxu0 0.0
        %2511 = vmatprep.subr.mxu0 0.0
        %2512 = vmatpush1.msra.mxu0 0.0
        %2513 = vmatprep.subr.mxu0 0.0
        %2514 = vmatpush1.msra.mxu0 0.0
        %2515 = vmatprep.subr.mxu0 0.0
        %2516 = vmatpush1.msra.mxu0 0.0
        %2517 = vmatprep.subr.mxu0 0.0
        %2518 = vmatpush1.msra.mxu0 0.0
        %2519 = vmatprep.subr.mxu0 0.0
        %2520 = vmatpush1.msra.mxu0 0.0
        %2521 = vmatprep.subr.mxu0 0.0
        %2522 = vmatpush1.msra.mxu0 0.0
        %2523 = vmatprep.subr.mxu0 0.0
        %2524 = vmatpush1.msra.mxu0 0.0
        %2525 = vmatprep.subr.mxu0 0.0
        %2526 = vmatpush1.msra.mxu0 0.0
        %2527 = vmatprep.mubr.f32.mxu0 0.0
        %2528 = vmatmul.mubr.f32.gmra.mrb[0].mxu0 %v2452
        %v2529 = vpop.f32.mrb[0].mxu0
        %v2530 = vadd.f32 0.0, %v2529
        %v2531 = vpop.f32.mrb[0].mxu0
        %v2532 = vadd.f32 0.0, %v2531
        %2533 = vmatprep.mubr.f32.mxu0 0.0
        %2534 = vmatmul.mubr.f32.gmra.mrb[0].mxu0 %v2455
        %v2535 = vpop.f32.mrb[0].mxu0
        %v2536 = vadd.f32 0.0, %v2535
        %v2537 = vpop.f32.mrb[0].mxu0
        %v2538 = vadd.f32 0.0, %v2537
        %2539 = vmatprep.mubr.f32.mxu0 0.0
        %2540 = vmatmul.mubr.f32.gmra.mrb[0].mxu0 %v2458
        %v2541 = vpop.f32.mrb[0].mxu0
        %v2542 = vadd.f32 0.0, %v2541
        %v2543 = vpop.f32.mrb[0].mxu0
        %v2544 = vadd.f32 0.0, %v2543
        %2545 = vmatprep.mubr.f32.mxu0 0.0
        %2546 = vmatmul.mubr.f32.gmra.mrb[0].mxu0 %v2461
        %v2547 = vpop.f32.mrb[0].mxu0
        %v2548 = vadd.f32 0.0, %v2547
        %v2549 = vpop.f32.mrb[0].mxu0
        %v2550 = vadd.f32 0.0, %v2549
        %2551 = vdwg.mxu0
        %v2552 = vadd.f32 %v2394, %v2530
        %v2553 = vadd.f32 %v2395, %v2532
        %v2554 = vadd.f32 %v2396, %v2536
        %v2555 = vadd.f32 %v2397, %v2538
        %v2556 = vadd.f32 %v2398, %v2542
        %v2557 = vadd.f32 %v2399, %v2544
        %v2558 = vadd.f32 %v2400, %v2548
        %v2559 = vadd.f32 %v2401, %v2550
        %2560 = vrot.lane.b32.xlu0 %v995, 112
        %v2561 = vpop.permute.xlu0 %2560
        %2562 = vrot.lane.b32.xlu0 %v996, 112
        %v2563 = vpop.permute.xlu0 %2562
        %2564 = vrot.lane.b32.xlu0 %v997, 112
        %v2565 = vpop.permute.xlu0 %2564
        %2566 = vrot.lane.b32.xlu0 %v998, 112
        %v2567 = vpop.permute.xlu0 %2566
        %2568 = vrot.lane.b32.xlu0 %v999, 112
        %v2569 = vpop.permute.xlu0 %2568
        %2570 = vrot.lane.b32.xlu0 %v1000, 112
        %v2571 = vpop.permute.xlu0 %2570
        %2572 = vrot.lane.b32.xlu0 %v1001, 112
        %v2573 = vpop.permute.xlu0 %2572
        %2574 = vrot.lane.b32.xlu0 %v1002, 112
        %v2575 = vpop.permute.xlu0 %2574
        %v2576 = vsel %vm1409, %v2561, %v2563
        %v2577 = vsel %vm1409, %v2565, %v2567
        %v2578 = vsel %vm1409, %v2569, %v2571
        %v2579 = vsel %vm1409, %v2573, %v2575
        %v2592 = vsel %vm1409, %v2563, %v2561
        %v2593 = vsel %vm1409, %v2567, %v2565
        %v2594 = vsel %vm1409, %v2571, %v2569
        %v2595 = vsel %vm1409, %v2575, %v2573
        %v2596 = vmul.f32 %v2576, %v1438
        %v2597 = vmul.f32 %v2592, %v1442
        %v2598 = vmul.f32 %v2577, %v1438
        %v2599 = vmul.f32 %v2593, %v1442
        %v2600 = vmul.f32 %v2578, %v1438
        %v2601 = vmul.f32 %v2594, %v1442
        %v2602 = vmul.f32 %v2579, %v1438
        %v2603 = vmul.f32 %v2595, %v1442
        %s2604 = scalar_lea.vmem %s14, 224
        %v2605 = vld [vmem:[%s2604] sm:$0xff]
        %v2606 = vld [vmem:[%s2604 + $0x8] sm:$0xff]
        %v2607 = vld [vmem:[%s2604 + $0x10] sm:$0xff]
        %v2608 = vld [vmem:[%s2604 + $0x18] sm:$0xff]
        %v2610 = vsel %vm867, %v2605, 0
        %v2613 = vsel %vm867, %v2606, 0
        %v2616 = vsel %vm867, %v2607, 0
        %v2619 = vsel %vm867, %v2608, 0
        %2621 = vmatprep.subr.mxu0 %v2597
        %2622 = vmatpush1.msra.mxu0 %v2596
        %2623 = vmatprep.subr.mxu0 %v2599
        %2624 = vmatpush1.msra.mxu0 %v2598
        %2625 = vmatprep.subr.mxu0 %v2601
        %2626 = vmatpush1.msra.mxu0 %v2600
        %2627 = vmatprep.subr.mxu0 %v2603
        %2628 = vmatpush1.msra.mxu0 %v2602
        %2629 = vmatprep.subr.mxu0 0.0
        %2630 = vmatpush1.msra.mxu0 0.0
        %2631 = vmatprep.subr.mxu0 0.0
        %2632 = vmatpush1.msra.mxu0 0.0
        %2633 = vmatprep.subr.mxu0 0.0
        %2634 = vmatpush1.msra.mxu0 0.0
        %2635 = vmatprep.subr.mxu0 0.0
        %2636 = vmatpush1.msra.mxu0 0.0
        %2637 = vmatprep.subr.mxu0 0.0
        %2638 = vmatpush1.msra.mxu0 0.0
        %2639 = vmatprep.subr.mxu0 0.0
        %2640 = vmatpush1.msra.mxu0 0.0
        %2641 = vmatprep.subr.mxu0 0.0
        %2642 = vmatpush1.msra.mxu0 0.0
        %2643 = vmatprep.subr.mxu0 0.0
        %2644 = vmatpush1.msra.mxu0 0.0
        %2645 = vmatprep.subr.mxu0 0.0
        %2646 = vmatpush1.msra.mxu0 0.0
        %2647 = vmatprep.subr.mxu0 0.0
        %2648 = vmatpush1.msra.mxu0 0.0
        %2649 = vmatprep.subr.mxu0 0.0
        %2650 = vmatpush1.msra.mxu0 0.0
        %2651 = vmatprep.subr.mxu0 0.0
        %2652 = vmatpush1.msra.mxu0 0.0
        %2653 = vmatprep.subr.mxu0 0.0
        %2654 = vmatpush1.msra.mxu0 0.0
        %2655 = vmatprep.subr.mxu0 0.0
        %2656 = vmatpush1.msra.mxu0 0.0
        %2657 = vmatprep.subr.mxu0 0.0
        %2658 = vmatpush1.msra.mxu0 0.0
        %2659 = vmatprep.subr.mxu0 0.0
        %2660 = vmatpush1.msra.mxu0 0.0
        %2661 = vmatprep.subr.mxu0 0.0
        %2662 = vmatpush1.msra.mxu0 0.0
        %2663 = vmatprep.subr.mxu0 0.0
        %2664 = vmatpush1.msra.mxu0 0.0
        %2665 = vmatprep.subr.mxu0 0.0
        %2666 = vmatpush1.msra.mxu0 0.0
        %2667 = vmatprep.subr.mxu0 0.0
        %2668 = vmatpush1.msra.mxu0 0.0
        %2669 = vmatprep.subr.mxu0 0.0
        %2670 = vmatpush1.msra.mxu0 0.0
        %2671 = vmatprep.subr.mxu0 0.0
        %2672 = vmatpush1.msra.mxu0 0.0
        %2673 = vmatprep.subr.mxu0 0.0
        %2674 = vmatpush1.msra.mxu0 0.0
        %2675 = vmatprep.subr.mxu0 0.0
        %2676 = vmatpush1.msra.mxu0 0.0
        %2677 = vmatprep.subr.mxu0 0.0
        %2678 = vmatpush1.msra.mxu0 0.0
        %2679 = vmatprep.subr.mxu0 0.0
        %2680 = vmatpush1.msra.mxu0 0.0
        %2681 = vmatprep.subr.mxu0 0.0
        %2682 = vmatpush1.msra.mxu0 0.0
        %2683 = vmatprep.subr.mxu0 0.0
        %2684 = vmatpush1.msra.mxu0 0.0
        %2685 = vmatprep.mubr.f32.mxu0 0.0
        %2686 = vmatmul.mubr.f32.gmra.mrb[0].mxu0 %v2610
        %v2687 = vpop.f32.mrb[0].mxu0
        %v2688 = vadd.f32 0.0, %v2687
        %v2689 = vpop.f32.mrb[0].mxu0
        %v2690 = vadd.f32 0.0, %v2689
        %2691 = vmatprep.mubr.f32.mxu0 0.0
        %2692 = vmatmul.mubr.f32.gmra.mrb[0].mxu0 %v2613
        %v2693 = vpop.f32.mrb[0].mxu0
        %v2694 = vadd.f32 0.0, %v2693
        %v2695 = vpop.f32.mrb[0].mxu0
        %v2696 = vadd.f32 0.0, %v2695
        %2697 = vmatprep.mubr.f32.mxu0 0.0
        %2698 = vmatmul.mubr.f32.gmra.mrb[0].mxu0 %v2616
        %v2699 = vpop.f32.mrb[0].mxu0
        %v2700 = vadd.f32 0.0, %v2699
        %v2701 = vpop.f32.mrb[0].mxu0
        %v2702 = vadd.f32 0.0, %v2701
        %2703 = vmatprep.mubr.f32.mxu0 0.0
        %2704 = vmatmul.mubr.f32.gmra.mrb[0].mxu0 %v2619
        %v2705 = vpop.f32.mrb[0].mxu0
        %v2706 = vadd.f32 0.0, %v2705
        %v2707 = vpop.f32.mrb[0].mxu0
        %v2708 = vadd.f32 0.0, %v2707
        %2709 = vdwg.mxu0
        %v2710 = vadd.f32 %v2552, %v2688
        %v2711 = vadd.f32 %v2553, %v2690
        %v2712 = vadd.f32 %v2554, %v2694
        %v2713 = vadd.f32 %v2555, %v2696
        %v2714 = vadd.f32 %v2556, %v2700
        %v2715 = vadd.f32 %v2557, %v2702
        %v2716 = vadd.f32 %v2558, %v2706
        %v2717 = vadd.f32 %v2559, %v2708
        %2718 = vrot.lane.b32.xlu0 %v995, 111
        %v2719 = vpop.permute.xlu0 %2718
        %2720 = vrot.lane.b32.xlu0 %v996, 111
        %v2721 = vpop.permute.xlu0 %2720
        %2722 = vrot.lane.b32.xlu0 %v997, 111
        %v2723 = vpop.permute.xlu0 %2722
        %2724 = vrot.lane.b32.xlu0 %v998, 111
        %v2725 = vpop.permute.xlu0 %2724
        %2726 = vrot.lane.b32.xlu0 %v999, 111
        %v2727 = vpop.permute.xlu0 %2726
        %2728 = vrot.lane.b32.xlu0 %v1000, 111
        %v2729 = vpop.permute.xlu0 %2728
        %2730 = vrot.lane.b32.xlu0 %v1001, 111
        %v2731 = vpop.permute.xlu0 %2730
        %2732 = vrot.lane.b32.xlu0 %v1002, 111
        %v2733 = vpop.permute.xlu0 %2732
        %v2734 = vsel %vm1455, %v2719, %v2721
        %v2735 = vsel %vm1455, %v2723, %v2725
        %v2736 = vsel %vm1455, %v2727, %v2729
        %v2737 = vsel %vm1455, %v2731, %v2733
        %v2750 = vsel %vm1455, %v2721, %v2719
        %v2751 = vsel %vm1455, %v2725, %v2723
        %v2752 = vsel %vm1455, %v2729, %v2727
        %v2753 = vsel %vm1455, %v2733, %v2731
        %v2754 = vmul.f32 %v2734, %v1484
        %v2755 = vmul.f32 %v2750, %v1488
        %v2756 = vmul.f32 %v2735, %v1484
        %v2757 = vmul.f32 %v2751, %v1488
        %v2758 = vmul.f32 %v2736, %v1484
        %v2759 = vmul.f32 %v2752, %v1488
        %v2760 = vmul.f32 %v2737, %v1484
        %v2761 = vmul.f32 %v2753, %v1488
        %s2762 = scalar_lea.vmem %s14, 256
        %v2763 = vld [vmem:[%s2762] sm:$0xff]
        %v2764 = vld [vmem:[%s2762 + $0x8] sm:$0xff]
        %v2765 = vld [vmem:[%s2762 + $0x10] sm:$0xff]
        %v2766 = vld [vmem:[%s2762 + $0x18] sm:$0xff]
        %v2768 = vsel %vm867, %v2763, 0
        %v2771 = vsel %vm867, %v2764, 0
        %v2774 = vsel %vm867, %v2765, 0
        %v2777 = vsel %vm867, %v2766, 0
        %2779 = vmatprep.subr.mxu0 %v2755
        %2780 = vmatpush1.msra.mxu0 %v2754
        %2781 = vmatprep.subr.mxu0 %v2757
        %2782 = vmatpush1.msra.mxu0 %v2756
        %2783 = vmatprep.subr.mxu0 %v2759
        %2784 = vmatpush1.msra.mxu0 %v2758
        %2785 = vmatprep.subr.mxu0 %v2761
        %2786 = vmatpush1.msra.mxu0 %v2760
        %2787 = vmatprep.subr.mxu0 0.0
        %2788 = vmatpush1.msra.mxu0 0.0
        %2789 = vmatprep.subr.mxu0 0.0
        %2790 = vmatpush1.msra.mxu0 0.0
        %2791 = vmatprep.subr.mxu0 0.0
        %2792 = vmatpush1.msra.mxu0 0.0
        %2793 = vmatprep.subr.mxu0 0.0
        %2794 = vmatpush1.msra.mxu0 0.0
        %2795 = vmatprep.subr.mxu0 0.0
        %2796 = vmatpush1.msra.mxu0 0.0
        %2797 = vmatprep.subr.mxu0 0.0
        %2798 = vmatpush1.msra.mxu0 0.0
        %2799 = vmatprep.subr.mxu0 0.0
        %2800 = vmatpush1.msra.mxu0 0.0
        %2801 = vmatprep.subr.mxu0 0.0
        %2802 = vmatpush1.msra.mxu0 0.0
        %2803 = vmatprep.subr.mxu0 0.0
        %2804 = vmatpush1.msra.mxu0 0.0
        %2805 = vmatprep.subr.mxu0 0.0
        %2806 = vmatpush1.msra.mxu0 0.0
        %2807 = vmatprep.subr.mxu0 0.0
        %2808 = vmatpush1.msra.mxu0 0.0
        %2809 = vmatprep.subr.mxu0 0.0
        %2810 = vmatpush1.msra.mxu0 0.0
        %2811 = vmatprep.subr.mxu0 0.0
        %2812 = vmatpush1.msra.mxu0 0.0
        %2813 = vmatprep.subr.mxu0 0.0
        %2814 = vmatpush1.msra.mxu0 0.0
        %2815 = vmatprep.subr.mxu0 0.0
        %2816 = vmatpush1.msra.mxu0 0.0
        %2817 = vmatprep.subr.mxu0 0.0
        %2818 = vmatpush1.msra.mxu0 0.0
        %2819 = vmatprep.subr.mxu0 0.0
        %2820 = vmatpush1.msra.mxu0 0.0
        %2821 = vmatprep.subr.mxu0 0.0
        %2822 = vmatpush1.msra.mxu0 0.0
        %2823 = vmatprep.subr.mxu0 0.0
        %2824 = vmatpush1.msra.mxu0 0.0
        %2825 = vmatprep.subr.mxu0 0.0
        %2826 = vmatpush1.msra.mxu0 0.0
        %2827 = vmatprep.subr.mxu0 0.0
        %2828 = vmatpush1.msra.mxu0 0.0
        %2829 = vmatprep.subr.mxu0 0.0
        %2830 = vmatpush1.msra.mxu0 0.0
        %2831 = vmatprep.subr.mxu0 0.0
        %2832 = vmatpush1.msra.mxu0 0.0
        %2833 = vmatprep.subr.mxu0 0.0
        %2834 = vmatpush1.msra.mxu0 0.0
        %2835 = vmatprep.subr.mxu0 0.0
        %2836 = vmatpush1.msra.mxu0 0.0
        %2837 = vmatprep.subr.mxu0 0.0
        %2838 = vmatpush1.msra.mxu0 0.0
        %2839 = vmatprep.subr.mxu0 0.0
        %2840 = vmatpush1.msra.mxu0 0.0
        %2841 = vmatprep.subr.mxu0 0.0
        %2842 = vmatpush1.msra.mxu0 0.0
        %2843 = vmatprep.mubr.f32.mxu0 0.0
        %2844 = vmatmul.mubr.f32.gmra.mrb[0].mxu0 %v2768
        %v2845 = vpop.f32.mrb[0].mxu0
        %v2846 = vadd.f32 0.0, %v2845
        %v2847 = vpop.f32.mrb[0].mxu0
        %v2848 = vadd.f32 0.0, %v2847
        %2849 = vmatprep.mubr.f32.mxu0 0.0
        %2850 = vmatmul.mubr.f32.gmra.mrb[0].mxu0 %v2771
        %v2851 = vpop.f32.mrb[0].mxu0
        %v2852 = vadd.f32 0.0, %v2851
        %v2853 = vpop.f32.mrb[0].mxu0
        %v2854 = vadd.f32 0.0, %v2853
        %2855 = vmatprep.mubr.f32.mxu0 0.0
        %2856 = vmatmul.mubr.f32.gmra.mrb[0].mxu0 %v2774
        %v2857 = vpop.f32.mrb[0].mxu0
        %v2858 = vadd.f32 0.0, %v2857
        %v2859 = vpop.f32.mrb[0].mxu0
        %v2860 = vadd.f32 0.0, %v2859
        %2861 = vmatprep.mubr.f32.mxu0 0.0
        %2862 = vmatmul.mubr.f32.gmra.mrb[0].mxu0 %v2777
        %v2863 = vpop.f32.mrb[0].mxu0
        %v2864 = vadd.f32 0.0, %v2863
        %v2865 = vpop.f32.mrb[0].mxu0
        %v2866 = vadd.f32 0.0, %v2865
        %2867 = vdwg.mxu0
        %v2868 = vadd.f32 %v2710, %v2846
        %v2869 = vadd.f32 %v2711, %v2848
        %v2870 = vadd.f32 %v2712, %v2852
        %v2871 = vadd.f32 %v2713, %v2854
        %v2872 = vadd.f32 %v2714, %v2858
        %v2873 = vadd.f32 %v2715, %v2860
        %v2874 = vadd.f32 %v2716, %v2864
        %v2875 = vadd.f32 %v2717, %v2866
        %v2876 = vld [vmem:[%s15] sm:$0xff]
        %v2877 = vld [vmem:[%s15 + $0x8] sm:$0xff]
        %v2878 = vld [vmem:[%s15 + $0x10] sm:$0xff]
        %v2879 = vld [vmem:[%s15 + $0x18] sm:$0xff]
        %2881 = vset.pattern.permute.xlu0 0
        %2882 = vperm.xlu0 %2881, %v2876
        %v2883 = vpop.permute.xlu0 %2882
        %2886 = vset.pattern.permute.xlu0 0
        %2887 = vperm.xlu0 %2886, %v2877
        %v2888 = vpop.permute.xlu0 %2887
        %2891 = vset.pattern.permute.xlu0 0
        %2892 = vperm.xlu0 %2891, %v2878
        %v2893 = vpop.permute.xlu0 %2892
        %2896 = vset.pattern.permute.xlu0 0
        %2897 = vperm.xlu0 %2896, %v2879
        %v2898 = vpop.permute.xlu0 %2897
        %v2900 = vadd.f32 %v2868, %v2883
        %v2901 = vadd.f32 %v2869, %v2883
        %v2902 = vadd.f32 %v2870, %v2888
        %v2903 = vadd.f32 %v2871, %v2888
        %v2904 = vadd.f32 %v2872, %v2893
        %v2905 = vadd.f32 %v2873, %v2893
        %v2906 = vadd.f32 %v2874, %v2898
        %v2907 = vadd.f32 %v2875, %v2898
        %v2908 = vmax.f32 %v2900, 0.0
        %v2909 = vmax.f32 %v2901, 0.0
        %v2910 = vmax.f32 %v2902, 0.0
        %v2911 = vmax.f32 %v2903, 0.0
        %v2912 = vmax.f32 %v2904, 0.0
        %v2913 = vmax.f32 %v2905, 0.0
        %v2914 = vmax.f32 %v2906, 0.0
        %v2915 = vmax.f32 %v2907, 0.0
        %2916 = vst [vmem:[%s590] sm:$0xff] %v2908
        %2917 = vst [vmem:[%s590 + $0x8] sm:$0xff] %v2909
        %2918 = vst [vmem:[%s590 + $0x10] sm:$0xff] %v2910
        %2919 = vst [vmem:[%s590 + $0x18] sm:$0xff] %v2911
        %2920 = vst [vmem:[%s590 + $0x20] sm:$0xff] %v2912
        %2921 = vst [vmem:[%s590 + $0x28] sm:$0xff] %v2913
        %2922 = vst [vmem:[%s590 + $0x30] sm:$0xff] %v2914
        %2923 = vst [vmem:[%s590 + $0x38] sm:$0xff] %v2915
        %v2924 = vlaneseq
        %v2925 = vshrl.u32 %v2924, 7
        %v2926 = vsub.s32 0, %v2925
        %v2927 = vrot.slane %v1504, %v2926
        %v2928 = vlaneseq
        %v2929 = vshrl.u32 %v2928, 7
        %v2930 = vsub.s32 0, %v2929
        %v2931 = vrot.slane %v1506, %v2930
        %v2932 = vmul.f32 %v738, %v2927
        %v2933 = vmul.f32 %v739, %v2931
        %v2934 = vmul.f32 %v740, %v2927
        %v2935 = vmul.f32 %v741, %v2931
        %v2936 = vmul.f32 %v742, %v2927
        %v2937 = vmul.f32 %v743, %v2931
        %v2938 = vmul.f32 %v744, %v2927
        %v2939 = vmul.f32 %v745, %v2931
        %2944 = vrot.lane.b32.xlu0 %v2933, 17
        %v2945 = vpop.permute.xlu0 %2944
        %2946 = vrot.lane.b32.xlu0 %v2935, 17
        %v2947 = vpop.permute.xlu0 %2946
        %2948 = vrot.lane.b32.xlu0 %v2937, 17
        %v2949 = vpop.permute.xlu0 %2948
        %2950 = vrot.lane.b32.xlu0 %v2939, 17
        %v2951 = vpop.permute.xlu0 %2950
        %2960 = vrot.lane.b32.xlu0 %v2932, 17
        %v2961 = vpop.permute.xlu0 %2960
        %2962 = vrot.lane.b32.xlu0 %v2934, 17
        %v2963 = vpop.permute.xlu0 %2962
        %2964 = vrot.lane.b32.xlu0 %v2936, 17
        %v2965 = vpop.permute.xlu0 %2964
        %2966 = vrot.lane.b32.xlu0 %v2938, 17
        %v2967 = vpop.permute.xlu0 %2966
        %v2968 = vsel %vm1122, %v2961, %v2945
        %v2969 = vsel %vm1122, %v2963, %v2947
        %v2970 = vsel %vm1122, %v2965, %v2949
        %v2971 = vsel %vm1122, %v2967, %v2951
        %v2980 = vsel %vm1122, %v2945, %v2961
        %v2981 = vsel %vm1122, %v2947, %v2963
        %v2982 = vsel %vm1122, %v2949, %v2965
        %v2983 = vsel %vm1122, %v2951, %v2967
        %v2984 = vld [vmem:[%s2] sm:$0x3]
        %v2986 = vlaneseq
        %v2987 = vshrl.u32 %v2986, 7
        %v2988 = vsub.s32 0, %v2987
        %v2989 = vrot.slane %v2984, %v2988
        %v2990 = vlaneseq
        %v2991 = vshrl.u32 %v2990, 7
        %v2992 = vsub.s32 1, %v2991
        %v2993 = vrot.slane %v2984, %v2992
        %v2996 = vmul.f32 %v2980, %v2989
        %v2997 = vmul.f32 %v2968, %v2993
        %v2998 = vmul.f32 %v2981, %v2989
        %v2999 = vmul.f32 %v2969, %v2993
        %v3000 = vmul.f32 %v2982, %v2989
        %v3001 = vmul.f32 %v2970, %v2993
        %v3002 = vmul.f32 %v2983, %v2989
        %v3003 = vmul.f32 %v2971, %v2993
        %v3004 = vld [vmem:[%s14] sm:$0xff]
        %v3005 = vld [vmem:[%s14 + $0x8] sm:$0xff]
        %v3006 = vld [vmem:[%s14 + $0x10] sm:$0xff]
        %v3007 = vld [vmem:[%s14 + $0x18] sm:$0xff]
        %3008 = vrot.lane.b32.xlu0 %v2933, 16
        %v3009 = vpop.permute.xlu0 %3008
        %3010 = vrot.lane.b32.xlu0 %v2935, 16
        %v3011 = vpop.permute.xlu0 %3010
        %3012 = vrot.lane.b32.xlu0 %v2937, 16
        %v3013 = vpop.permute.xlu0 %3012
        %3014 = vrot.lane.b32.xlu0 %v2939, 16
        %v3015 = vpop.permute.xlu0 %3014
        %3020 = vrot.lane.b32.xlu0 %v2932, 16
        %v3021 = vpop.permute.xlu0 %3020
        %3022 = vrot.lane.b32.xlu0 %v2934, 16
        %v3023 = vpop.permute.xlu0 %3022
        %3024 = vrot.lane.b32.xlu0 %v2936, 16
        %v3025 = vpop.permute.xlu0 %3024
        %3026 = vrot.lane.b32.xlu0 %v2938, 16
        %v3027 = vpop.permute.xlu0 %3026
        %v3028 = vsel %vm636, %v3021, %v3009
        %v3029 = vsel %vm636, %v3023, %v3011
        %v3030 = vsel %vm636, %v3025, %v3013
        %v3031 = vsel %vm636, %v3027, %v3015
        %v3040 = vsel %vm636, %v3009, %v3021
        %v3041 = vsel %vm636, %v3011, %v3023
        %v3042 = vsel %vm636, %v3013, %v3025
        %v3043 = vsel %vm636, %v3015, %v3027
        %v3044 = vld [vmem:[%s1190] sm:$0x3]
        %v3046 = vlaneseq
        %v3047 = vshrl.u32 %v3046, 7
        %v3048 = vsub.s32 0, %v3047
        %v3049 = vrot.slane %v3044, %v3048
        %v3050 = vlaneseq
        %v3051 = vshrl.u32 %v3050, 7
        %v3052 = vsub.s32 1, %v3051
        %v3053 = vrot.slane %v3044, %v3052
        %v3056 = vmul.f32 %v3040, %v3049
        %v3057 = vmul.f32 %v3028, %v3053
        %v3058 = vmul.f32 %v3041, %v3049
        %v3059 = vmul.f32 %v3029, %v3053
        %v3060 = vmul.f32 %v3042, %v3049
        %v3061 = vmul.f32 %v3030, %v3053
        %v3062 = vmul.f32 %v3043, %v3049
        %v3063 = vmul.f32 %v3031, %v3053
        %v3064 = vld [vmem:[%s1607] sm:$0xff]
        %v3065 = vld [vmem:[%s1607 + $0x8] sm:$0xff]
        %v3066 = vld [vmem:[%s1607 + $0x10] sm:$0xff]
        %v3067 = vld [vmem:[%s1607 + $0x18] sm:$0xff]
        %v3069 = vsel %vm867, %v3064, 0
        %v3072 = vsel %vm867, %v3065, 0
        %v3075 = vsel %vm867, %v3066, 0
        %v3078 = vsel %vm867, %v3067, 0
        %3080 = vmatprep.subr.mxu0 %v3057
        %3081 = vmatpush1.msra.mxu0 %v3056
        %3082 = vmatprep.subr.mxu0 %v3059
        %3083 = vmatpush1.msra.mxu0 %v3058
        %3084 = vmatprep.subr.mxu0 %v3061
        %3085 = vmatpush1.msra.mxu0 %v3060
        %3086 = vmatprep.subr.mxu0 %v3063
        %3087 = vmatpush1.msra.mxu0 %v3062
        %3088 = vmatprep.subr.mxu0 0.0
        %3089 = vmatpush1.msra.mxu0 0.0
        %3090 = vmatprep.subr.mxu0 0.0
        %3091 = vmatpush1.msra.mxu0 0.0
        %3092 = vmatprep.subr.mxu0 0.0
        %3093 = vmatpush1.msra.mxu0 0.0
        %3094 = vmatprep.subr.mxu0 0.0
        %3095 = vmatpush1.msra.mxu0 0.0
        %3096 = vmatprep.subr.mxu0 0.0
        %3097 = vmatpush1.msra.mxu0 0.0
        %3098 = vmatprep.subr.mxu0 0.0
        %3099 = vmatpush1.msra.mxu0 0.0
        %3100 = vmatprep.subr.mxu0 0.0
        %3101 = vmatpush1.msra.mxu0 0.0
        %3102 = vmatprep.subr.mxu0 0.0
        %3103 = vmatpush1.msra.mxu0 0.0
        %3104 = vmatprep.subr.mxu0 0.0
        %3105 = vmatpush1.msra.mxu0 0.0
        %3106 = vmatprep.subr.mxu0 0.0
        %3107 = vmatpush1.msra.mxu0 0.0
        %3108 = vmatprep.subr.mxu0 0.0
        %3109 = vmatpush1.msra.mxu0 0.0
        %3110 = vmatprep.subr.mxu0 0.0
        %3111 = vmatpush1.msra.mxu0 0.0
        %3112 = vmatprep.subr.mxu0 0.0
        %3113 = vmatpush1.msra.mxu0 0.0
        %3114 = vmatprep.subr.mxu0 0.0
        %3115 = vmatpush1.msra.mxu0 0.0
        %3116 = vmatprep.subr.mxu0 0.0
        %3117 = vmatpush1.msra.mxu0 0.0
        %3118 = vmatprep.subr.mxu0 0.0
        %3119 = vmatpush1.msra.mxu0 0.0
        %3120 = vmatprep.subr.mxu0 0.0
        %3121 = vmatpush1.msra.mxu0 0.0
        %3122 = vmatprep.subr.mxu0 0.0
        %3123 = vmatpush1.msra.mxu0 0.0
        %3124 = vmatprep.subr.mxu0 0.0
        %3125 = vmatpush1.msra.mxu0 0.0
        %3126 = vmatprep.subr.mxu0 0.0
        %3127 = vmatpush1.msra.mxu0 0.0
        %3128 = vmatprep.subr.mxu0 0.0
        %3129 = vmatpush1.msra.mxu0 0.0
        %3130 = vmatprep.subr.mxu0 0.0
        %3131 = vmatpush1.msra.mxu0 0.0
        %3132 = vmatprep.subr.mxu0 0.0
        %3133 = vmatpush1.msra.mxu0 0.0
        %3134 = vmatprep.subr.mxu0 0.0
        %3135 = vmatpush1.msra.mxu0 0.0
        %3136 = vmatprep.subr.mxu0 0.0
        %3137 = vmatpush1.msra.mxu0 0.0
        %3138 = vmatprep.subr.mxu0 0.0
        %3139 = vmatpush1.msra.mxu0 0.0
        %3140 = vmatprep.subr.mxu0 0.0
        %3141 = vmatpush1.msra.mxu0 0.0
        %3142 = vmatprep.subr.mxu0 0.0
        %3143 = vmatpush1.msra.mxu0 0.0
        %3144 = vmatprep.mubr.f32.mxu0 0.0
        %3145 = vmatmul.mubr.f32.gmra.mrb[0].mxu0 %v3069
        %v3146 = vpop.f32.mrb[0].mxu0
        %v3147 = vadd.f32 0.0, %v3146
        %v3148 = vpop.f32.mrb[0].mxu0
        %v3149 = vadd.f32 0.0, %v3148
        %3150 = vmatprep.mubr.f32.mxu0 0.0
        %3151 = vmatmul.mubr.f32.gmra.mrb[0].mxu0 %v3072
        %v3152 = vpop.f32.mrb[0].mxu0
        %v3153 = vadd.f32 0.0, %v3152
        %v3154 = vpop.f32.mrb[0].mxu0
        %v3155 = vadd.f32 0.0, %v3154
        %3156 = vmatprep.mubr.f32.mxu0 0.0
        %3157 = vmatmul.mubr.f32.gmra.mrb[0].mxu0 %v3075
        %v3158 = vpop.f32.mrb[0].mxu0
        %v3159 = vadd.f32 0.0, %v3158
        %v3160 = vpop.f32.mrb[0].mxu0
        %v3161 = vadd.f32 0.0, %v3160
        %3162 = vmatprep.mubr.f32.mxu0 0.0
        %3163 = vmatmul.mubr.f32.gmra.mrb[0].mxu0 %v3078
        %v3164 = vpop.f32.mrb[0].mxu0
        %v3165 = vadd.f32 0.0, %v3164
        %v3166 = vpop.f32.mrb[0].mxu0
        %v3167 = vadd.f32 0.0, %v3166
        %3168 = vdwg.mxu0
        %v3170 = vsel %vm867, %v3004, 0
        %v3173 = vsel %vm867, %v3005, 0
        %v3176 = vsel %vm867, %v3006, 0
        %v3179 = vsel %vm867, %v3007, 0
        %3181 = vmatprep.subr.mxu0 %v2997
        %3182 = vmatpush1.msra.mxu0 %v2996
        %3183 = vmatprep.subr.mxu0 %v2999
        %3184 = vmatpush1.msra.mxu0 %v2998
        %3185 = vmatprep.subr.mxu0 %v3001
        %3186 = vmatpush1.msra.mxu0 %v3000
        %3187 = vmatprep.subr.mxu0 %v3003
        %3188 = vmatpush1.msra.mxu0 %v3002
        %3189 = vmatprep.subr.mxu0 0.0
        %3190 = vmatpush1.msra.mxu0 0.0
        %3191 = vmatprep.subr.mxu0 0.0
        %3192 = vmatpush1.msra.mxu0 0.0
        %3193 = vmatprep.subr.mxu0 0.0
        %3194 = vmatpush1.msra.mxu0 0.0
        %3195 = vmatprep.subr.mxu0 0.0
        %3196 = vmatpush1.msra.mxu0 0.0
        %3197 = vmatprep.subr.mxu0 0.0
        %3198 = vmatpush1.msra.mxu0 0.0
        %3199 = vmatprep.subr.mxu0 0.0
        %3200 = vmatpush1.msra.mxu0 0.0
        %3201 = vmatprep.subr.mxu0 0.0
        %3202 = vmatpush1.msra.mxu0 0.0
        %3203 = vmatprep.subr.mxu0 0.0
        %3204 = vmatpush1.msra.mxu0 0.0
        %3205 = vmatprep.subr.mxu0 0.0
        %3206 = vmatpush1.msra.mxu0 0.0
        %3207 = vmatprep.subr.mxu0 0.0
        %3208 = vmatpush1.msra.mxu0 0.0
        %3209 = vmatprep.subr.mxu0 0.0
        %3210 = vmatpush1.msra.mxu0 0.0
        %3211 = vmatprep.subr.mxu0 0.0
        %3212 = vmatpush1.msra.mxu0 0.0
        %3213 = vmatprep.subr.mxu0 0.0
        %3214 = vmatpush1.msra.mxu0 0.0
        %3215 = vmatprep.subr.mxu0 0.0
        %3216 = vmatpush1.msra.mxu0 0.0
        %3217 = vmatprep.subr.mxu0 0.0
        %3218 = vmatpush1.msra.mxu0 0.0
        %3219 = vmatprep.subr.mxu0 0.0
        %3220 = vmatpush1.msra.mxu0 0.0
        %3221 = vmatprep.subr.mxu0 0.0
        %3222 = vmatpush1.msra.mxu0 0.0
        %3223 = vmatprep.subr.mxu0 0.0
        %3224 = vmatpush1.msra.mxu0 0.0
        %3225 = vmatprep.subr.mxu0 0.0
        %3226 = vmatpush1.msra.mxu0 0.0
        %3227 = vmatprep.subr.mxu0 0.0
        %3228 = vmatpush1.msra.mxu0 0.0
        %3229 = vmatprep.subr.mxu0 0.0
        %3230 = vmatpush1.msra.mxu0 0.0
        %3231 = vmatprep.subr.mxu0 0.0
        %3232 = vmatpush1.msra.mxu0 0.0
        %3233 = vmatprep.subr.mxu0 0.0
        %3234 = vmatpush1.msra.mxu0 0.0
        %3235 = vmatprep.subr.mxu0 0.0
        %3236 = vmatpush1.msra.mxu0 0.0
        %3237 = vmatprep.subr.mxu0 0.0
        %3238 = vmatpush1.msra.mxu0 0.0
        %3239 = vmatprep.subr.mxu0 0.0
        %3240 = vmatpush1.msra.mxu0 0.0
        %3241 = vmatprep.subr.mxu0 0.0
        %3242 = vmatpush1.msra.mxu0 0.0
        %3243 = vmatprep.subr.mxu0 0.0
        %3244 = vmatpush1.msra.mxu0 0.0
        %3245 = vmatprep.mubr.f32.mxu0 0.0
        %3246 = vmatmul.mubr.f32.gmra.mrb[0].mxu0 %v3170
        %v3247 = vpop.f32.mrb[0].mxu0
        %v3248 = vadd.f32 %v3147, %v3247
        %v3249 = vpop.f32.mrb[0].mxu0
        %v3250 = vadd.f32 %v3149, %v3249
        %3251 = vmatprep.mubr.f32.mxu0 0.0
        %3252 = vmatmul.mubr.f32.gmra.mrb[0].mxu0 %v3173
        %v3253 = vpop.f32.mrb[0].mxu0
        %v3254 = vadd.f32 %v3153, %v3253
        %v3255 = vpop.f32.mrb[0].mxu0
        %v3256 = vadd.f32 %v3155, %v3255
        %3257 = vmatprep.mubr.f32.mxu0 0.0
        %3258 = vmatmul.mubr.f32.gmra.mrb[0].mxu0 %v3176
        %v3259 = vpop.f32.mrb[0].mxu0
        %v3260 = vadd.f32 %v3159, %v3259
        %v3261 = vpop.f32.mrb[0].mxu0
        %v3262 = vadd.f32 %v3161, %v3261
        %3263 = vmatprep.mubr.f32.mxu0 0.0
        %3264 = vmatmul.mubr.f32.gmra.mrb[0].mxu0 %v3179
        %v3265 = vpop.f32.mrb[0].mxu0
        %v3266 = vadd.f32 %v3165, %v3265
        %v3267 = vpop.f32.mrb[0].mxu0
        %v3268 = vadd.f32 %v3167, %v3267
        %3269 = vdwg.mxu0
        %3270 = vrot.lane.b32.xlu0 %v2933, 15
        %v3271 = vpop.permute.xlu0 %3270
        %3272 = vrot.lane.b32.xlu0 %v2935, 15
        %v3273 = vpop.permute.xlu0 %3272
        %3274 = vrot.lane.b32.xlu0 %v2937, 15
        %v3275 = vpop.permute.xlu0 %3274
        %3276 = vrot.lane.b32.xlu0 %v2939, 15
        %v3277 = vpop.permute.xlu0 %3276
        %3282 = vrot.lane.b32.xlu0 %v2932, 15
        %v3283 = vpop.permute.xlu0 %3282
        %3284 = vrot.lane.b32.xlu0 %v2934, 15
        %v3285 = vpop.permute.xlu0 %3284
        %3286 = vrot.lane.b32.xlu0 %v2936, 15
        %v3287 = vpop.permute.xlu0 %3286
        %3288 = vrot.lane.b32.xlu0 %v2938, 15
        %v3289 = vpop.permute.xlu0 %3288
        %v3290 = vsel %vm1214, %v3283, %v3271
        %v3291 = vsel %vm1214, %v3285, %v3273
        %v3292 = vsel %vm1214, %v3287, %v3275
        %v3293 = vsel %vm1214, %v3289, %v3277
        %v3302 = vsel %vm1214, %v3271, %v3283
        %v3303 = vsel %vm1214, %v3273, %v3285
        %v3304 = vsel %vm1214, %v3275, %v3287
        %v3305 = vsel %vm1214, %v3277, %v3289
        %v3306 = vld [vmem:[%s1236] sm:$0x3]
        %v3308 = vlaneseq
        %v3309 = vshrl.u32 %v3308, 7
        %v3310 = vsub.s32 0, %v3309
        %v3311 = vrot.slane %v3306, %v3310
        %v3312 = vlaneseq
        %v3313 = vshrl.u32 %v3312, 7
        %v3314 = vsub.s32 1, %v3313
        %v3315 = vrot.slane %v3306, %v3314
        %v3318 = vmul.f32 %v3302, %v3311
        %v3319 = vmul.f32 %v3290, %v3315
        %v3320 = vmul.f32 %v3303, %v3311
        %v3321 = vmul.f32 %v3291, %v3315
        %v3322 = vmul.f32 %v3304, %v3311
        %v3323 = vmul.f32 %v3292, %v3315
        %v3324 = vmul.f32 %v3305, %v3311
        %v3325 = vmul.f32 %v3293, %v3315
        %v3326 = vld [vmem:[%s1858] sm:$0xff]
        %v3327 = vld [vmem:[%s1858 + $0x8] sm:$0xff]
        %v3328 = vld [vmem:[%s1858 + $0x10] sm:$0xff]
        %v3329 = vld [vmem:[%s1858 + $0x18] sm:$0xff]
        %v3331 = vsel %vm867, %v3326, 0
        %v3334 = vsel %vm867, %v3327, 0
        %v3337 = vsel %vm867, %v3328, 0
        %v3340 = vsel %vm867, %v3329, 0
        %3342 = vmatprep.subr.mxu0 %v3319
        %3343 = vmatpush1.msra.mxu0 %v3318
        %3344 = vmatprep.subr.mxu0 %v3321
        %3345 = vmatpush1.msra.mxu0 %v3320
        %3346 = vmatprep.subr.mxu0 %v3323
        %3347 = vmatpush1.msra.mxu0 %v3322
        %3348 = vmatprep.subr.mxu0 %v3325
        %3349 = vmatpush1.msra.mxu0 %v3324
        %3350 = vmatprep.subr.mxu0 0.0
        %3351 = vmatpush1.msra.mxu0 0.0
        %3352 = vmatprep.subr.mxu0 0.0
        %3353 = vmatpush1.msra.mxu0 0.0
        %3354 = vmatprep.subr.mxu0 0.0
        %3355 = vmatpush1.msra.mxu0 0.0
        %3356 = vmatprep.subr.mxu0 0.0
        %3357 = vmatpush1.msra.mxu0 0.0
        %3358 = vmatprep.subr.mxu0 0.0
        %3359 = vmatpush1.msra.mxu0 0.0
        %3360 = vmatprep.subr.mxu0 0.0
        %3361 = vmatpush1.msra.mxu0 0.0
        %3362 = vmatprep.subr.mxu0 0.0
        %3363 = vmatpush1.msra.mxu0 0.0
        %3364 = vmatprep.subr.mxu0 0.0
        %3365 = vmatpush1.msra.mxu0 0.0
        %3366 = vmatprep.subr.mxu0 0.0
        %3367 = vmatpush1.msra.mxu0 0.0
        %3368 = vmatprep.subr.mxu0 0.0
        %3369 = vmatpush1.msra.mxu0 0.0
        %3370 = vmatprep.subr.mxu0 0.0
        %3371 = vmatpush1.msra.mxu0 0.0
        %3372 = vmatprep.subr.mxu0 0.0
        %3373 = vmatpush1.msra.mxu0 0.0
        %3374 = vmatprep.subr.mxu0 0.0
        %3375 = vmatpush1.msra.mxu0 0.0
        %3376 = vmatprep.subr.mxu0 0.0
        %3377 = vmatpush1.msra.mxu0 0.0
        %3378 = vmatprep.subr.mxu0 0.0
        %3379 = vmatpush1.msra.mxu0 0.0
        %3380 = vmatprep.subr.mxu0 0.0
        %3381 = vmatpush1.msra.mxu0 0.0
        %3382 = vmatprep.subr.mxu0 0.0
        %3383 = vmatpush1.msra.mxu0 0.0
        %3384 = vmatprep.subr.mxu0 0.0
        %3385 = vmatpush1.msra.mxu0 0.0
        %3386 = vmatprep.subr.mxu0 0.0
        %3387 = vmatpush1.msra.mxu0 0.0
        %3388 = vmatprep.subr.mxu0 0.0
        %3389 = vmatpush1.msra.mxu0 0.0
        %3390 = vmatprep.subr.mxu0 0.0
        %3391 = vmatpush1.msra.mxu0 0.0
        %3392 = vmatprep.subr.mxu0 0.0
        %3393 = vmatpush1.msra.mxu0 0.0
        %3394 = vmatprep.subr.mxu0 0.0
        %3395 = vmatpush1.msra.mxu0 0.0
        %3396 = vmatprep.subr.mxu0 0.0
        %3397 = vmatpush1.msra.mxu0 0.0
        %3398 = vmatprep.subr.mxu0 0.0
        %3399 = vmatpush1.msra.mxu0 0.0
        %3400 = vmatprep.subr.mxu0 0.0
        %3401 = vmatpush1.msra.mxu0 0.0
        %3402 = vmatprep.subr.mxu0 0.0
        %3403 = vmatpush1.msra.mxu0 0.0
        %3404 = vmatprep.subr.mxu0 0.0
        %3405 = vmatpush1.msra.mxu0 0.0
        %3406 = vmatprep.mubr.f32.mxu0 0.0
        %3407 = vmatmul.mubr.f32.gmra.mrb[0].mxu0 %v3331
        %v3408 = vpop.f32.mrb[0].mxu0
        %v3409 = vadd.f32 0.0, %v3408
        %v3410 = vpop.f32.mrb[0].mxu0
        %v3411 = vadd.f32 0.0, %v3410
        %3412 = vmatprep.mubr.f32.mxu0 0.0
        %3413 = vmatmul.mubr.f32.gmra.mrb[0].mxu0 %v3334
        %v3414 = vpop.f32.mrb[0].mxu0
        %v3415 = vadd.f32 0.0, %v3414
        %v3416 = vpop.f32.mrb[0].mxu0
        %v3417 = vadd.f32 0.0, %v3416
        %3418 = vmatprep.mubr.f32.mxu0 0.0
        %3419 = vmatmul.mubr.f32.gmra.mrb[0].mxu0 %v3337
        %v3420 = vpop.f32.mrb[0].mxu0
        %v3421 = vadd.f32 0.0, %v3420
        %v3422 = vpop.f32.mrb[0].mxu0
        %v3423 = vadd.f32 0.0, %v3422
        %3424 = vmatprep.mubr.f32.mxu0 0.0
        %3425 = vmatmul.mubr.f32.gmra.mrb[0].mxu0 %v3340
        %v3426 = vpop.f32.mrb[0].mxu0
        %v3427 = vadd.f32 0.0, %v3426
        %v3428 = vpop.f32.mrb[0].mxu0
        %v3429 = vadd.f32 0.0, %v3428
        %3430 = vdwg.mxu0
        %v3431 = vadd.f32 %v3248, %v3409
        %v3432 = vadd.f32 %v3250, %v3411
        %v3433 = vadd.f32 %v3254, %v3415
        %v3434 = vadd.f32 %v3256, %v3417
        %v3435 = vadd.f32 %v3260, %v3421
        %v3436 = vadd.f32 %v3262, %v3423
        %v3437 = vadd.f32 %v3266, %v3427
        %v3438 = vadd.f32 %v3268, %v3429
        %3439 = vrot.lane.b32.xlu0 %v2933, 1
        %v3440 = vpop.permute.xlu0 %3439
        %3441 = vrot.lane.b32.xlu0 %v2935, 1
        %v3442 = vpop.permute.xlu0 %3441
        %3443 = vrot.lane.b32.xlu0 %v2937, 1
        %v3444 = vpop.permute.xlu0 %3443
        %3445 = vrot.lane.b32.xlu0 %v2939, 1
        %v3446 = vpop.permute.xlu0 %3445
        %3451 = vrot.lane.b32.xlu0 %v2932, 1
        %v3452 = vpop.permute.xlu0 %3451
        %3453 = vrot.lane.b32.xlu0 %v2934, 1
        %v3454 = vpop.permute.xlu0 %3453
        %3455 = vrot.lane.b32.xlu0 %v2936, 1
        %v3456 = vpop.permute.xlu0 %3455
        %3457 = vrot.lane.b32.xlu0 %v2938, 1
        %v3458 = vpop.permute.xlu0 %3457
        %v3459 = vsel %vm1260, %v3452, %v3440
        %v3460 = vsel %vm1260, %v3454, %v3442
        %v3461 = vsel %vm1260, %v3456, %v3444
        %v3462 = vsel %vm1260, %v3458, %v3446
        %v3471 = vsel %vm1260, %v3440, %v3452
        %v3472 = vsel %vm1260, %v3442, %v3454
        %v3473 = vsel %vm1260, %v3444, %v3456
        %v3474 = vsel %vm1260, %v3446, %v3458
        %v3475 = vld [vmem:[%s1282] sm:$0x3]
        %v3477 = vlaneseq
        %v3478 = vshrl.u32 %v3477, 7
        %v3479 = vsub.s32 0, %v3478
        %v3480 = vrot.slane %v3475, %v3479
        %v3481 = vlaneseq
        %v3482 = vshrl.u32 %v3481, 7
        %v3483 = vsub.s32 1, %v3482
        %v3484 = vrot.slane %v3475, %v3483
        %v3487 = vmul.f32 %v3471, %v3480
        %v3488 = vmul.f32 %v3459, %v3484
        %v3489 = vmul.f32 %v3472, %v3480
        %v3490 = vmul.f32 %v3460, %v3484
        %v3491 = vmul.f32 %v3473, %v3480
        %v3492 = vmul.f32 %v3461, %v3484
        %v3493 = vmul.f32 %v3474, %v3480
        %v3494 = vmul.f32 %v3462, %v3484
        %v3495 = vld [vmem:[%s2016] sm:$0xff]
        %v3496 = vld [vmem:[%s2016 + $0x8] sm:$0xff]
        %v3497 = vld [vmem:[%s2016 + $0x10] sm:$0xff]
        %v3498 = vld [vmem:[%s2016 + $0x18] sm:$0xff]
        %v3500 = vsel %vm867, %v3495, 0
        %v3503 = vsel %vm867, %v3496, 0
        %v3506 = vsel %vm867, %v3497, 0
        %v3509 = vsel %vm867, %v3498, 0
        %3511 = vmatprep.subr.mxu0 %v3488
        %3512 = vmatpush1.msra.mxu0 %v3487
        %3513 = vmatprep.subr.mxu0 %v3490
        %3514 = vmatpush1.msra.mxu0 %v3489
        %3515 = vmatprep.subr.mxu0 %v3492
        %3516 = vmatpush1.msra.mxu0 %v3491
        %3517 = vmatprep.subr.mxu0 %v3494
        %3518 = vmatpush1.msra.mxu0 %v3493
        %3519 = vmatprep.subr.mxu0 0.0
        %3520 = vmatpush1.msra.mxu0 0.0
        %3521 = vmatprep.subr.mxu0 0.0
        %3522 = vmatpush1.msra.mxu0 0.0
        %3523 = vmatprep.subr.mxu0 0.0
        %3524 = vmatpush1.msra.mxu0 0.0
        %3525 = vmatprep.subr.mxu0 0.0
        %3526 = vmatpush1.msra.mxu0 0.0
        %3527 = vmatprep.subr.mxu0 0.0
        %3528 = vmatpush1.msra.mxu0 0.0
        %3529 = vmatprep.subr.mxu0 0.0
        %3530 = vmatpush1.msra.mxu0 0.0
        %3531 = vmatprep.subr.mxu0 0.0
        %3532 = vmatpush1.msra.mxu0 0.0
        %3533 = vmatprep.subr.mxu0 0.0
        %3534 = vmatpush1.msra.mxu0 0.0
        %3535 = vmatprep.subr.mxu0 0.0
        %3536 = vmatpush1.msra.mxu0 0.0
        %3537 = vmatprep.subr.mxu0 0.0
        %3538 = vmatpush1.msra.mxu0 0.0
        %3539 = vmatprep.subr.mxu0 0.0
        %3540 = vmatpush1.msra.mxu0 0.0
        %3541 = vmatprep.subr.mxu0 0.0
        %3542 = vmatpush1.msra.mxu0 0.0
        %3543 = vmatprep.subr.mxu0 0.0
        %3544 = vmatpush1.msra.mxu0 0.0
        %3545 = vmatprep.subr.mxu0 0.0
        %3546 = vmatpush1.msra.mxu0 0.0
        %3547 = vmatprep.subr.mxu0 0.0
        %3548 = vmatpush1.msra.mxu0 0.0
        %3549 = vmatprep.subr.mxu0 0.0
        %3550 = vmatpush1.msra.mxu0 0.0
        %3551 = vmatprep.subr.mxu0 0.0
        %3552 = vmatpush1.msra.mxu0 0.0
        %3553 = vmatprep.subr.mxu0 0.0
        %3554 = vmatpush1.msra.mxu0 0.0
        %3555 = vmatprep.subr.mxu0 0.0
        %3556 = vmatpush1.msra.mxu0 0.0
        %3557 = vmatprep.subr.mxu0 0.0
        %3558 = vmatpush1.msra.mxu0 0.0
        %3559 = vmatprep.subr.mxu0 0.0
        %3560 = vmatpush1.msra.mxu0 0.0
        %3561 = vmatprep.subr.mxu0 0.0
        %3562 = vmatpush1.msra.mxu0 0.0
        %3563 = vmatprep.subr.mxu0 0.0
        %3564 = vmatpush1.msra.mxu0 0.0
        %3565 = vmatprep.subr.mxu0 0.0
        %3566 = vmatpush1.msra.mxu0 0.0
        %3567 = vmatprep.subr.mxu0 0.0
        %3568 = vmatpush1.msra.mxu0 0.0
        %3569 = vmatprep.subr.mxu0 0.0
        %3570 = vmatpush1.msra.mxu0 0.0
        %3571 = vmatprep.subr.mxu0 0.0
        %3572 = vmatpush1.msra.mxu0 0.0
        %3573 = vmatprep.subr.mxu0 0.0
        %3574 = vmatpush1.msra.mxu0 0.0
        %3575 = vmatprep.mubr.f32.mxu0 0.0
        %3576 = vmatmul.mubr.f32.gmra.mrb[0].mxu0 %v3500
        %v3577 = vpop.f32.mrb[0].mxu0
        %v3578 = vadd.f32 0.0, %v3577
        %v3579 = vpop.f32.mrb[0].mxu0
        %v3580 = vadd.f32 0.0, %v3579
        %3581 = vmatprep.mubr.f32.mxu0 0.0
        %3582 = vmatmul.mubr.f32.gmra.mrb[0].mxu0 %v3503
        %v3583 = vpop.f32.mrb[0].mxu0
        %v3584 = vadd.f32 0.0, %v3583
        %v3585 = vpop.f32.mrb[0].mxu0
        %v3586 = vadd.f32 0.0, %v3585
        %3587 = vmatprep.mubr.f32.mxu0 0.0
        %3588 = vmatmul.mubr.f32.gmra.mrb[0].mxu0 %v3506
        %v3589 = vpop.f32.mrb[0].mxu0
        %v3590 = vadd.f32 0.0, %v3589
        %v3591 = vpop.f32.mrb[0].mxu0
        %v3592 = vadd.f32 0.0, %v3591
        %3593 = vmatprep.mubr.f32.mxu0 0.0
        %3594 = vmatmul.mubr.f32.gmra.mrb[0].mxu0 %v3509
        %v3595 = vpop.f32.mrb[0].mxu0
        %v3596 = vadd.f32 0.0, %v3595
        %v3597 = vpop.f32.mrb[0].mxu0
        %v3598 = vadd.f32 0.0, %v3597
        %3599 = vdwg.mxu0
        %v3600 = vadd.f32 %v3431, %v3578
        %v3601 = vadd.f32 %v3432, %v3580
        %v3602 = vadd.f32 %v3433, %v3584
        %v3603 = vadd.f32 %v3434, %v3586
        %v3604 = vadd.f32 %v3435, %v3590
        %v3605 = vadd.f32 %v3436, %v3592
        %v3606 = vadd.f32 %v3437, %v3596
        %v3607 = vadd.f32 %v3438, %v3598
        %v3608 = vld [vmem:[%s2130] sm:$0xff]
        %v3609 = vld [vmem:[%s2130 + $0x8] sm:$0xff]
        %v3610 = vld [vmem:[%s2130 + $0x10] sm:$0xff]
        %v3611 = vld [vmem:[%s2130 + $0x18] sm:$0xff]
        %v3613 = vsel %vm867, %v3608, 0
        %v3616 = vsel %vm867, %v3609, 0
        %v3619 = vsel %vm867, %v3610, 0
        %v3622 = vsel %vm867, %v3611, 0
        %3624 = vmatprep.subr.mxu0 %v2933
        %3625 = vmatpush1.msra.mxu0 %v2932
        %3626 = vmatprep.subr.mxu0 %v2935
        %3627 = vmatpush1.msra.mxu0 %v2934
        %3628 = vmatprep.subr.mxu0 %v2937
        %3629 = vmatpush1.msra.mxu0 %v2936
        %3630 = vmatprep.subr.mxu0 %v2939
        %3631 = vmatpush1.msra.mxu0 %v2938
        %3632 = vmatprep.subr.mxu0 0.0
        %3633 = vmatpush1.msra.mxu0 0.0
        %3634 = vmatprep.subr.mxu0 0.0
        %3635 = vmatpush1.msra.mxu0 0.0
        %3636 = vmatprep.subr.mxu0 0.0
        %3637 = vmatpush1.msra.mxu0 0.0
        %3638 = vmatprep.subr.mxu0 0.0
        %3639 = vmatpush1.msra.mxu0 0.0
        %3640 = vmatprep.subr.mxu0 0.0
        %3641 = vmatpush1.msra.mxu0 0.0
        %3642 = vmatprep.subr.mxu0 0.0
        %3643 = vmatpush1.msra.mxu0 0.0
        %3644 = vmatprep.subr.mxu0 0.0
        %3645 = vmatpush1.msra.mxu0 0.0
        %3646 = vmatprep.subr.mxu0 0.0
        %3647 = vmatpush1.msra.mxu0 0.0
        %3648 = vmatprep.subr.mxu0 0.0
        %3649 = vmatpush1.msra.mxu0 0.0
        %3650 = vmatprep.subr.mxu0 0.0
        %3651 = vmatpush1.msra.mxu0 0.0
        %3652 = vmatprep.subr.mxu0 0.0
        %3653 = vmatpush1.msra.mxu0 0.0
        %3654 = vmatprep.subr.mxu0 0.0
        %3655 = vmatpush1.msra.mxu0 0.0
        %3656 = vmatprep.subr.mxu0 0.0
        %3657 = vmatpush1.msra.mxu0 0.0
        %3658 = vmatprep.subr.mxu0 0.0
        %3659 = vmatpush1.msra.mxu0 0.0
        %3660 = vmatprep.subr.mxu0 0.0
        %3661 = vmatpush1.msra.mxu0 0.0
        %3662 = vmatprep.subr.mxu0 0.0
        %3663 = vmatpush1.msra.mxu0 0.0
        %3664 = vmatprep.subr.mxu0 0.0
        %3665 = vmatpush1.msra.mxu0 0.0
        %3666 = vmatprep.subr.mxu0 0.0
        %3667 = vmatpush1.msra.mxu0 0.0
        %3668 = vmatprep.subr.mxu0 0.0
        %3669 = vmatpush1.msra.mxu0 0.0
        %3670 = vmatprep.subr.mxu0 0.0
        %3671 = vmatpush1.msra.mxu0 0.0
        %3672 = vmatprep.subr.mxu0 0.0
        %3673 = vmatpush1.msra.mxu0 0.0
        %3674 = vmatprep.subr.mxu0 0.0
        %3675 = vmatpush1.msra.mxu0 0.0
        %3676 = vmatprep.subr.mxu0 0.0
        %3677 = vmatpush1.msra.mxu0 0.0
        %3678 = vmatprep.subr.mxu0 0.0
        %3679 = vmatpush1.msra.mxu0 0.0
        %3680 = vmatprep.subr.mxu0 0.0
        %3681 = vmatpush1.msra.mxu0 0.0
        %3682 = vmatprep.subr.mxu0 0.0
        %3683 = vmatpush1.msra.mxu0 0.0
        %3684 = vmatprep.subr.mxu0 0.0
        %3685 = vmatpush1.msra.mxu0 0.0
        %3686 = vmatprep.subr.mxu0 0.0
        %3687 = vmatpush1.msra.mxu0 0.0
        %3688 = vmatprep.mubr.f32.mxu0 0.0
        %3689 = vmatmul.mubr.f32.gmra.mrb[0].mxu0 %v3613
        %v3690 = vpop.f32.mrb[0].mxu0
        %v3691 = vadd.f32 0.0, %v3690
        %v3692 = vpop.f32.mrb[0].mxu0
        %v3693 = vadd.f32 0.0, %v3692
        %3694 = vmatprep.mubr.f32.mxu0 0.0
        %3695 = vmatmul.mubr.f32.gmra.mrb[0].mxu0 %v3616
        %v3696 = vpop.f32.mrb[0].mxu0
        %v3697 = vadd.f32 0.0, %v3696
        %v3698 = vpop.f32.mrb[0].mxu0
        %v3699 = vadd.f32 0.0, %v3698
        %3700 = vmatprep.mubr.f32.mxu0 0.0
        %3701 = vmatmul.mubr.f32.gmra.mrb[0].mxu0 %v3619
        %v3702 = vpop.f32.mrb[0].mxu0
        %v3703 = vadd.f32 0.0, %v3702
        %v3704 = vpop.f32.mrb[0].mxu0
        %v3705 = vadd.f32 0.0, %v3704
        %3706 = vmatprep.mubr.f32.mxu0 0.0
        %3707 = vmatmul.mubr.f32.gmra.mrb[0].mxu0 %v3622
        %v3708 = vpop.f32.mrb[0].mxu0
        %v3709 = vadd.f32 0.0, %v3708
        %v3710 = vpop.f32.mrb[0].mxu0
        %v3711 = vadd.f32 0.0, %v3710
        %3712 = vdwg.mxu0
        %v3713 = vadd.f32 %v3600, %v3691
        %v3714 = vadd.f32 %v3601, %v3693
        %v3715 = vadd.f32 %v3602, %v3697
        %v3716 = vadd.f32 %v3603, %v3699
        %v3717 = vadd.f32 %v3604, %v3703
        %v3718 = vadd.f32 %v3605, %v3705
        %v3719 = vadd.f32 %v3606, %v3709
        %v3720 = vadd.f32 %v3607, %v3711
        %3721 = vrot.lane.b32.xlu0 %v2932, 127
        %v3722 = vpop.permute.xlu0 %3721
        %3723 = vrot.lane.b32.xlu0 %v2933, 127
        %v3724 = vpop.permute.xlu0 %3723
        %3725 = vrot.lane.b32.xlu0 %v2934, 127
        %v3726 = vpop.permute.xlu0 %3725
        %3727 = vrot.lane.b32.xlu0 %v2935, 127
        %v3728 = vpop.permute.xlu0 %3727
        %3729 = vrot.lane.b32.xlu0 %v2936, 127
        %v3730 = vpop.permute.xlu0 %3729
        %3731 = vrot.lane.b32.xlu0 %v2937, 127
        %v3732 = vpop.permute.xlu0 %3731
        %3733 = vrot.lane.b32.xlu0 %v2938, 127
        %v3734 = vpop.permute.xlu0 %3733
        %3735 = vrot.lane.b32.xlu0 %v2939, 127
        %v3736 = vpop.permute.xlu0 %3735
        %v3737 = vsel %vm1317, %v3722, %v3724
        %v3738 = vsel %vm1317, %v3726, %v3728
        %v3739 = vsel %vm1317, %v3730, %v3732
        %v3740 = vsel %vm1317, %v3734, %v3736
        %v3753 = vsel %vm1317, %v3724, %v3722
        %v3754 = vsel %vm1317, %v3728, %v3726
        %v3755 = vsel %vm1317, %v3732, %v3730
        %v3756 = vsel %vm1317, %v3736, %v3734
        %v3757 = vld [vmem:[%s1340] sm:$0x3]
        %v3759 = vlaneseq
        %v3760 = vshrl.u32 %v3759, 7
        %v3761 = vsub.s32 0, %v3760
        %v3762 = vrot.slane %v3757, %v3761
        %v3763 = vlaneseq
        %v3764 = vshrl.u32 %v3763, 7
        %v3765 = vsub.s32 1, %v3764
        %v3766 = vrot.slane %v3757, %v3765
        %v3769 = vmul.f32 %v3737, %v3762
        %v3770 = vmul.f32 %v3753, %v3766
        %v3771 = vmul.f32 %v3738, %v3762
        %v3772 = vmul.f32 %v3754, %v3766
        %v3773 = vmul.f32 %v3739, %v3762
        %v3774 = vmul.f32 %v3755, %v3766
        %v3775 = vmul.f32 %v3740, %v3762
        %v3776 = vmul.f32 %v3756, %v3766
        %v3777 = vld [vmem:[%s2288] sm:$0xff]
        %v3778 = vld [vmem:[%s2288 + $0x8] sm:$0xff]
        %v3779 = vld [vmem:[%s2288 + $0x10] sm:$0xff]
        %v3780 = vld [vmem:[%s2288 + $0x18] sm:$0xff]
        %v3782 = vsel %vm867, %v3777, 0
        %v3785 = vsel %vm867, %v3778, 0
        %v3788 = vsel %vm867, %v3779, 0
        %v3791 = vsel %vm867, %v3780, 0
        %3793 = vmatprep.subr.mxu0 %v3770
        %3794 = vmatpush1.msra.mxu0 %v3769
        %3795 = vmatprep.subr.mxu0 %v3772
        %3796 = vmatpush1.msra.mxu0 %v3771
        %3797 = vmatprep.subr.mxu0 %v3774
        %3798 = vmatpush1.msra.mxu0 %v3773
        %3799 = vmatprep.subr.mxu0 %v3776
        %3800 = vmatpush1.msra.mxu0 %v3775
        %3801 = vmatprep.subr.mxu0 0.0
        %3802 = vmatpush1.msra.mxu0 0.0
        %3803 = vmatprep.subr.mxu0 0.0
        %3804 = vmatpush1.msra.mxu0 0.0
        %3805 = vmatprep.subr.mxu0 0.0
        %3806 = vmatpush1.msra.mxu0 0.0
        %3807 = vmatprep.subr.mxu0 0.0
        %3808 = vmatpush1.msra.mxu0 0.0
        %3809 = vmatprep.subr.mxu0 0.0
        %3810 = vmatpush1.msra.mxu0 0.0
        %3811 = vmatprep.subr.mxu0 0.0
        %3812 = vmatpush1.msra.mxu0 0.0
        %3813 = vmatprep.subr.mxu0 0.0
        %3814 = vmatpush1.msra.mxu0 0.0
        %3815 = vmatprep.subr.mxu0 0.0
        %3816 = vmatpush1.msra.mxu0 0.0
        %3817 = vmatprep.subr.mxu0 0.0
        %3818 = vmatpush1.msra.mxu0 0.0
        %3819 = vmatprep.subr.mxu0 0.0
        %3820 = vmatpush1.msra.mxu0 0.0
        %3821 = vmatprep.subr.mxu0 0.0
        %3822 = vmatpush1.msra.mxu0 0.0
        %3823 = vmatprep.subr.mxu0 0.0
        %3824 = vmatpush1.msra.mxu0 0.0
        %3825 = vmatprep.subr.mxu0 0.0
        %3826 = vmatpush1.msra.mxu0 0.0
        %3827 = vmatprep.subr.mxu0 0.0
        %3828 = vmatpush1.msra.mxu0 0.0
        %3829 = vmatprep.subr.mxu0 0.0
        %3830 = vmatpush1.msra.mxu0 0.0
        %3831 = vmatprep.subr.mxu0 0.0
        %3832 = vmatpush1.msra.mxu0 0.0
        %3833 = vmatprep.subr.mxu0 0.0
        %3834 = vmatpush1.msra.mxu0 0.0
        %3835 = vmatprep.subr.mxu0 0.0
        %3836 = vmatpush1.msra.mxu0 0.0
        %3837 = vmatprep.subr.mxu0 0.0
        %3838 = vmatpush1.msra.mxu0 0.0
        %3839 = vmatprep.subr.mxu0 0.0
        %3840 = vmatpush1.msra.mxu0 0.0
        %3841 = vmatprep.subr.mxu0 0.0
        %3842 = vmatpush1.msra.mxu0 0.0
        %3843 = vmatprep.subr.mxu0 0.0
        %3844 = vmatpush1.msra.mxu0 0.0
        %3845 = vmatprep.subr.mxu0 0.0
        %3846 = vmatpush1.msra.mxu0 0.0
        %3847 = vmatprep.subr.mxu0 0.0
        %3848 = vmatpush1.msra.mxu0 0.0
        %3849 = vmatprep.subr.mxu0 0.0
        %3850 = vmatpush1.msra.mxu0 0.0
        %3851 = vmatprep.subr.mxu0 0.0
        %3852 = vmatpush1.msra.mxu0 0.0
        %3853 = vmatprep.subr.mxu0 0.0
        %3854 = vmatpush1.msra.mxu0 0.0
        %3855 = vmatprep.subr.mxu0 0.0
        %3856 = vmatpush1.msra.mxu0 0.0
        %3857 = vmatprep.mubr.f32.mxu0 0.0
        %3858 = vmatmul.mubr.f32.gmra.mrb[0].mxu0 %v3782
        %v3859 = vpop.f32.mrb[0].mxu0
        %v3860 = vadd.f32 0.0, %v3859
        %v3861 = vpop.f32.mrb[0].mxu0
        %v3862 = vadd.f32 0.0, %v3861
        %3863 = vmatprep.mubr.f32.mxu0 0.0
        %3864 = vmatmul.mubr.f32.gmra.mrb[0].mxu0 %v3785
        %v3865 = vpop.f32.mrb[0].mxu0
        %v3866 = vadd.f32 0.0, %v3865
        %v3867 = vpop.f32.mrb[0].mxu0
        %v3868 = vadd.f32 0.0, %v3867
        %3869 = vmatprep.mubr.f32.mxu0 0.0
        %3870 = vmatmul.mubr.f32.gmra.mrb[0].mxu0 %v3788
        %v3871 = vpop.f32.mrb[0].mxu0
        %v3872 = vadd.f32 0.0, %v3871
        %v3873 = vpop.f32.mrb[0].mxu0
        %v3874 = vadd.f32 0.0, %v3873
        %3875 = vmatprep.mubr.f32.mxu0 0.0
        %3876 = vmatmul.mubr.f32.gmra.mrb[0].mxu0 %v3791
        %v3877 = vpop.f32.mrb[0].mxu0
        %v3878 = vadd.f32 0.0, %v3877
        %v3879 = vpop.f32.mrb[0].mxu0
        %v3880 = vadd.f32 0.0, %v3879
        %3881 = vdwg.mxu0
        %v3882 = vadd.f32 %v3713, %v3860
        %v3883 = vadd.f32 %v3714, %v3862
        %v3884 = vadd.f32 %v3715, %v3866
        %v3885 = vadd.f32 %v3716, %v3868
        %v3886 = vadd.f32 %v3717, %v3872
        %v3887 = vadd.f32 %v3718, %v3874
        %v3888 = vadd.f32 %v3719, %v3878
        %v3889 = vadd.f32 %v3720, %v3880
        %3890 = vrot.lane.b32.xlu0 %v2932, 113
        %v3891 = vpop.permute.xlu0 %3890
        %3892 = vrot.lane.b32.xlu0 %v2933, 113
        %v3893 = vpop.permute.xlu0 %3892
        %3894 = vrot.lane.b32.xlu0 %v2934, 113
        %v3895 = vpop.permute.xlu0 %3894
        %3896 = vrot.lane.b32.xlu0 %v2935, 113
        %v3897 = vpop.permute.xlu0 %3896
        %3898 = vrot.lane.b32.xlu0 %v2936, 113
        %v3899 = vpop.permute.xlu0 %3898
        %3900 = vrot.lane.b32.xlu0 %v2937, 113
        %v3901 = vpop.permute.xlu0 %3900
        %3902 = vrot.lane.b32.xlu0 %v2938, 113
        %v3903 = vpop.permute.xlu0 %3902
        %3904 = vrot.lane.b32.xlu0 %v2939, 113
        %v3905 = vpop.permute.xlu0 %3904
        %v3906 = vsel %vm1363, %v3891, %v3893
        %v3907 = vsel %vm1363, %v3895, %v3897
        %v3908 = vsel %vm1363, %v3899, %v3901
        %v3909 = vsel %vm1363, %v3903, %v3905
        %v3922 = vsel %vm1363, %v3893, %v3891
        %v3923 = vsel %vm1363, %v3897, %v3895
        %v3924 = vsel %vm1363, %v3901, %v3899
        %v3925 = vsel %vm1363, %v3905, %v3903
        %v3926 = vld [vmem:[%s1386] sm:$0x3]
        %v3928 = vlaneseq
        %v3929 = vshrl.u32 %v3928, 7
        %v3930 = vsub.s32 0, %v3929
        %v3931 = vrot.slane %v3926, %v3930
        %v3932 = vlaneseq
        %v3933 = vshrl.u32 %v3932, 7
        %v3934 = vsub.s32 1, %v3933
        %v3935 = vrot.slane %v3926, %v3934
        %v3938 = vmul.f32 %v3906, %v3931
        %v3939 = vmul.f32 %v3922, %v3935
        %v3940 = vmul.f32 %v3907, %v3931
        %v3941 = vmul.f32 %v3923, %v3935
        %v3942 = vmul.f32 %v3908, %v3931
        %v3943 = vmul.f32 %v3924, %v3935
        %v3944 = vmul.f32 %v3909, %v3931
        %v3945 = vmul.f32 %v3925, %v3935
        %v3946 = vld [vmem:[%s2446] sm:$0xff]
        %v3947 = vld [vmem:[%s2446 + $0x8] sm:$0xff]
        %v3948 = vld [vmem:[%s2446 + $0x10] sm:$0xff]
        %v3949 = vld [vmem:[%s2446 + $0x18] sm:$0xff]
        %v3951 = vsel %vm867, %v3946, 0
        %v3954 = vsel %vm867, %v3947, 0
        %v3957 = vsel %vm867, %v3948, 0
        %v3960 = vsel %vm867, %v3949, 0
        %3962 = vmatprep.subr.mxu0 %v3939
        %3963 = vmatpush1.msra.mxu0 %v3938
        %3964 = vmatprep.subr.mxu0 %v3941
        %3965 = vmatpush1.msra.mxu0 %v3940
        %3966 = vmatprep.subr.mxu0 %v3943
        %3967 = vmatpush1.msra.mxu0 %v3942
        %3968 = vmatprep.subr.mxu0 %v3945
        %3969 = vmatpush1.msra.mxu0 %v3944
        %3970 = vmatprep.subr.mxu0 0.0
        %3971 = vmatpush1.msra.mxu0 0.0
        %3972 = vmatprep.subr.mxu0 0.0
        %3973 = vmatpush1.msra.mxu0 0.0
        %3974 = vmatprep.subr.mxu0 0.0
        %3975 = vmatpush1.msra.mxu0 0.0
        %3976 = vmatprep.subr.mxu0 0.0
        %3977 = vmatpush1.msra.mxu0 0.0
        %3978 = vmatprep.subr.mxu0 0.0
        %3979 = vmatpush1.msra.mxu0 0.0
        %3980 = vmatprep.subr.mxu0 0.0
        %3981 = vmatpush1.msra.mxu0 0.0
        %3982 = vmatprep.subr.mxu0 0.0
        %3983 = vmatpush1.msra.mxu0 0.0
        %3984 = vmatprep.subr.mxu0 0.0
        %3985 = vmatpush1.msra.mxu0 0.0
        %3986 = vmatprep.subr.mxu0 0.0
        %3987 = vmatpush1.msra.mxu0 0.0
        %3988 = vmatprep.subr.mxu0 0.0
        %3989 = vmatpush1.msra.mxu0 0.0
        %3990 = vmatprep.subr.mxu0 0.0
        %3991 = vmatpush1.msra.mxu0 0.0
        %3992 = vmatprep.subr.mxu0 0.0
        %3993 = vmatpush1.msra.mxu0 0.0
        %3994 = vmatprep.subr.mxu0 0.0
        %3995 = vmatpush1.msra.mxu0 0.0
        %3996 = vmatprep.subr.mxu0 0.0
        %3997 = vmatpush1.msra.mxu0 0.0
        %3998 = vmatprep.subr.mxu0 0.0
        %3999 = vmatpush1.msra.mxu0 0.0
        %4000 = vmatprep.subr.mxu0 0.0
        %4001 = vmatpush1.msra.mxu0 0.0
        %4002 = vmatprep.subr.mxu0 0.0
        %4003 = vmatpush1.msra.mxu0 0.0
        %4004 = vmatprep.subr.mxu0 0.0
        %4005 = vmatpush1.msra.mxu0 0.0
        %4006 = vmatprep.subr.mxu0 0.0
        %4007 = vmatpush1.msra.mxu0 0.0
        %4008 = vmatprep.subr.mxu0 0.0
        %4009 = vmatpush1.msra.mxu0 0.0
        %4010 = vmatprep.subr.mxu0 0.0
        %4011 = vmatpush1.msra.mxu0 0.0
        %4012 = vmatprep.subr.mxu0 0.0
        %4013 = vmatpush1.msra.mxu0 0.0
        %4014 = vmatprep.subr.mxu0 0.0
        %4015 = vmatpush1.msra.mxu0 0.0
        %4016 = vmatprep.subr.mxu0 0.0
        %4017 = vmatpush1.msra.mxu0 0.0
        %4018 = vmatprep.subr.mxu0 0.0
        %4019 = vmatpush1.msra.mxu0 0.0
        %4020 = vmatprep.subr.mxu0 0.0
        %4021 = vmatpush1.msra.mxu0 0.0
        %4022 = vmatprep.subr.mxu0 0.0
        %4023 = vmatpush1.msra.mxu0 0.0
        %4024 = vmatprep.subr.mxu0 0.0
        %4025 = vmatpush1.msra.mxu0 0.0
        %4026 = vmatprep.mubr.f32.mxu0 0.0
        %4027 = vmatmul.mubr.f32.gmra.mrb[0].mxu0 %v3951
        %v4028 = vpop.f32.mrb[0].mxu0
        %v4029 = vadd.f32 0.0, %v4028
        %v4030 = vpop.f32.mrb[0].mxu0
        %v4031 = vadd.f32 0.0, %v4030
        %4032 = vmatprep.mubr.f32.mxu0 0.0
        %4033 = vmatmul.mubr.f32.gmra.mrb[0].mxu0 %v3954
        %v4034 = vpop.f32.mrb[0].mxu0
        %v4035 = vadd.f32 0.0, %v4034
        %v4036 = vpop.f32.mrb[0].mxu0
        %v4037 = vadd.f32 0.0, %v4036
        %4038 = vmatprep.mubr.f32.mxu0 0.0
        %4039 = vmatmul.mubr.f32.gmra.mrb[0].mxu0 %v3957
        %v4040 = vpop.f32.mrb[0].mxu0
        %v4041 = vadd.f32 0.0, %v4040
        %v4042 = vpop.f32.mrb[0].mxu0
        %v4043 = vadd.f32 0.0, %v4042
        %4044 = vmatprep.mubr.f32.mxu0 0.0
        %4045 = vmatmul.mubr.f32.gmra.mrb[0].mxu0 %v3960
        %v4046 = vpop.f32.mrb[0].mxu0
        %v4047 = vadd.f32 0.0, %v4046
        %v4048 = vpop.f32.mrb[0].mxu0
        %v4049 = vadd.f32 0.0, %v4048
        %4050 = vdwg.mxu0
        %v4051 = vadd.f32 %v3882, %v4029
        %v4052 = vadd.f32 %v3883, %v4031
        %v4053 = vadd.f32 %v3884, %v4035
        %v4054 = vadd.f32 %v3885, %v4037
        %v4055 = vadd.f32 %v3886, %v4041
        %v4056 = vadd.f32 %v3887, %v4043
        %v4057 = vadd.f32 %v3888, %v4047
        %v4058 = vadd.f32 %v3889, %v4049
        %4059 = vrot.lane.b32.xlu0 %v2932, 112
        %v4060 = vpop.permute.xlu0 %4059
        %4061 = vrot.lane.b32.xlu0 %v2933, 112
        %v4062 = vpop.permute.xlu0 %4061
        %4063 = vrot.lane.b32.xlu0 %v2934, 112
        %v4064 = vpop.permute.xlu0 %4063
        %4065 = vrot.lane.b32.xlu0 %v2935, 112
        %v4066 = vpop.permute.xlu0 %4065
        %4067 = vrot.lane.b32.xlu0 %v2936, 112
        %v4068 = vpop.permute.xlu0 %4067
        %4069 = vrot.lane.b32.xlu0 %v2937, 112
        %v4070 = vpop.permute.xlu0 %4069
        %4071 = vrot.lane.b32.xlu0 %v2938, 112
        %v4072 = vpop.permute.xlu0 %4071
        %4073 = vrot.lane.b32.xlu0 %v2939, 112
        %v4074 = vpop.permute.xlu0 %4073
        %v4075 = vsel %vm1409, %v4060, %v4062
        %v4076 = vsel %vm1409, %v4064, %v4066
        %v4077 = vsel %vm1409, %v4068, %v4070
        %v4078 = vsel %vm1409, %v4072, %v4074
        %v4091 = vsel %vm1409, %v4062, %v4060
        %v4092 = vsel %vm1409, %v4066, %v4064
        %v4093 = vsel %vm1409, %v4070, %v4068
        %v4094 = vsel %vm1409, %v4074, %v4072
        %v4095 = vld [vmem:[%s1432] sm:$0x3]
        %v4097 = vlaneseq
        %v4098 = vshrl.u32 %v4097, 7
        %v4099 = vsub.s32 0, %v4098
        %v4100 = vrot.slane %v4095, %v4099
        %v4101 = vlaneseq
        %v4102 = vshrl.u32 %v4101, 7
        %v4103 = vsub.s32 1, %v4102
        %v4104 = vrot.slane %v4095, %v4103
        %v4107 = vmul.f32 %v4075, %v4100
        %v4108 = vmul.f32 %v4091, %v4104
        %v4109 = vmul.f32 %v4076, %v4100
        %v4110 = vmul.f32 %v4092, %v4104
        %v4111 = vmul.f32 %v4077, %v4100
        %v4112 = vmul.f32 %v4093, %v4104
        %v4113 = vmul.f32 %v4078, %v4100
        %v4114 = vmul.f32 %v4094, %v4104
        %v4115 = vld [vmem:[%s2604] sm:$0xff]
        %v4116 = vld [vmem:[%s2604 + $0x8] sm:$0xff]
        %v4117 = vld [vmem:[%s2604 + $0x10] sm:$0xff]
        %v4118 = vld [vmem:[%s2604 + $0x18] sm:$0xff]
        %v4120 = vsel %vm867, %v4115, 0
        %v4123 = vsel %vm867, %v4116, 0
        %v4126 = vsel %vm867, %v4117, 0
        %v4129 = vsel %vm867, %v4118, 0
        %4131 = vmatprep.subr.mxu0 %v4108
        %4132 = vmatpush1.msra.mxu0 %v4107
        %4133 = vmatprep.subr.mxu0 %v4110
        %4134 = vmatpush1.msra.mxu0 %v4109
        %4135 = vmatprep.subr.mxu0 %v4112
        %4136 = vmatpush1.msra.mxu0 %v4111
        %4137 = vmatprep.subr.mxu0 %v4114
        %4138 = vmatpush1.msra.mxu0 %v4113
        %4139 = vmatprep.subr.mxu0 0.0
        %4140 = vmatpush1.msra.mxu0 0.0
        %4141 = vmatprep.subr.mxu0 0.0
        %4142 = vmatpush1.msra.mxu0 0.0
        %4143 = vmatprep.subr.mxu0 0.0
        %4144 = vmatpush1.msra.mxu0 0.0
        %4145 = vmatprep.subr.mxu0 0.0
        %4146 = vmatpush1.msra.mxu0 0.0
        %4147 = vmatprep.subr.mxu0 0.0
        %4148 = vmatpush1.msra.mxu0 0.0
        %4149 = vmatprep.subr.mxu0 0.0
        %4150 = vmatpush1.msra.mxu0 0.0
        %4151 = vmatprep.subr.mxu0 0.0
        %4152 = vmatpush1.msra.mxu0 0.0
        %4153 = vmatprep.subr.mxu0 0.0
        %4154 = vmatpush1.msra.mxu0 0.0
        %4155 = vmatprep.subr.mxu0 0.0
        %4156 = vmatpush1.msra.mxu0 0.0
        %4157 = vmatprep.subr.mxu0 0.0
        %4158 = vmatpush1.msra.mxu0 0.0
        %4159 = vmatprep.subr.mxu0 0.0
        %4160 = vmatpush1.msra.mxu0 0.0
        %4161 = vmatprep.subr.mxu0 0.0
        %4162 = vmatpush1.msra.mxu0 0.0
        %4163 = vmatprep.subr.mxu0 0.0
        %4164 = vmatpush1.msra.mxu0 0.0
        %4165 = vmatprep.subr.mxu0 0.0
        %4166 = vmatpush1.msra.mxu0 0.0
        %4167 = vmatprep.subr.mxu0 0.0
        %4168 = vmatpush1.msra.mxu0 0.0
        %4169 = vmatprep.subr.mxu0 0.0
        %4170 = vmatpush1.msra.mxu0 0.0
        %4171 = vmatprep.subr.mxu0 0.0
        %4172 = vmatpush1.msra.mxu0 0.0
        %4173 = vmatprep.subr.mxu0 0.0
        %4174 = vmatpush1.msra.mxu0 0.0
        %4175 = vmatprep.subr.mxu0 0.0
        %4176 = vmatpush1.msra.mxu0 0.0
        %4177 = vmatprep.subr.mxu0 0.0
        %4178 = vmatpush1.msra.mxu0 0.0
        %4179 = vmatprep.subr.mxu0 0.0
        %4180 = vmatpush1.msra.mxu0 0.0
        %4181 = vmatprep.subr.mxu0 0.0
        %4182 = vmatpush1.msra.mxu0 0.0
        %4183 = vmatprep.subr.mxu0 0.0
        %4184 = vmatpush1.msra.mxu0 0.0
        %4185 = vmatprep.subr.mxu0 0.0
        %4186 = vmatpush1.msra.mxu0 0.0
        %4187 = vmatprep.subr.mxu0 0.0
        %4188 = vmatpush1.msra.mxu0 0.0
        %4189 = vmatprep.subr.mxu0 0.0
        %4190 = vmatpush1.msra.mxu0 0.0
        %4191 = vmatprep.subr.mxu0 0.0
        %4192 = vmatpush1.msra.mxu0 0.0
        %4193 = vmatprep.subr.mxu0 0.0
        %4194 = vmatpush1.msra.mxu0 0.0
        %4195 = vmatprep.mubr.f32.mxu0 0.0
        %4196 = vmatmul.mubr.f32.gmra.mrb[0].mxu0 %v4120
        %v4197 = vpop.f32.mrb[0].mxu0
        %v4198 = vadd.f32 0.0, %v4197
        %v4199 = vpop.f32.mrb[0].mxu0
        %v4200 = vadd.f32 0.0, %v4199
        %4201 = vmatprep.mubr.f32.mxu0 0.0
        %4202 = vmatmul.mubr.f32.gmra.mrb[0].mxu0 %v4123
        %v4203 = vpop.f32.mrb[0].mxu0
        %v4204 = vadd.f32 0.0, %v4203
        %v4205 = vpop.f32.mrb[0].mxu0
        %v4206 = vadd.f32 0.0, %v4205
        %4207 = vmatprep.mubr.f32.mxu0 0.0
        %4208 = vmatmul.mubr.f32.gmra.mrb[0].mxu0 %v4126
        %v4209 = vpop.f32.mrb[0].mxu0
        %v4210 = vadd.f32 0.0, %v4209
        %v4211 = vpop.f32.mrb[0].mxu0
        %v4212 = vadd.f32 0.0, %v4211
        %4213 = vmatprep.mubr.f32.mxu0 0.0
        %4214 = vmatmul.mubr.f32.gmra.mrb[0].mxu0 %v4129
        %v4215 = vpop.f32.mrb[0].mxu0
        %v4216 = vadd.f32 0.0, %v4215
        %v4217 = vpop.f32.mrb[0].mxu0
        %v4218 = vadd.f32 0.0, %v4217
        %4219 = vdwg.mxu0
        %v4220 = vadd.f32 %v4051, %v4198
        %v4221 = vadd.f32 %v4052, %v4200
        %v4222 = vadd.f32 %v4053, %v4204
        %v4223 = vadd.f32 %v4054, %v4206
        %v4224 = vadd.f32 %v4055, %v4210
        %v4225 = vadd.f32 %v4056, %v4212
        %v4226 = vadd.f32 %v4057, %v4216
        %v4227 = vadd.f32 %v4058, %v4218
        %4228 = vrot.lane.b32.xlu0 %v2932, 111
        %v4229 = vpop.permute.xlu0 %4228
        %4230 = vrot.lane.b32.xlu0 %v2933, 111
        %v4231 = vpop.permute.xlu0 %4230
        %4232 = vrot.lane.b32.xlu0 %v2934, 111
        %v4233 = vpop.permute.xlu0 %4232
        %4234 = vrot.lane.b32.xlu0 %v2935, 111
        %v4235 = vpop.permute.xlu0 %4234
        %4236 = vrot.lane.b32.xlu0 %v2936, 111
        %v4237 = vpop.permute.xlu0 %4236
        %4238 = vrot.lane.b32.xlu0 %v2937, 111
        %v4239 = vpop.permute.xlu0 %4238
        %4240 = vrot.lane.b32.xlu0 %v2938, 111
        %v4241 = vpop.permute.xlu0 %4240
        %4242 = vrot.lane.b32.xlu0 %v2939, 111
        %v4243 = vpop.permute.xlu0 %4242
        %v4244 = vsel %vm1455, %v4229, %v4231
        %v4245 = vsel %vm1455, %v4233, %v4235
        %v4246 = vsel %vm1455, %v4237, %v4239
        %v4247 = vsel %vm1455, %v4241, %v4243
        %v4260 = vsel %vm1455, %v4231, %v4229
        %v4261 = vsel %vm1455, %v4235, %v4233
        %v4262 = vsel %vm1455, %v4239, %v4237
        %v4263 = vsel %vm1455, %v4243, %v4241
        %v4264 = vld [vmem:[%s1478] sm:$0x3]
        %v4266 = vlaneseq
        %v4267 = vshrl.u32 %v4266, 7
        %v4268 = vsub.s32 0, %v4267
        %v4269 = vrot.slane %v4264, %v4268
        %v4270 = vlaneseq
        %v4271 = vshrl.u32 %v4270, 7
        %v4272 = vsub.s32 1, %v4271
        %v4273 = vrot.slane %v4264, %v4272
        %v4276 = vmul.f32 %v4244, %v4269
        %v4277 = vmul.f32 %v4260, %v4273
        %v4278 = vmul.f32 %v4245, %v4269
        %v4279 = vmul.f32 %v4261, %v4273
        %v4280 = vmul.f32 %v4246, %v4269
        %v4281 = vmul.f32 %v4262, %v4273
        %v4282 = vmul.f32 %v4247, %v4269
        %v4283 = vmul.f32 %v4263, %v4273
        %v4284 = vld [vmem:[%s2762] sm:$0xff]
        %v4285 = vld [vmem:[%s2762 + $0x8] sm:$0xff]
        %v4286 = vld [vmem:[%s2762 + $0x10] sm:$0xff]
        %v4287 = vld [vmem:[%s2762 + $0x18] sm:$0xff]
        %v4289 = vsel %vm867, %v4284, 0
        %v4292 = vsel %vm867, %v4285, 0
        %v4295 = vsel %vm867, %v4286, 0
        %v4298 = vsel %vm867, %v4287, 0
        %4300 = vmatprep.subr.mxu0 %v4277
        %4301 = vmatpush1.msra.mxu0 %v4276
        %4302 = vmatprep.subr.mxu0 %v4279
        %4303 = vmatpush1.msra.mxu0 %v4278
        %4304 = vmatprep.subr.mxu0 %v4281
        %4305 = vmatpush1.msra.mxu0 %v4280
        %4306 = vmatprep.subr.mxu0 %v4283
        %4307 = vmatpush1.msra.mxu0 %v4282
        %4308 = vmatprep.subr.mxu0 0.0
        %4309 = vmatpush1.msra.mxu0 0.0
        %4310 = vmatprep.subr.mxu0 0.0
        %4311 = vmatpush1.msra.mxu0 0.0
        %4312 = vmatprep.subr.mxu0 0.0
        %4313 = vmatpush1.msra.mxu0 0.0
        %4314 = vmatprep.subr.mxu0 0.0
        %4315 = vmatpush1.msra.mxu0 0.0
        %4316 = vmatprep.subr.mxu0 0.0
        %4317 = vmatpush1.msra.mxu0 0.0
        %4318 = vmatprep.subr.mxu0 0.0
        %4319 = vmatpush1.msra.mxu0 0.0
        %4320 = vmatprep.subr.mxu0 0.0
        %4321 = vmatpush1.msra.mxu0 0.0
        %4322 = vmatprep.subr.mxu0 0.0
        %4323 = vmatpush1.msra.mxu0 0.0
        %4324 = vmatprep.subr.mxu0 0.0
        %4325 = vmatpush1.msra.mxu0 0.0
        %4326 = vmatprep.subr.mxu0 0.0
        %4327 = vmatpush1.msra.mxu0 0.0
        %4328 = vmatprep.subr.mxu0 0.0
        %4329 = vmatpush1.msra.mxu0 0.0
        %4330 = vmatprep.subr.mxu0 0.0
        %4331 = vmatpush1.msra.mxu0 0.0
        %4332 = vmatprep.subr.mxu0 0.0
        %4333 = vmatpush1.msra.mxu0 0.0
        %4334 = vmatprep.subr.mxu0 0.0
        %4335 = vmatpush1.msra.mxu0 0.0
        %4336 = vmatprep.subr.mxu0 0.0
        %4337 = vmatpush1.msra.mxu0 0.0
        %4338 = vmatprep.subr.mxu0 0.0
        %4339 = vmatpush1.msra.mxu0 0.0
        %4340 = vmatprep.subr.mxu0 0.0
        %4341 = vmatpush1.msra.mxu0 0.0
        %4342 = vmatprep.subr.mxu0 0.0
        %4343 = vmatpush1.msra.mxu0 0.0
        %4344 = vmatprep.subr.mxu0 0.0
        %4345 = vmatpush1.msra.mxu0 0.0
        %4346 = vmatprep.subr.mxu0 0.0
        %4347 = vmatpush1.msra.mxu0 0.0
        %4348 = vmatprep.subr.mxu0 0.0
        %4349 = vmatpush1.msra.mxu0 0.0
        %4350 = vmatprep.subr.mxu0 0.0
        %4351 = vmatpush1.msra.mxu0 0.0
        %4352 = vmatprep.subr.mxu0 0.0
        %4353 = vmatpush1.msra.mxu0 0.0
        %4354 = vmatprep.subr.mxu0 0.0
        %4355 = vmatpush1.msra.mxu0 0.0
        %4356 = vmatprep.subr.mxu0 0.0
        %4357 = vmatpush1.msra.mxu0 0.0
        %4358 = vmatprep.subr.mxu0 0.0
        %4359 = vmatpush1.msra.mxu0 0.0
        %4360 = vmatprep.subr.mxu0 0.0
        %4361 = vmatpush1.msra.mxu0 0.0
        %4362 = vmatprep.subr.mxu0 0.0
        %4363 = vmatpush1.msra.mxu0 0.0
        %4364 = vmatprep.mubr.f32.mxu0 0.0
        %4365 = vmatmul.mubr.f32.gmra.mrb[0].mxu0 %v4289
        %v4366 = vpop.f32.mrb[0].mxu0
        %v4367 = vadd.f32 0.0, %v4366
        %v4368 = vpop.f32.mrb[0].mxu0
        %v4369 = vadd.f32 0.0, %v4368
        %4370 = vmatprep.mubr.f32.mxu0 0.0
        %4371 = vmatmul.mubr.f32.gmra.mrb[0].mxu0 %v4292
        %v4372 = vpop.f32.mrb[0].mxu0
        %v4373 = vadd.f32 0.0, %v4372
        %v4374 = vpop.f32.mrb[0].mxu0
        %v4375 = vadd.f32 0.0, %v4374
        %4376 = vmatprep.mubr.f32.mxu0 0.0
        %4377 = vmatmul.mubr.f32.gmra.mrb[0].mxu0 %v4295
        %v4378 = vpop.f32.mrb[0].mxu0
        %v4379 = vadd.f32 0.0, %v4378
        %v4380 = vpop.f32.mrb[0].mxu0
        %v4381 = vadd.f32 0.0, %v4380
        %4382 = vmatprep.mubr.f32.mxu0 0.0
        %4383 = vmatmul.mubr.f32.gmra.mrb[0].mxu0 %v4298
        %v4384 = vpop.f32.mrb[0].mxu0
        %v4385 = vadd.f32 0.0, %v4384
        %v4386 = vpop.f32.mrb[0].mxu0
        %v4387 = vadd.f32 0.0, %v4386
        %4388 = vdwg.mxu0
        %v4389 = vadd.f32 %v4220, %v4367
        %v4390 = vadd.f32 %v4221, %v4369
        %v4391 = vadd.f32 %v4222, %v4373
        %v4392 = vadd.f32 %v4223, %v4375
        %v4393 = vadd.f32 %v4224, %v4379
        %v4394 = vadd.f32 %v4225, %v4381
        %v4395 = vadd.f32 %v4226, %v4385
        %v4396 = vadd.f32 %v4227, %v4387
        %v4397 = vld [vmem:[%s15] sm:$0xff]
        %v4398 = vld [vmem:[%s15 + $0x8] sm:$0xff]
        %v4399 = vld [vmem:[%s15 + $0x10] sm:$0xff]
        %v4400 = vld [vmem:[%s15 + $0x18] sm:$0xff]
        %4402 = vset.pattern.permute.xlu0 0
        %4403 = vperm.xlu0 %4402, %v4397
        %v4404 = vpop.permute.xlu0 %4403
        %4407 = vset.pattern.permute.xlu0 0
        %4408 = vperm.xlu0 %4407, %v4398
        %v4409 = vpop.permute.xlu0 %4408
        %4412 = vset.pattern.permute.xlu0 0
        %4413 = vperm.xlu0 %4412, %v4399
        %v4414 = vpop.permute.xlu0 %4413
        %4417 = vset.pattern.permute.xlu0 0
        %4418 = vperm.xlu0 %4417, %v4400
        %v4419 = vpop.permute.xlu0 %4418
        %v4421 = vadd.f32 %v4389, %v4404
        %v4422 = vadd.f32 %v4390, %v4404
        %v4423 = vadd.f32 %v4391, %v4409
        %v4424 = vadd.f32 %v4392, %v4409
        %v4425 = vadd.f32 %v4393, %v4414
        %v4426 = vadd.f32 %v4394, %v4414
        %v4427 = vadd.f32 %v4395, %v4419
        %v4428 = vadd.f32 %v4396, %v4419
        %v4429 = vmax.f32 %v4421, 0.0
        %v4430 = vmax.f32 %v4422, 0.0
        %v4431 = vmax.f32 %v4423, 0.0
        %v4432 = vmax.f32 %v4424, 0.0
        %v4433 = vmax.f32 %v4425, 0.0
        %v4434 = vmax.f32 %v4426, 0.0
        %v4435 = vmax.f32 %v4427, 0.0
        %v4436 = vmax.f32 %v4428, 0.0
        %4437 = vst [vmem:[%s595] sm:$0xff] %v4429
        %4438 = vst [vmem:[%s595 + $0x8] sm:$0xff] %v4430
        %4439 = vst [vmem:[%s595 + $0x10] sm:$0xff] %v4431
        %4440 = vst [vmem:[%s595 + $0x18] sm:$0xff] %v4432
        %4441 = vst [vmem:[%s595 + $0x20] sm:$0xff] %v4433
        %4442 = vst [vmem:[%s595 + $0x28] sm:$0xff] %v4434
        %4443 = vst [vmem:[%s595 + $0x30] sm:$0xff] %v4435
        %4444 = vst [vmem:[%s595 + $0x38] sm:$0xff] %v4436
        %p4445 = scmp.lt.s32.totalorder %s30, 1
        %s4446 = scalar_select %p4445, %s30, 1
        %s4447 = smul.addr %s4446, 8
        %s4448 = smul.addr %s4447, 8
        %s4449 = scalar_lea.vmem %s16, %s4448
        %p4450 = scmp.lt.s32.totalorder %s30, 1
        %s4451 = scalar_select %p4450, %s30, 1
        %s4452 = smul.addr %s4451, 8
        %s4453 = smul.addr %s4452, 8
        %s4454 = scalar_lea.vmem %s17, %s4453
        // Predicated region
        $region89: #{cross_feature_interaction.1} parent=83 // pred_check
          %p4455 = pneg %p394
        $region90: #{cross_feature_interaction.1} parent=83 // pred_check_branch
          %4457 = sbr.rel (%p4455) target = $region92
        $region91: #{cross_feature_interaction.1} parent=83 // pred_region
          _
        $region92: #{cross_feature_interaction.1} parent=83 // pred_fallthru
          _
        // Predicated region
        $region93: #{cross_feature_interaction.1} parent=83 // pred_check
          %p4458 = pneg %p420
        $region94: #{cross_feature_interaction.1} parent=83 // pred_check_branch
          %4460 = sbr.rel (%p4458) target = $region96
        $region95: #{cross_feature_interaction.1} parent=83 // pred_region
          _
        $region96: #{cross_feature_interaction.1} parent=83 // pred_fallthru
          _
      $region84: #{cross_feature_interaction.1} parent=5 // pred_fallthru
        _
      %p4461 = scmp.le.s32.totalorder 2, %s25
      // Predicated region
      $region97: #{cross_feature_interaction.1} parent=5 // pred_check
        %p4462 = pneg %p4461
      $region98: #{cross_feature_interaction.1} parent=5 // pred_check_branch
        %4464 = sbr.rel (%p4462) target = $region100
      $region99: #{cross_feature_interaction.1} parent=5 // pred_region
        %s4465 = ssub.s32 %s25, 2
        // Predicated region
        $region101: #{cross_feature_interaction.1} parent=99 // pred_check
          %p4466 = pneg %p400
        $region102: #{cross_feature_interaction.1} parent=99 // pred_check_branch
          %4468 = sbr.rel (%p4466) target = $region104
        $region103: #{cross_feature_interaction.1} parent=99 // pred_region
          %p4469 = scmp.lt.s32.totalorder %s31, 1
          %s4470 = scalar_select %p4469, %s31, 1
          %s4471 = smul.addr %s4470, 8
          %s4472 = smul.addr %s4471, 8
          %s4473 = scalar_lea.vmem %s16, %s4472
        $region104: #{cross_feature_interaction.1} parent=99 // pred_fallthru
          _
        // Predicated region
        $region105: #{cross_feature_interaction.1} parent=99 // pred_check
          %p4474 = pneg %p426
        $region106: #{cross_feature_interaction.1} parent=99 // pred_check_branch
          %4476 = sbr.rel (%p4474) target = $region108
        $region107: #{cross_feature_interaction.1} parent=99 // pred_region
          %p4477 = scmp.lt.s32.totalorder %s31, 1
          %s4478 = scalar_select %p4477, %s31, 1
          %s4479 = smul.addr %s4478, 8
          %s4480 = smul.addr %s4479, 8
          %s4481 = scalar_lea.vmem %s17, %s4480
        $region108: #{cross_feature_interaction.1} parent=99 // pred_fallthru
          _
      $region100: #{cross_feature_interaction.1} parent=5 // pred_fallthru
        _
    $region6: #{cross_feature_interaction.1} parent=1 // loop_footer
      %s29 = sadd.s32 1, %s25
    $region7: #{cross_feature_interaction.1} parent=1 // loop_footer_branch
      %24 = sbr.rel target = $region3
    $region8: #{cross_feature_interaction.1} parent=1 // loop_exit
      _
    %4482 = vsyncpa [#allocation3], 1
    %s4483 = scalar_lea.sflag [#allocation3], 1
    %4484 = vsyncpa %s4483, 1

</llo_original>
